<compile_context>
chip_gen: v6e
topology: v6e:2x2x1
jax: 0.10.0
libtpu: 0.0.40
codegen_flags: <defaults>
</compile_context>

<pallas_src>
import functools

import jax
import jax.numpy as jnp
from jax.experimental import pallas as pl
from jax.experimental.pallas import tpu as pltpu


# --------------------------------------------------------------------------
# Fused kernel: composed front end -> wavefront LSTM stack -> composed heads
# --------------------------------------------------------------------------
def _fused_kernel(raw_ref, wf_ref, wr_ref, b_ref, wh_ref, bh_ref,
                  pa_pc_ref, hc_ref, hid_ref, *, B, T, H, L):
    f32 = jnp.float32

    # ---- Front end: ONE matmul gives layer-0 gate pre-activations for ALL t.
    # (pos/acoustic FCs, concat FC and layer-0 W_ih are folded into wf/b row 0.)
    xg0 = jnp.dot(raw_ref[...], wf_ref[...],
                  preferred_element_type=f32) + b_ref[0:1, :]          # (T*B, 4H)

    # ---- Recurrence weights loaded once as values (gate cols already {i,f,o|g}).
    whh0 = wr_ref[0][H:, :]                                            # (H, 4H)
    wih_l, whh_l, bias_l = [], [], []
    for l in range(1, L):
        wl = wr_ref[l]                                                 # (2H, 4H)
        wih_l.append(wl[:H, :])
        whh_l.append(wl[H:, :])
        bias_l.append(b_ref[l:l + 1, :])

    def cell(gates, c_prev):
        # sigmoid over contiguous [0:3H] (i,f,o), tanh only over [3H:4H] (g).
        sg = jax.nn.sigmoid(gates[:, :3 * H])
        g_g = jnp.tanh(gates[:, 3 * H:])
        i_g = sg[:, :H]
        f_g = sg[:, H:2 * H]
        o_g = sg[:, 2 * H:3 * H]
        c_new = f_g * c_prev + i_g * g_g
        h_new = o_g * jnp.tanh(c_new)
        return h_new, c_new

    h = [jnp.zeros((B, H), f32) for _ in range(L)]
    c = [jnp.zeros((B, H), f32) for _ in range(L)]

    # ---- Wavefront: layer l processes timestep t = wave - l.  Layers iterate in
    # DECREASING order inside a wave so h[l-1] still holds timestep t when read.
    for wave in range(T + L - 1):
        for layer in range(L - 1, -1, -1):
            t = wave - layer
            if not (0 <= t < T):
                continue
            if layer == 0:
                gates = xg0[t * B:(t + 1) * B, :] + jnp.dot(
                    h[0], whh0, preferred_element_type=f32)
            else:
                gates = (jnp.dot(h[layer - 1], wih_l[layer - 1],
                                 preferred_element_type=f32)
                         + jnp.dot(h[layer], whh_l[layer - 1],
                                   preferred_element_type=f32)
                         + bias_l[layer - 1])
            h[layer], c[layer] = cell(gates, c[layer])
            if layer == L - 1:
                # per-step static-sliced store; no sublane concatenate.
                hid_ref[t * B:(t + 1) * B, :] = h[layer]

    for layer in range(L):
        hc_ref[layer] = h[layer]
        hc_ref[L + layer] = c[layer]

    # ---- Output heads: back/angl1/angl2 and back/cent1/cent2 pre-composed.
    pa_pc_ref[...] = jnp.dot(hid_ref[...], wh_ref[...],
                             preferred_element_type=f32) + bh_ref[...]


# --------------------------------------------------------------------------
# Wrapper: algebraic pre-composition, padding, packing, unpacking
# --------------------------------------------------------------------------
def _perm_gates(w):
    """Permute last-axis gate blocks from torch order {i,f,g,o} to {i,f,o,g}."""
    n = w.shape[-1] // 4
    return jnp.concatenate([w[..., :2 * n], w[..., 3 * n:], w[..., 2 * n:3 * n]],
                           axis=-1)


def simple_model_forward(params, input_tensor):
    angl, cent, trgt, othr = input_tensor
    B, T, _ = angl.shape
    H = params["lstm_dim"]
    P = params["pos_feature_size"]
    A = params["ac_linear_dim"]
    L = params["num_layer"]
    f32 = jnp.float32
    hp = jax.lax.Precision.HIGHEST     # keep pre-composition numerically exact

    # ---------- pre-compose the purely linear front end ----------------------
    wih0, whh0, b_lstm0 = params["lstm"][0]
    wf = params["w_fwd"]
    # blockdiag(w_pos, w_pos, w_trgt, w_othr) @ w_fwd
    bd_fwd = jnp.concatenate([
        jnp.dot(params["w_pos"], wf[0:P, :], precision=hp),
        jnp.dot(params["w_pos"], wf[P:2 * P, :], precision=hp),
        jnp.dot(params["w_trgt"], wf[2 * P:2 * P + A, :], precision=hp),
        jnp.dot(params["w_othr"], wf[2 * P + A:, :], precision=hp)], axis=0)
    b_fwd_eff = (jnp.dot(params["b_pos"], wf[0:P, :], precision=hp)
                 + jnp.dot(params["b_pos"], wf[P:2 * P, :], precision=hp)
                 + jnp.dot(params["b_trgt"], wf[2 * P:2 * P + A, :], precision=hp)
                 + jnp.dot(params["b_othr"], wf[2 * P + A:, :], precision=hp)
                 + params["b_fwd"])
    w_front = _perm_gates(jnp.dot(bd_fwd, wih0, precision=hp))        # (6+2IA, 4H)
    b_front = _perm_gates(jnp.dot(b_fwd_eff, wih0, precision=hp) + b_lstm0)

    # ---------- recurrence slab (L, 2H, 4H) + bias slab (L, 4H) -------------
    w_recur = [jnp.concatenate(
        [jnp.zeros((H, 4 * H), f32), _perm_gates(whh0)], axis=0)]     # layer 0: W_ih folded
    b_slab = [b_front]
    for l in range(1, L):
        wih_l, whh_l, b_l = params["lstm"][l]
        w_recur.append(jnp.concatenate(
            [_perm_gates(wih_l), _perm_gates(whh_l)], axis=0))
        b_slab.append(_perm_gates(b_l))
    w_recur = jnp.stack(w_recur, axis=0)                               # (L, 2H, 4H)
    b_slab = jnp.concatenate(b_slab, axis=0)                           # (L, 4H)

    # ---------- pre-compose output heads -------------------------------------
    w_pa = jnp.dot(jnp.dot(params["w_back"], params["w_a1"], precision=hp),
                   params["w_a2"], precision=hp)
    w_pc = jnp.dot(jnp.dot(params["w_back"], params["w_c1"], precision=hp),
                   params["w_c2"], precision=hp)
    b_pa = jnp.dot(jnp.dot(params["b_back"], params["w_a1"], precision=hp)
                   + params["b_a1"], params["w_a2"], precision=hp) + params["b_a2"]
    b_pc = jnp.dot(jnp.dot(params["b_back"], params["w_c1"], precision=hp)
                   + params["b_c1"], params["w_c2"], precision=hp) + params["b_c2"]
    w_head = jnp.concatenate([w_pa, w_pc], axis=-1)                    # (H, 6)
    b_head = jnp.concatenate([b_pa, b_pc], axis=-1)                    # (1, 6)

    # ---------- input packing: pad batch to sublane width, flatten time-major -
    Bp = max(8, -(-B // 8) * 8)
    raw = jnp.concatenate([angl, cent, trgt, othr], axis=-1)           # (B, T, Din)
    raw = jnp.pad(raw, ((0, Bp - B), (0, 0), (0, 0)))
    raw = jnp.transpose(raw, (1, 0, 2)).reshape(T * Bp, raw.shape[-1])  # row = t*Bp+b

    vmem = pl.BlockSpec(memory_space=pltpu.MemorySpace.VMEM)
    out_shapes = (jax.ShapeDtypeStruct((T * Bp, 6), f32),              # [pred_angl|pred_cent]
                  jax.ShapeDtypeStruct((2 * L, Bp, H), f32))           # [h ; c]

    pa_pc, hc = pl.pallas_call(
        functools.partial(_fused_kernel, B=Bp, T=T, H=H, L=L),
        out_shape=out_shapes,
        in_specs=[vmem] * 6,
        out_specs=(vmem, vmem),
        scratch_shapes=[pltpu.VMEM((T * Bp, H), f32)],
    )(raw, w_front, w_recur, b_slab, w_head, b_head)

    pa_pc = pa_pc.reshape(T, Bp, 6).transpose(1, 0, 2)[:B]             # back to batch-first
    pred_angl = pa_pc[..., :3]
    pred_cent = pa_pc[..., 3:]
    h = hc[:L, :B]
    c = hc[L:, :B]
    return (pred_angl, pred_cent), (h, c)


# --------------------------------------------------------------------------
# Deterministic parameter init (torch-style U(-1/sqrt(fan_in), +)) and ref check
# --------------------------------------------------------------------------
def _linear_init(key, fan_in, fan_out):
    kw, kb = jax.random.split(key)
    bound = 1.0 / jnp.sqrt(fan_in)
    w_t = jax.random.uniform(kw, (fan_in, fan_out), jnp.float32, -bound, bound)
    b = jax.random.uniform(kb, (1, fan_out), jnp.float32, -bound, bound)
    return w_t, b


def make_params(key, *, lstm_dim, ac_linear_dim, lstm_input_dim, lstm_output_dim,
                pos_feature_size, ac_feature_size, ac_feature_width, num_layer):
    input_ac_size = ac_feature_size * ac_feature_width
    cat_dim = pos_feature_size * 2 + ac_linear_dim * 2
    keys = jax.random.split(key, 16)
    p = dict(lstm_dim=lstm_dim, ac_linear_dim=ac_linear_dim,
             lstm_input_dim=lstm_input_dim, lstm_output_dim=lstm_output_dim,
             pos_feature_size=pos_feature_size, num_layer=num_layer)
    p["w_trgt"], p["b_trgt"] = _linear_init(keys[0], input_ac_size, ac_linear_dim)
    p["w_othr"], p["b_othr"] = _linear_init(keys[1], input_ac_size, ac_linear_dim)
    p["w_pos"], p["b_pos"] = _linear_init(keys[2], 3, pos_feature_size)   # angl_fc
    p["w_fwd"], p["b_fwd"] = _linear_init(keys[3], cat_dim, lstm_input_dim)
    p["w_back"], p["b_back"] = _linear_init(keys[4], lstm_dim, lstm_output_dim)
    p["w_a1"], p["b_a1"] = _linear_init(keys[5], lstm_output_dim, lstm_output_dim)
    p["w_c1"], p["b_c1"] = _linear_init(keys[6], lstm_output_dim, lstm_output_dim)
    p["w_a2"], p["b_a2"] = _linear_init(keys[7], lstm_output_dim, 3)
    p["w_c2"], p["b_c2"] = _linear_init(keys[8], lstm_output_dim, 3)
    lstm = []
    for layer in range(num_layer):
        in_dim = lstm_input_dim if layer == 0 else lstm_dim
        k1, k2, k3, k4 = jax.random.split(keys[9 + layer], 4)
        bound = 1.0 / jnp.sqrt(lstm_dim)
        wih_t = jax.random.uniform(k1, (in_dim, 4 * lstm_dim), jnp.float32, -bound, bound)
        whh_t = jax.random.uniform(k2, (lstm_dim, 4 * lstm_dim), jnp.float32, -bound, bound)
        b_ih = jax.random.uniform(k3, (1, 4 * lstm_dim), jnp.float32, -bound, bound)
        b_hh = jax.random.uniform(k4, (1, 4 * lstm_dim), jnp.float32, -bound, bound)
        lstm.append((wih_t, whh_t, b_ih + b_hh))
    p["lstm"] = lstm
    return p


def reference_forward(params, input_tensor):
    """Pure-JAX reference (mirrors the torch forward, un-composed, torch gate order)."""
    angl, cent, trgt, othr = input_tensor
    H = params["lstm_dim"]
    lin = lambda x, w, b: x @ w + b
    a = lin(angl, params["w_pos"], params["b_pos"])
    c = lin(cent, params["w_pos"], params["b_pos"])
    t = lin(trgt, params["w_trgt"], params["b_trgt"])
    o = lin(othr, params["w_othr"], params["b_othr"])
    x = lin(jnp.concatenate([a, c, t, o], axis=-1), params["w_fwd"], params["b_fwd"])
    hs, cs = [], []
    inp = x
    for layer in range(params["num_layer"]):
        wih_t, whh_t, b = params["lstm"][layer]
        B = inp.shape[0]
        h = jnp.zeros((B, H), jnp.float32)
        cst = jnp.zeros((B, H), jnp.float32)
        outs = []
        for tt in range(inp.shape[1]):
            g = inp[:, tt] @ wih_t + h @ whh_t + b
            i_g = jax.nn.sigmoid(g[:, :H])
            f_g = jax.nn.sigmoid(g[:, H:2 * H])
            g_g = jnp.tanh(g[:, 2 * H:3 * H])
            o_g = jax.nn.sigmoid(g[:, 3 * H:])
            cst = f_g * cst + i_g * g_g
            h = o_g * jnp.tanh(cst)
            outs.append(h)
        inp = jnp.stack(outs, axis=1)
        hs.append(h)
        cs.append(cst)
    back = lin(inp, params["w_back"], params["b_back"])
    pa = lin(lin(back, params["w_a1"], params["b_a1"]), params["w_a2"], params["b_a2"])
    pc = lin(lin(back, params["w_c1"], params["b_c1"]), params["w_c2"], params["b_c2"])
    return (pa, pc), (jnp.stack(hs, 0), jnp.stack(cs, 0))


if __name__ == "__main__":
    B, T = 2, 8
    cfg = dict(lstm_dim=32, ac_linear_dim=16, lstm_input_dim=32, lstm_output_dim=32,
               pos_feature_size=8, ac_feature_size=4, ac_feature_width=8, num_layer=2)
    input_ac_size = cfg["ac_feature_size"] * cfg["ac_feature_width"]

    key = jax.random.PRNGKey(0)
    k_par, k_a, k_c, k_t, k_o = jax.random.split(key, 5)
    params = make_params(k_par, **cfg)

    angl = jax.random.normal(k_a, (B, T, 3), jnp.float32)
    cent = jax.random.normal(k_c, (B, T, 3), jnp.float32)
    ac_trgt = jax.random.normal(k_t, (B, T, input_ac_size), jnp.float32)
    ac_othr = jax.random.normal(k_o, (B, T, input_ac_size), jnp.float32)
    inputs = [angl, cent, ac_trgt, ac_othr]

    (pred_angl, pred_cent), (h, c) = simple_model_forward(params, inputs)
    jax.block_until_ready((pred_angl, pred_cent, h, c))

    (ra, rc), (rh, rcc) = reference_forward(params, inputs)
    assert pred_angl.shape == (B, T, 3) and pred_cent.shape == (B, T, 3)
    assert h.shape == (cfg["num_layer"], B, cfg["lstm_dim"])
    assert c.shape == (cfg["num_layer"], B, cfg["lstm_dim"])
    for got, ref in ((pred_angl, ra), (pred_cent, rc), (h, rh), (c, rcc)):
        assert jnp.allclose(got, ref, atol=2e-4, rtol=2e-4), "mismatch vs reference"

    print("KERNEL_OK")
</pallas_src>

<mosaic_0001>
module attributes {stable_mosaic.version = 11 : i64} {
  func.func @_fused_kernel(%arg0: memref<64x70xf32, #tpu.memory_space<vmem>>, %arg1: memref<70x128xf32, #tpu.memory_space<vmem>>, %arg2: memref<2x64x128xf32, #tpu.memory_space<vmem>>, %arg3: memref<2x128xf32, #tpu.memory_space<vmem>>, %arg4: memref<32x6xf32, #tpu.memory_space<vmem>>, %arg5: memref<1x6xf32, #tpu.memory_space<vmem>>, %arg6: memref<64x6xf32, #tpu.memory_space<vmem>>, %arg7: memref<4x8x32xf32, #tpu.memory_space<vmem>>, %arg8: memref<64x32xf32, #tpu.memory_space<vmem>>) attributes {dimension_semantics = [], scalar_prefetch = 0 : i64, scratch_operands = 1 : i64, tpu.core_type = #tpu.core_type<tc>} {
    %c0 = arith.constant 0 : index
    %c0_0 = arith.constant 0 : index
    %0 = vector.load %arg0[%c0, %c0_0] : memref<64x70xf32, #tpu.memory_space<vmem>>, vector<64x70xf32>
    %c0_1 = arith.constant 0 : index
    %c0_2 = arith.constant 0 : index
    %1 = vector.load %arg1[%c0_1, %c0_2] : memref<70x128xf32, #tpu.memory_space<vmem>>, vector<70x128xf32>
    %cst = arith.constant dense<0.000000e+00> : vector<64x128xf32>
    %2 = tpu.matmul %0, %1, %cst {dimension_numbers = #tpu.dot_dimension_numbers<[1], [0], [0], [1], [0, 0, 1, 1], [], []>} : vector<64x70xf32>, vector<70x128xf32>, vector<64x128xf32> -> vector<64x128xf32>
    %c0_3 = arith.constant 0 : index
    %c0_4 = arith.constant 0 : index
    %3 = vector.load %arg3[%c0_3, %c0_4] : memref<2x128xf32, #tpu.memory_space<vmem>>, vector<1x128xf32>
    %4 = vector.broadcast %3 : vector<1x128xf32> to vector<64x128xf32>
    %5 = arith.addf %2, %4 : vector<64x128xf32>
    %c0_5 = arith.constant 0 : index
    %c0_6 = arith.constant 0 : index
    %c0_7 = arith.constant 0 : index
    %6 = vector.load %arg2[%c0_5, %c0_6, %c0_7] : memref<2x64x128xf32, #tpu.memory_space<vmem>>, vector<1x64x128xf32>
    %7 = vector.shape_cast %6 : vector<1x64x128xf32> to vector<64x128xf32>
    %8 = vector.extract_strided_slice %7 {offsets = [32, 0], sizes = [32, 128], strides = [1, 1]} : vector<64x128xf32> to vector<32x128xf32>
    %c1 = arith.constant 1 : index
    %c0_8 = arith.constant 0 : index
    %c0_9 = arith.constant 0 : index
    %9 = vector.load %arg2[%c1, %c0_8, %c0_9] : memref<2x64x128xf32, #tpu.memory_space<vmem>>, vector<1x64x128xf32>
    %10 = vector.shape_cast %9 : vector<1x64x128xf32> to vector<64x128xf32>
    %11 = vector.extract_strided_slice %10 {offsets = [0, 0], sizes = [32, 128], strides = [1, 1]} : vector<64x128xf32> to vector<32x128xf32>
    %12 = vector.extract_strided_slice %10 {offsets = [32, 0], sizes = [32, 128], strides = [1, 1]} : vector<64x128xf32> to vector<32x128xf32>
    %c1_10 = arith.constant 1 : index
    %c0_11 = arith.constant 0 : index
    %13 = vector.load %arg3[%c1_10, %c0_11] : memref<2x128xf32, #tpu.memory_space<vmem>>, vector<1x128xf32>
    %cst_12 = arith.constant 0.000000e+00 : f32
    %14 = vector.broadcast %cst_12 : f32 to vector<8x32xf32>
    %cst_13 = arith.constant 0.000000e+00 : f32
    %15 = vector.broadcast %cst_13 : f32 to vector<8x32xf32>
    %cst_14 = arith.constant 0.000000e+00 : f32
    %16 = vector.broadcast %cst_14 : f32 to vector<8x32xf32>
    %cst_15 = arith.constant 0.000000e+00 : f32
    %17 = vector.broadcast %cst_15 : f32 to vector<8x32xf32>
    %18 = vector.extract_strided_slice %5 {offsets = [0, 0], sizes = [8, 128], strides = [1, 1]} : vector<64x128xf32> to vector<8x128xf32>
    %cst_16 = arith.constant dense<0.000000e+00> : vector<8x128xf32>
    %19 = tpu.matmul %14, %8, %cst_16 {dimension_numbers = #tpu.dot_dimension_numbers<[1], [0], [0], [1], [0, 0, 1, 1], [], []>} : vector<8x32xf32>, vector<32x128xf32>, vector<8x128xf32> -> vector<8x128xf32>
    %20 = arith.addf %18, %19 : vector<8x128xf32>
    %21 = vector.extract_strided_slice %20 {offsets = [0, 0], sizes = [8, 96], strides = [1, 1]} : vector<8x128xf32> to vector<8x96xf32>
    %22 = arith.negf %21 : vector<8x96xf32>
    %23 = math.exp %22 : vector<8x96xf32>
    %cst_17 = arith.constant 1.000000e+00 : f32
    %24 = vector.broadcast %cst_17 : f32 to vector<8x96xf32>
    %25 = arith.addf %24, %23 : vector<8x96xf32>
    %26 = arith.divf %24, %25 : vector<8x96xf32>
    %27 = vector.extract_strided_slice %20 {offsets = [0, 96], sizes = [8, 32], strides = [1, 1]} : vector<8x128xf32> to vector<8x32xf32>
    %28 = math.tanh %27 : vector<8x32xf32>
    %29 = vector.extract_strided_slice %26 {offsets = [0, 0], sizes = [8, 32], strides = [1, 1]} : vector<8x96xf32> to vector<8x32xf32>
    %30 = vector.extract_strided_slice %26 {offsets = [0, 32], sizes = [8, 32], strides = [1, 1]} : vector<8x96xf32> to vector<8x32xf32>
    %31 = vector.extract_strided_slice %26 {offsets = [0, 64], sizes = [8, 32], strides = [1, 1]} : vector<8x96xf32> to vector<8x32xf32>
    %32 = arith.mulf %30, %16 : vector<8x32xf32>
    %33 = arith.mulf %29, %28 : vector<8x32xf32>
    %34 = arith.addf %32, %33 : vector<8x32xf32>
    %35 = math.tanh %34 : vector<8x32xf32>
    %36 = arith.mulf %31, %35 : vector<8x32xf32>
    %cst_18 = arith.constant dense<0.000000e+00> : vector<8x128xf32>
    %37 = tpu.matmul %36, %11, %cst_18 {dimension_numbers = #tpu.dot_dimension_numbers<[1], [0], [0], [1], [0, 0, 1, 1], [], []>} : vector<8x32xf32>, vector<32x128xf32>, vector<8x128xf32> -> vector<8x128xf32>
    %cst_19 = arith.constant dense<0.000000e+00> : vector<8x128xf32>
    %38 = tpu.matmul %15, %12, %cst_19 {dimension_numbers = #tpu.dot_dimension_numbers<[1], [0], [0], [1], [0, 0, 1, 1], [], []>} : vector<8x32xf32>, vector<32x128xf32>, vector<8x128xf32> -> vector<8x128xf32>
    %39 = arith.addf %37, %38 : vector<8x128xf32>
    %40 = vector.broadcast %13 : vector<1x128xf32> to vector<8x128xf32>
    %41 = arith.addf %39, %40 : vector<8x128xf32>
    %42 = vector.extract_strided_slice %41 {offsets = [0, 0], sizes = [8, 96], strides = [1, 1]} : vector<8x128xf32> to vector<8x96xf32>
    %43 = arith.negf %42 : vector<8x96xf32>
    %44 = math.exp %43 : vector<8x96xf32>
    %cst_20 = arith.constant 1.000000e+00 : f32
    %45 = vector.broadcast %cst_20 : f32 to vector<8x96xf32>
    %46 = arith.addf %45, %44 : vector<8x96xf32>
    %47 = arith.divf %45, %46 : vector<8x96xf32>
    %48 = vector.extract_strided_slice %41 {offsets = [0, 96], sizes = [8, 32], strides = [1, 1]} : vector<8x128xf32> to vector<8x32xf32>
    %49 = math.tanh %48 : vector<8x32xf32>
    %50 = vector.extract_strided_slice %47 {offsets = [0, 0], sizes = [8, 32], strides = [1, 1]} : vector<8x96xf32> to vector<8x32xf32>
    %51 = vector.extract_strided_slice %47 {offsets = [0, 32], sizes = [8, 32], strides = [1, 1]} : vector<8x96xf32> to vector<8x32xf32>
    %52 = vector.extract_strided_slice %47 {offsets = [0, 64], sizes = [8, 32], strides = [1, 1]} : vector<8x96xf32> to vector<8x32xf32>
    %53 = arith.mulf %51, %17 : vector<8x32xf32>
    %54 = arith.mulf %50, %49 : vector<8x32xf32>
    %55 = arith.addf %53, %54 : vector<8x32xf32>
    %56 = math.tanh %55 : vector<8x32xf32>
    %57 = arith.mulf %52, %56 : vector<8x32xf32>
    %c0_21 = arith.constant 0 : index
    %c0_22 = arith.constant 0 : index
    %58 = vector.load %arg8[%c0_21, %c0_22] : memref<64x32xf32, #tpu.memory_space<vmem>>, vector<8x32xf32>
    tpu.vector_store %arg8[%c0_21, %c0_22], %57 {strides = array<i32>} : memref<64x32xf32, #tpu.memory_space<vmem>>, vector<8x32xf32>,
    %59 = vector.extract_strided_slice %5 {offsets = [8, 0], sizes = [8, 128], strides = [1, 1]} : vector<64x128xf32> to vector<8x128xf32>
    %cst_23 = arith.constant dense<0.000000e+00> : vector<8x128xf32>
    %60 = tpu.matmul %36, %8, %cst_23 {dimension_numbers = #tpu.dot_dimension_numbers<[1], [0], [0], [1], [0, 0, 1, 1], [], []>} : vector<8x32xf32>, vector<32x128xf32>, vector<8x128xf32> -> vector<8x128xf32>
    %61 = arith.addf %59, %60 : vector<8x128xf32>
    %62 = vector.extract_strided_slice %61 {offsets = [0, 0], sizes = [8, 96], strides = [1, 1]} : vector<8x128xf32> to vector<8x96xf32>
    %63 = arith.negf %62 : vector<8x96xf32>
    %64 = math.exp %63 : vector<8x96xf32>
    %cst_24 = arith.constant 1.000000e+00 : f32
    %65 = vector.broadcast %cst_24 : f32 to vector<8x96xf32>
    %66 = arith.addf %65, %64 : vector<8x96xf32>
    %67 = arith.divf %65, %66 : vector<8x96xf32>
    %68 = vector.extract_strided_slice %61 {offsets = [0, 96], sizes = [8, 32], strides = [1, 1]} : vector<8x128xf32> to vector<8x32xf32>
    %69 = math.tanh %68 : vector<8x32xf32>
    %70 = vector.extract_strided_slice %67 {offsets = [0, 0], sizes = [8, 32], strides = [1, 1]} : vector<8x96xf32> to vector<8x32xf32>
    %71 = vector.extract_strided_slice %67 {offsets = [0, 32], sizes = [8, 32], strides = [1, 1]} : vector<8x96xf32> to vector<8x32xf32>
    %72 = vector.extract_strided_slice %67 {offsets = [0, 64], sizes = [8, 32], strides = [1, 1]} : vector<8x96xf32> to vector<8x32xf32>
    %73 = arith.mulf %71, %34 : vector<8x32xf32>
    %74 = arith.mulf %70, %69 : vector<8x32xf32>
    %75 = arith.addf %73, %74 : vector<8x32xf32>
    %76 = math.tanh %75 : vector<8x32xf32>
    %77 = arith.mulf %72, %76 : vector<8x32xf32>
    %cst_25 = arith.constant dense<0.000000e+00> : vector<8x128xf32>
    %78 = tpu.matmul %77, %11, %cst_25 {dimension_numbers = #tpu.dot_dimension_numbers<[1], [0], [0], [1], [0, 0, 1, 1], [], []>} : vector<8x32xf32>, vector<32x128xf32>, vector<8x128xf32> -> vector<8x128xf32>
    %cst_26 = arith.constant dense<0.000000e+00> : vector<8x128xf32>
    %79 = tpu.matmul %57, %12, %cst_26 {dimension_numbers = #tpu.dot_dimension_numbers<[1], [0], [0], [1], [0, 0, 1, 1], [], []>} : vector<8x32xf32>, vector<32x128xf32>, vector<8x128xf32> -> vector<8x128xf32>
    %80 = arith.addf %78, %79 : vector<8x128xf32>
    %81 = vector.broadcast %13 : vector<1x128xf32> to vector<8x128xf32>
    %82 = arith.addf %80, %81 : vector<8x128xf32>
    %83 = vector.extract_strided_slice %82 {offsets = [0, 0], sizes = [8, 96], strides = [1, 1]} : vector<8x128xf32> to vector<8x96xf32>
    %84 = arith.negf %83 : vector<8x96xf32>
    %85 = math.exp %84 : vector<8x96xf32>
    %cst_27 = arith.constant 1.000000e+00 : f32
    %86 = vector.broadcast %cst_27 : f32 to vector<8x96xf32>
    %87 = arith.addf %86, %85 : vector<8x96xf32>
    %88 = arith.divf %86, %87 : vector<8x96xf32>
    %89 = vector.extract_strided_slice %82 {offsets = [0, 96], sizes = [8, 32], strides = [1, 1]} : vector<8x128xf32> to vector<8x32xf32>
    %90 = math.tanh %89 : vector<8x32xf32>
    %91 = vector.extract_strided_slice %88 {offsets = [0, 0], sizes = [8, 32], strides = [1, 1]} : vector<8x96xf32> to vector<8x32xf32>
    %92 = vector.extract_strided_slice %88 {offsets = [0, 32], sizes = [8, 32], strides = [1, 1]} : vector<8x96xf32> to vector<8x32xf32>
    %93 = vector.extract_strided_slice %88 {offsets = [0, 64], sizes = [8, 32], strides = [1, 1]} : vector<8x96xf32> to vector<8x32xf32>
    %94 = arith.mulf %92, %55 : vector<8x32xf32>
    %95 = arith.mulf %91, %90 : vector<8x32xf32>
    %96 = arith.addf %94, %95 : vector<8x32xf32>
    %97 = math.tanh %96 : vector<8x32xf32>
    %98 = arith.mulf %93, %97 : vector<8x32xf32>
    %c8 = arith.constant 8 : index
    %c0_28 = arith.constant 0 : index
    %99 = vector.load %arg8[%c8, %c0_28] : memref<64x32xf32, #tpu.memory_space<vmem>>, vector<8x32xf32>
    tpu.vector_store %arg8[%c8, %c0_28], %98 {strides = array<i32>} : memref<64x32xf32, #tpu.memory_space<vmem>>, vector<8x32xf32>,
    %100 = vector.extract_strided_slice %5 {offsets = [16, 0], sizes = [8, 128], strides = [1, 1]} : vector<64x128xf32> to vector<8x128xf32>
    %cst_29 = arith.constant dense<0.000000e+00> : vector<8x128xf32>
    %101 = tpu.matmul %77, %8, %cst_29 {dimension_numbers = #tpu.dot_dimension_numbers<[1], [0], [0], [1], [0, 0, 1, 1], [], []>} : vector<8x32xf32>, vector<32x128xf32>, vector<8x128xf32> -> vector<8x128xf32>
    %102 = arith.addf %100, %101 : vector<8x128xf32>
    %103 = vector.extract_strided_slice %102 {offsets = [0, 0], sizes = [8, 96], strides = [1, 1]} : vector<8x128xf32> to vector<8x96xf32>
    %104 = arith.negf %103 : vector<8x96xf32>
    %105 = math.exp %104 : vector<8x96xf32>
    %cst_30 = arith.constant 1.000000e+00 : f32
    %106 = vector.broadcast %cst_30 : f32 to vector<8x96xf32>
    %107 = arith.addf %106, %105 : vector<8x96xf32>
    %108 = arith.divf %106, %107 : vector<8x96xf32>
    %109 = vector.extract_strided_slice %102 {offsets = [0, 96], sizes = [8, 32], strides = [1, 1]} : vector<8x128xf32> to vector<8x32xf32>
    %110 = math.tanh %109 : vector<8x32xf32>
    %111 = vector.extract_strided_slice %108 {offsets = [0, 0], sizes = [8, 32], strides = [1, 1]} : vector<8x96xf32> to vector<8x32xf32>
    %112 = vector.extract_strided_slice %108 {offsets = [0, 32], sizes = [8, 32], strides = [1, 1]} : vector<8x96xf32> to vector<8x32xf32>
    %113 = vector.extract_strided_slice %108 {offsets = [0, 64], sizes = [8, 32], strides = [1, 1]} : vector<8x96xf32> to vector<8x32xf32>
    %114 = arith.mulf %112, %75 : vector<8x32xf32>
    %115 = arith.mulf %111, %110 : vector<8x32xf32>
    %116 = arith.addf %114, %115 : vector<8x32xf32>
    %117 = math.tanh %116 : vector<8x32xf32>
    %118 = arith.mulf %113, %117 : vector<8x32xf32>
    %cst_31 = arith.constant dense<0.000000e+00> : vector<8x128xf32>
    %119 = tpu.matmul %118, %11, %cst_31 {dimension_numbers = #tpu.dot_dimension_numbers<[1], [0], [0], [1], [0, 0, 1, 1], [], []>} : vector<8x32xf32>, vector<32x128xf32>, vector<8x128xf32> -> vector<8x128xf32>
    %cst_32 = arith.constant dense<0.000000e+00> : vector<8x128xf32>
    %120 = tpu.matmul %98, %12, %cst_32 {dimension_numbers = #tpu.dot_dimension_numbers<[1], [0], [0], [1], [0, 0, 1, 1], [], []>} : vector<8x32xf32>, vector<32x128xf32>, vector<8x128xf32> -> vector<8x128xf32>
    %121 = arith.addf %119, %120 : vector<8x128xf32>
    %122 = vector.broadcast %13 : vector<1x128xf32> to vector<8x128xf32>
    %123 = arith.addf %121, %122 : vector<8x128xf32>
    %124 = vector.extract_strided_slice %123 {offsets = [0, 0], sizes = [8, 96], strides = [1, 1]} : vector<8x128xf32> to vector<8x96xf32>
    %125 = arith.negf %124 : vector<8x96xf32>
    %126 = math.exp %125 : vector<8x96xf32>
    %cst_33 = arith.constant 1.000000e+00 : f32
    %127 = vector.broadcast %cst_33 : f32 to vector<8x96xf32>
    %128 = arith.addf %127, %126 : vector<8x96xf32>
    %129 = arith.divf %127, %128 : vector<8x96xf32>
    %130 = vector.extract_strided_slice %123 {offsets = [0, 96], sizes = [8, 32], strides = [1, 1]} : vector<8x128xf32> to vector<8x32xf32>
    %131 = math.tanh %130 : vector<8x32xf32>
    %132 = vector.extract_strided_slice %129 {offsets = [0, 0], sizes = [8, 32], strides = [1, 1]} : vector<8x96xf32> to vector<8x32xf32>
    %133 = vector.extract_strided_slice %129 {offsets = [0, 32], sizes = [8, 32], strides = [1, 1]} : vector<8x96xf32> to vector<8x32xf32>
    %134 = vector.extract_strided_slice %129 {offsets = [0, 64], sizes = [8, 32], strides = [1, 1]} : vector<8x96xf32> to vector<8x32xf32>
    %135 = arith.mulf %133, %96 : vector<8x32xf32>
    %136 = arith.mulf %132, %131 : vector<8x32xf32>
    %137 = arith.addf %135, %136 : vector<8x32xf32>
    %138 = math.tanh %137 : vector<8x32xf32>
    %139 = arith.mulf %134, %138 : vector<8x32xf32>
    %c16 = arith.constant 16 : index
    %c0_34 = arith.constant 0 : index
    %140 = vector.load %arg8[%c16, %c0_34] : memref<64x32xf32, #tpu.memory_space<vmem>>, vector<8x32xf32>
    tpu.vector_store %arg8[%c16, %c0_34], %139 {strides = array<i32>} : memref<64x32xf32, #tpu.memory_space<vmem>>, vector<8x32xf32>,
    %141 = vector.extract_strided_slice %5 {offsets = [24, 0], sizes = [8, 128], strides = [1, 1]} : vector<64x128xf32> to vector<8x128xf32>
    %cst_35 = arith.constant dense<0.000000e+00> : vector<8x128xf32>
    %142 = tpu.matmul %118, %8, %cst_35 {dimension_numbers = #tpu.dot_dimension_numbers<[1], [0], [0], [1], [0, 0, 1, 1], [], []>} : vector<8x32xf32>, vector<32x128xf32>, vector<8x128xf32> -> vector<8x128xf32>
    %143 = arith.addf %141, %142 : vector<8x128xf32>
    %144 = vector.extract_strided_slice %143 {offsets = [0, 0], sizes = [8, 96], strides = [1, 1]} : vector<8x128xf32> to vector<8x96xf32>
    %145 = arith.negf %144 : vector<8x96xf32>
    %146 = math.exp %145 : vector<8x96xf32>
    %cst_36 = arith.constant 1.000000e+00 : f32
    %147 = vector.broadcast %cst_36 : f32 to vector<8x96xf32>
    %148 = arith.addf %147, %146 : vector<8x96xf32>
    %149 = arith.divf %147, %148 : vector<8x96xf32>
    %150 = vector.extract_strided_slice %143 {offsets = [0, 96], sizes = [8, 32], strides = [1, 1]} : vector<8x128xf32> to vector<8x32xf32>
    %151 = math.tanh %150 : vector<8x32xf32>
    %152 = vector.extract_strided_slice %149 {offsets = [0, 0], sizes = [8, 32], strides = [1, 1]} : vector<8x96xf32> to vector<8x32xf32>
    %153 = vector.extract_strided_slice %149 {offsets = [0, 32], sizes = [8, 32], strides = [1, 1]} : vector<8x96xf32> to vector<8x32xf32>
    %154 = vector.extract_strided_slice %149 {offsets = [0, 64], sizes = [8, 32], strides = [1, 1]} : vector<8x96xf32> to vector<8x32xf32>
    %155 = arith.mulf %153, %116 : vector<8x32xf32>
    %156 = arith.mulf %152, %151 : vector<8x32xf32>
    %157 = arith.addf %155, %156 : vector<8x32xf32>
    %158 = math.tanh %157 : vector<8x32xf32>
    %159 = arith.mulf %154, %158 : vector<8x32xf32>
    %cst_37 = arith.constant dense<0.000000e+00> : vector<8x128xf32>
    %160 = tpu.matmul %159, %11, %cst_37 {dimension_numbers = #tpu.dot_dimension_numbers<[1], [0], [0], [1], [0, 0, 1, 1], [], []>} : vector<8x32xf32>, vector<32x128xf32>, vector<8x128xf32> -> vector<8x128xf32>
    %cst_38 = arith.constant dense<0.000000e+00> : vector<8x128xf32>
    %161 = tpu.matmul %139, %12, %cst_38 {dimension_numbers = #tpu.dot_dimension_numbers<[1], [0], [0], [1], [0, 0, 1, 1], [], []>} : vector<8x32xf32>, vector<32x128xf32>, vector<8x128xf32> -> vector<8x128xf32>
    %162 = arith.addf %160, %161 : vector<8x128xf32>
    %163 = vector.broadcast %13 : vector<1x128xf32> to vector<8x128xf32>
    %164 = arith.addf %162, %163 : vector<8x128xf32>
    %165 = vector.extract_strided_slice %164 {offsets = [0, 0], sizes = [8, 96], strides = [1, 1]} : vector<8x128xf32> to vector<8x96xf32>
    %166 = arith.negf %165 : vector<8x96xf32>
    %167 = math.exp %166 : vector<8x96xf32>
    %cst_39 = arith.constant 1.000000e+00 : f32
    %168 = vector.broadcast %cst_39 : f32 to vector<8x96xf32>
    %169 = arith.addf %168, %167 : vector<8x96xf32>
    %170 = arith.divf %168, %169 : vector<8x96xf32>
    %171 = vector.extract_strided_slice %164 {offsets = [0, 96], sizes = [8, 32], strides = [1, 1]} : vector<8x128xf32> to vector<8x32xf32>
    %172 = math.tanh %171 : vector<8x32xf32>
    %173 = vector.extract_strided_slice %170 {offsets = [0, 0], sizes = [8, 32], strides = [1, 1]} : vector<8x96xf32> to vector<8x32xf32>
    %174 = vector.extract_strided_slice %170 {offsets = [0, 32], sizes = [8, 32], strides = [1, 1]} : vector<8x96xf32> to vector<8x32xf32>
    %175 = vector.extract_strided_slice %170 {offsets = [0, 64], sizes = [8, 32], strides = [1, 1]} : vector<8x96xf32> to vector<8x32xf32>
    %176 = arith.mulf %174, %137 : vector<8x32xf32>
    %177 = arith.mulf %173, %172 : vector<8x32xf32>
    %178 = arith.addf %176, %177 : vector<8x32xf32>
    %179 = math.tanh %178 : vector<8x32xf32>
    %180 = arith.mulf %175, %179 : vector<8x32xf32>
    %c24 = arith.constant 24 : index
    %c0_40 = arith.constant 0 : index
    %181 = vector.load %arg8[%c24, %c0_40] : memref<64x32xf32, #tpu.memory_space<vmem>>, vector<8x32xf32>
    tpu.vector_store %arg8[%c24, %c0_40], %180 {strides = array<i32>} : memref<64x32xf32, #tpu.memory_space<vmem>>, vector<8x32xf32>,
    %182 = vector.extract_strided_slice %5 {offsets = [32, 0], sizes = [8, 128], strides = [1, 1]} : vector<64x128xf32> to vector<8x128xf32>
    %cst_41 = arith.constant dense<0.000000e+00> : vector<8x128xf32>
    %183 = tpu.matmul %159, %8, %cst_41 {dimension_numbers = #tpu.dot_dimension_numbers<[1], [0], [0], [1], [0, 0, 1, 1], [], []>} : vector<8x32xf32>, vector<32x128xf32>, vector<8x128xf32> -> vector<8x128xf32>
    %184 = arith.addf %182, %183 : vector<8x128xf32>
    %185 = vector.extract_strided_slice %184 {offsets = [0, 0], sizes = [8, 96], strides = [1, 1]} : vector<8x128xf32> to vector<8x96xf32>
    %186 = arith.negf %185 : vector<8x96xf32>
    %187 = math.exp %186 : vector<8x96xf32>
    %cst_42 = arith.constant 1.000000e+00 : f32
    %188 = vector.broadcast %cst_42 : f32 to vector<8x96xf32>
    %189 = arith.addf %188, %187 : vector<8x96xf32>
    %190 = arith.divf %188, %189 : vector<8x96xf32>
    %191 = vector.extract_strided_slice %184 {offsets = [0, 96], sizes = [8, 32], strides = [1, 1]} : vector<8x128xf32> to vector<8x32xf32>
    %192 = math.tanh %191 : vector<8x32xf32>
    %193 = vector.extract_strided_slice %190 {offsets = [0, 0], sizes = [8, 32], strides = [1, 1]} : vector<8x96xf32> to vector<8x32xf32>
    %194 = vector.extract_strided_slice %190 {offsets = [0, 32], sizes = [8, 32], strides = [1, 1]} : vector<8x96xf32> to vector<8x32xf32>
    %195 = vector.extract_strided_slice %190 {offsets = [0, 64], sizes = [8, 32], strides = [1, 1]} : vector<8x96xf32> to vector<8x32xf32>
    %196 = arith.mulf %194, %157 : vector<8x32xf32>
    %197 = arith.mulf %193, %192 : vector<8x32xf32>
    %198 = arith.addf %196, %197 : vector<8x32xf32>
    %199 = math.tanh %198 : vector<8x32xf32>
    %200 = arith.mulf %195, %199 : vector<8x32xf32>
    %cst_43 = arith.constant dense<0.000000e+00> : vector<8x128xf32>
    %201 = tpu.matmul %200, %11, %cst_43 {dimension_numbers = #tpu.dot_dimension_numbers<[1], [0], [0], [1], [0, 0, 1, 1], [], []>} : vector<8x32xf32>, vector<32x128xf32>, vector<8x128xf32> -> vector<8x128xf32>
    %cst_44 = arith.constant dense<0.000000e+00> : vector<8x128xf32>
    %202 = tpu.matmul %180, %12, %cst_44 {dimension_numbers = #tpu.dot_dimension_numbers<[1], [0], [0], [1], [0, 0, 1, 1], [], []>} : vector<8x32xf32>, vector<32x128xf32>, vector<8x128xf32> -> vector<8x128xf32>
    %203 = arith.addf %201, %202 : vector<8x128xf32>
    %204 = vector.broadcast %13 : vector<1x128xf32> to vector<8x128xf32>
    %205 = arith.addf %203, %204 : vector<8x128xf32>
    %206 = vector.extract_strided_slice %205 {offsets = [0, 0], sizes = [8, 96], strides = [1, 1]} : vector<8x128xf32> to vector<8x96xf32>
    %207 = arith.negf %206 : vector<8x96xf32>
    %208 = math.exp %207 : vector<8x96xf32>
    %cst_45 = arith.constant 1.000000e+00 : f32
    %209 = vector.broadcast %cst_45 : f32 to vector<8x96xf32>
    %210 = arith.addf %209, %208 : vector<8x96xf32>
    %211 = arith.divf %209, %210 : vector<8x96xf32>
    %212 = vector.extract_strided_slice %205 {offsets = [0, 96], sizes = [8, 32], strides = [1, 1]} : vector<8x128xf32> to vector<8x32xf32>
    %213 = math.tanh %212 : vector<8x32xf32>
    %214 = vector.extract_strided_slice %211 {offsets = [0, 0], sizes = [8, 32], strides = [1, 1]} : vector<8x96xf32> to vector<8x32xf32>
    %215 = vector.extract_strided_slice %211 {offsets = [0, 32], sizes = [8, 32], strides = [1, 1]} : vector<8x96xf32> to vector<8x32xf32>
    %216 = vector.extract_strided_slice %211 {offsets = [0, 64], sizes = [8, 32], strides = [1, 1]} : vector<8x96xf32> to vector<8x32xf32>
    %217 = arith.mulf %215, %178 : vector<8x32xf32>
    %218 = arith.mulf %214, %213 : vector<8x32xf32>
    %219 = arith.addf %217, %218 : vector<8x32xf32>
    %220 = math.tanh %219 : vector<8x32xf32>
    %221 = arith.mulf %216, %220 : vector<8x32xf32>
    %c32 = arith.constant 32 : index
    %c0_46 = arith.constant 0 : index
    %222 = vector.load %arg8[%c32, %c0_46] : memref<64x32xf32, #tpu.memory_space<vmem>>, vector<8x32xf32>
    tpu.vector_store %arg8[%c32, %c0_46], %221 {strides = array<i32>} : memref<64x32xf32, #tpu.memory_space<vmem>>, vector<8x32xf32>,
    %223 = vector.extract_strided_slice %5 {offsets = [40, 0], sizes = [8, 128], strides = [1, 1]} : vector<64x128xf32> to vector<8x128xf32>
    %cst_47 = arith.constant dense<0.000000e+00> : vector<8x128xf32>
    %224 = tpu.matmul %200, %8, %cst_47 {dimension_numbers = #tpu.dot_dimension_numbers<[1], [0], [0], [1], [0, 0, 1, 1], [], []>} : vector<8x32xf32>, vector<32x128xf32>, vector<8x128xf32> -> vector<8x128xf32>
    %225 = arith.addf %223, %224 : vector<8x128xf32>
    %226 = vector.extract_strided_slice %225 {offsets = [0, 0], sizes = [8, 96], strides = [1, 1]} : vector<8x128xf32> to vector<8x96xf32>
    %227 = arith.negf %226 : vector<8x96xf32>
    %228 = math.exp %227 : vector<8x96xf32>
    %cst_48 = arith.constant 1.000000e+00 : f32
    %229 = vector.broadcast %cst_48 : f32 to vector<8x96xf32>
    %230 = arith.addf %229, %228 : vector<8x96xf32>
    %231 = arith.divf %229, %230 : vector<8x96xf32>
    %232 = vector.extract_strided_slice %225 {offsets = [0, 96], sizes = [8, 32], strides = [1, 1]} : vector<8x128xf32> to vector<8x32xf32>
    %233 = math.tanh %232 : vector<8x32xf32>
    %234 = vector.extract_strided_slice %231 {offsets = [0, 0], sizes = [8, 32], strides = [1, 1]} : vector<8x96xf32> to vector<8x32xf32>
    %235 = vector.extract_strided_slice %231 {offsets = [0, 32], sizes = [8, 32], strides = [1, 1]} : vector<8x96xf32> to vector<8x32xf32>
    %236 = vector.extract_strided_slice %231 {offsets = [0, 64], sizes = [8, 32], strides = [1, 1]} : vector<8x96xf32> to vector<8x32xf32>
    %237 = arith.mulf %235, %198 : vector<8x32xf32>
    %238 = arith.mulf %234, %233 : vector<8x32xf32>
    %239 = arith.addf %237, %238 : vector<8x32xf32>
    %240 = math.tanh %239 : vector<8x32xf32>
    %241 = arith.mulf %236, %240 : vector<8x32xf32>
    %cst_49 = arith.constant dense<0.000000e+00> : vector<8x128xf32>
    %242 = tpu.matmul %241, %11, %cst_49 {dimension_numbers = #tpu.dot_dimension_numbers<[1], [0], [0], [1], [0, 0, 1, 1], [], []>} : vector<8x32xf32>, vector<32x128xf32>, vector<8x128xf32> -> vector<8x128xf32>
    %cst_50 = arith.constant dense<0.000000e+00> : vector<8x128xf32>
    %243 = tpu.matmul %221, %12, %cst_50 {dimension_numbers = #tpu.dot_dimension_numbers<[1], [0], [0], [1], [0, 0, 1, 1], [], []>} : vector<8x32xf32>, vector<32x128xf32>, vector<8x128xf32> -> vector<8x128xf32>
    %244 = arith.addf %242, %243 : vector<8x128xf32>
    %245 = vector.broadcast %13 : vector<1x128xf32> to vector<8x128xf32>
    %246 = arith.addf %244, %245 : vector<8x128xf32>
    %247 = vector.extract_strided_slice %246 {offsets = [0, 0], sizes = [8, 96], strides = [1, 1]} : vector<8x128xf32> to vector<8x96xf32>
    %248 = arith.negf %247 : vector<8x96xf32>
    %249 = math.exp %248 : vector<8x96xf32>
    %cst_51 = arith.constant 1.000000e+00 : f32
    %250 = vector.broadcast %cst_51 : f32 to vector<8x96xf32>
    %251 = arith.addf %250, %249 : vector<8x96xf32>
    %252 = arith.divf %250, %251 : vector<8x96xf32>
    %253 = vector.extract_strided_slice %246 {offsets = [0, 96], sizes = [8, 32], strides = [1, 1]} : vector<8x128xf32> to vector<8x32xf32>
    %254 = math.tanh %253 : vector<8x32xf32>
    %255 = vector.extract_strided_slice %252 {offsets = [0, 0], sizes = [8, 32], strides = [1, 1]} : vector<8x96xf32> to vector<8x32xf32>
    %256 = vector.extract_strided_slice %252 {offsets = [0, 32], sizes = [8, 32], strides = [1, 1]} : vector<8x96xf32> to vector<8x32xf32>
    %257 = vector.extract_strided_slice %252 {offsets = [0, 64], sizes = [8, 32], strides = [1, 1]} : vector<8x96xf32> to vector<8x32xf32>
    %258 = arith.mulf %256, %219 : vector<8x32xf32>
    %259 = arith.mulf %255, %254 : vector<8x32xf32>
    %260 = arith.addf %258, %259 : vector<8x32xf32>
    %261 = math.tanh %260 : vector<8x32xf32>
    %262 = arith.mulf %257, %261 : vector<8x32xf32>
    %c40 = arith.constant 40 : index
    %c0_52 = arith.constant 0 : index
    %263 = vector.load %arg8[%c40, %c0_52] : memref<64x32xf32, #tpu.memory_space<vmem>>, vector<8x32xf32>
    tpu.vector_store %arg8[%c40, %c0_52], %262 {strides = array<i32>} : memref<64x32xf32, #tpu.memory_space<vmem>>, vector<8x32xf32>,
    %264 = vector.extract_strided_slice %5 {offsets = [48, 0], sizes = [8, 128], strides = [1, 1]} : vector<64x128xf32> to vector<8x128xf32>
    %cst_53 = arith.constant dense<0.000000e+00> : vector<8x128xf32>
    %265 = tpu.matmul %241, %8, %cst_53 {dimension_numbers = #tpu.dot_dimension_numbers<[1], [0], [0], [1], [0, 0, 1, 1], [], []>} : vector<8x32xf32>, vector<32x128xf32>, vector<8x128xf32> -> vector<8x128xf32>
    %266 = arith.addf %264, %265 : vector<8x128xf32>
    %267 = vector.extract_strided_slice %266 {offsets = [0, 0], sizes = [8, 96], strides = [1, 1]} : vector<8x128xf32> to vector<8x96xf32>
    %268 = arith.negf %267 : vector<8x96xf32>
    %269 = math.exp %268 : vector<8x96xf32>
    %cst_54 = arith.constant 1.000000e+00 : f32
    %270 = vector.broadcast %cst_54 : f32 to vector<8x96xf32>
    %271 = arith.addf %270, %269 : vector<8x96xf32>
    %272 = arith.divf %270, %271 : vector<8x96xf32>
    %273 = vector.extract_strided_slice %266 {offsets = [0, 96], sizes = [8, 32], strides = [1, 1]} : vector<8x128xf32> to vector<8x32xf32>
    %274 = math.tanh %273 : vector<8x32xf32>
    %275 = vector.extract_strided_slice %272 {offsets = [0, 0], sizes = [8, 32], strides = [1, 1]} : vector<8x96xf32> to vector<8x32xf32>
    %276 = vector.extract_strided_slice %272 {offsets = [0, 32], sizes = [8, 32], strides = [1, 1]} : vector<8x96xf32> to vector<8x32xf32>
    %277 = vector.extract_strided_slice %272 {offsets = [0, 64], sizes = [8, 32], strides = [1, 1]} : vector<8x96xf32> to vector<8x32xf32>
    %278 = arith.mulf %276, %239 : vector<8x32xf32>
    %279 = arith.mulf %275, %274 : vector<8x32xf32>
    %280 = arith.addf %278, %279 : vector<8x32xf32>
    %281 = math.tanh %280 : vector<8x32xf32>
    %282 = arith.mulf %277, %281 : vector<8x32xf32>
    %cst_55 = arith.constant dense<0.000000e+00> : vector<8x128xf32>
    %283 = tpu.matmul %282, %11, %cst_55 {dimension_numbers = #tpu.dot_dimension_numbers<[1], [0], [0], [1], [0, 0, 1, 1], [], []>} : vector<8x32xf32>, vector<32x128xf32>, vector<8x128xf32> -> vector<8x128xf32>
    %cst_56 = arith.constant dense<0.000000e+00> : vector<8x128xf32>
    %284 = tpu.matmul %262, %12, %cst_56 {dimension_numbers = #tpu.dot_dimension_numbers<[1], [0], [0], [1], [0, 0, 1, 1], [], []>} : vector<8x32xf32>, vector<32x128xf32>, vector<8x128xf32> -> vector<8x128xf32>
    %285 = arith.addf %283, %284 : vector<8x128xf32>
    %286 = vector.broadcast %13 : vector<1x128xf32> to vector<8x128xf32>
    %287 = arith.addf %285, %286 : vector<8x128xf32>
    %288 = vector.extract_strided_slice %287 {offsets = [0, 0], sizes = [8, 96], strides = [1, 1]} : vector<8x128xf32> to vector<8x96xf32>
    %289 = arith.negf %288 : vector<8x96xf32>
    %290 = math.exp %289 : vector<8x96xf32>
    %cst_57 = arith.constant 1.000000e+00 : f32
    %291 = vector.broadcast %cst_57 : f32 to vector<8x96xf32>
    %292 = arith.addf %291, %290 : vector<8x96xf32>
    %293 = arith.divf %291, %292 : vector<8x96xf32>
    %294 = vector.extract_strided_slice %287 {offsets = [0, 96], sizes = [8, 32], strides = [1, 1]} : vector<8x128xf32> to vector<8x32xf32>
    %295 = math.tanh %294 : vector<8x32xf32>
    %296 = vector.extract_strided_slice %293 {offsets = [0, 0], sizes = [8, 32], strides = [1, 1]} : vector<8x96xf32> to vector<8x32xf32>
    %297 = vector.extract_strided_slice %293 {offsets = [0, 32], sizes = [8, 32], strides = [1, 1]} : vector<8x96xf32> to vector<8x32xf32>
    %298 = vector.extract_strided_slice %293 {offsets = [0, 64], sizes = [8, 32], strides = [1, 1]} : vector<8x96xf32> to vector<8x32xf32>
    %299 = arith.mulf %297, %260 : vector<8x32xf32>
    %300 = arith.mulf %296, %295 : vector<8x32xf32>
    %301 = arith.addf %299, %300 : vector<8x32xf32>
    %302 = math.tanh %301 : vector<8x32xf32>
    %303 = arith.mulf %298, %302 : vector<8x32xf32>
    %c48 = arith.constant 48 : index
    %c0_58 = arith.constant 0 : index
    %304 = vector.load %arg8[%c48, %c0_58] : memref<64x32xf32, #tpu.memory_space<vmem>>, vector<8x32xf32>
    tpu.vector_store %arg8[%c48, %c0_58], %303 {strides = array<i32>} : memref<64x32xf32, #tpu.memory_space<vmem>>, vector<8x32xf32>,
    %305 = vector.extract_strided_slice %5 {offsets = [56, 0], sizes = [8, 128], strides = [1, 1]} : vector<64x128xf32> to vector<8x128xf32>
    %cst_59 = arith.constant dense<0.000000e+00> : vector<8x128xf32>
    %306 = tpu.matmul %282, %8, %cst_59 {dimension_numbers = #tpu.dot_dimension_numbers<[1], [0], [0], [1], [0, 0, 1, 1], [], []>} : vector<8x32xf32>, vector<32x128xf32>, vector<8x128xf32> -> vector<8x128xf32>
    %307 = arith.addf %305, %306 : vector<8x128xf32>
    %308 = vector.extract_strided_slice %307 {offsets = [0, 0], sizes = [8, 96], strides = [1, 1]} : vector<8x128xf32> to vector<8x96xf32>
    %309 = arith.negf %308 : vector<8x96xf32>
    %310 = math.exp %309 : vector<8x96xf32>
    %cst_60 = arith.constant 1.000000e+00 : f32
    %311 = vector.broadcast %cst_60 : f32 to vector<8x96xf32>
    %312 = arith.addf %311, %310 : vector<8x96xf32>
    %313 = arith.divf %311, %312 : vector<8x96xf32>
    %314 = vector.extract_strided_slice %307 {offsets = [0, 96], sizes = [8, 32], strides = [1, 1]} : vector<8x128xf32> to vector<8x32xf32>
    %315 = math.tanh %314 : vector<8x32xf32>
    %316 = vector.extract_strided_slice %313 {offsets = [0, 0], sizes = [8, 32], strides = [1, 1]} : vector<8x96xf32> to vector<8x32xf32>
    %317 = vector.extract_strided_slice %313 {offsets = [0, 32], sizes = [8, 32], strides = [1, 1]} : vector<8x96xf32> to vector<8x32xf32>
    %318 = vector.extract_strided_slice %313 {offsets = [0, 64], sizes = [8, 32], strides = [1, 1]} : vector<8x96xf32> to vector<8x32xf32>
    %319 = arith.mulf %317, %280 : vector<8x32xf32>
    %320 = arith.mulf %316, %315 : vector<8x32xf32>
    %321 = arith.addf %319, %320 : vector<8x32xf32>
    %322 = math.tanh %321 : vector<8x32xf32>
    %323 = arith.mulf %318, %322 : vector<8x32xf32>
    %cst_61 = arith.constant dense<0.000000e+00> : vector<8x128xf32>
    %324 = tpu.matmul %323, %11, %cst_61 {dimension_numbers = #tpu.dot_dimension_numbers<[1], [0], [0], [1], [0, 0, 1, 1], [], []>} : vector<8x32xf32>, vector<32x128xf32>, vector<8x128xf32> -> vector<8x128xf32>
    %cst_62 = arith.constant dense<0.000000e+00> : vector<8x128xf32>
    %325 = tpu.matmul %303, %12, %cst_62 {dimension_numbers = #tpu.dot_dimension_numbers<[1], [0], [0], [1], [0, 0, 1, 1], [], []>} : vector<8x32xf32>, vector<32x128xf32>, vector<8x128xf32> -> vector<8x128xf32>
    %326 = arith.addf %324, %325 : vector<8x128xf32>
    %327 = vector.broadcast %13 : vector<1x128xf32> to vector<8x128xf32>
    %328 = arith.addf %326, %327 : vector<8x128xf32>
    %329 = vector.extract_strided_slice %328 {offsets = [0, 0], sizes = [8, 96], strides = [1, 1]} : vector<8x128xf32> to vector<8x96xf32>
    %330 = arith.negf %329 : vector<8x96xf32>
    %331 = math.exp %330 : vector<8x96xf32>
    %cst_63 = arith.constant 1.000000e+00 : f32
    %332 = vector.broadcast %cst_63 : f32 to vector<8x96xf32>
    %333 = arith.addf %332, %331 : vector<8x96xf32>
    %334 = arith.divf %332, %333 : vector<8x96xf32>
    %335 = vector.extract_strided_slice %328 {offsets = [0, 96], sizes = [8, 32], strides = [1, 1]} : vector<8x128xf32> to vector<8x32xf32>
    %336 = math.tanh %335 : vector<8x32xf32>
    %337 = vector.extract_strided_slice %334 {offsets = [0, 0], sizes = [8, 32], strides = [1, 1]} : vector<8x96xf32> to vector<8x32xf32>
    %338 = vector.extract_strided_slice %334 {offsets = [0, 32], sizes = [8, 32], strides = [1, 1]} : vector<8x96xf32> to vector<8x32xf32>
    %339 = vector.extract_strided_slice %334 {offsets = [0, 64], sizes = [8, 32], strides = [1, 1]} : vector<8x96xf32> to vector<8x32xf32>
    %340 = arith.mulf %338, %301 : vector<8x32xf32>
    %341 = arith.mulf %337, %336 : vector<8x32xf32>
    %342 = arith.addf %340, %341 : vector<8x32xf32>
    %343 = math.tanh %342 : vector<8x32xf32>
    %344 = arith.mulf %339, %343 : vector<8x32xf32>
    %c56 = arith.constant 56 : index
    %c0_64 = arith.constant 0 : index
    %345 = vector.load %arg8[%c56, %c0_64] : memref<64x32xf32, #tpu.memory_space<vmem>>, vector<8x32xf32>
    tpu.vector_store %arg8[%c56, %c0_64], %344 {strides = array<i32>} : memref<64x32xf32, #tpu.memory_space<vmem>>, vector<8x32xf32>,
    %c0_65 = arith.constant 0 : index
    %c0_66 = arith.constant 0 : index
    %c0_67 = arith.constant 0 : index
    %346 = vector.load %arg7[%c0_65, %c0_66, %c0_67] : memref<4x8x32xf32, #tpu.memory_space<vmem>>, vector<1x8x32xf32>
    %347 = vector.shape_cast %346 : vector<1x8x32xf32> to vector<8x32xf32>
    %348 = vector.shape_cast %323 : vector<8x32xf32> to vector<1x8x32xf32>
    tpu.vector_store %arg7[%c0_65, %c0_66, %c0_67], %348 {strides = array<i32>} : memref<4x8x32xf32, #tpu.memory_space<vmem>>, vector<1x8x32xf32>,
    %c2 = arith.constant 2 : index
    %c0_68 = arith.constant 0 : index
    %c0_69 = arith.constant 0 : index
    %349 = vector.load %arg7[%c2, %c0_68, %c0_69] : memref<4x8x32xf32, #tpu.memory_space<vmem>>, vector<1x8x32xf32>
    %350 = vector.shape_cast %349 : vector<1x8x32xf32> to vector<8x32xf32>
    %351 = vector.shape_cast %321 : vector<8x32xf32> to vector<1x8x32xf32>
    tpu.vector_store %arg7[%c2, %c0_68, %c0_69], %351 {strides = array<i32>} : memref<4x8x32xf32, #tpu.memory_space<vmem>>, vector<1x8x32xf32>,
    %c1_70 = arith.constant 1 : index
    %c0_71 = arith.constant 0 : index
    %c0_72 = arith.constant 0 : index
    %352 = vector.load %arg7[%c1_70, %c0_71, %c0_72] : memref<4x8x32xf32, #tpu.memory_space<vmem>>, vector<1x8x32xf32>
    %353 = vector.shape_cast %352 : vector<1x8x32xf32> to vector<8x32xf32>
    %354 = vector.shape_cast %344 : vector<8x32xf32> to vector<1x8x32xf32>
    tpu.vector_store %arg7[%c1_70, %c0_71, %c0_72], %354 {strides = array<i32>} : memref<4x8x32xf32, #tpu.memory_space<vmem>>, vector<1x8x32xf32>,
    %c3 = arith.constant 3 : index
    %c0_73 = arith.constant 0 : index
    %c0_74 = arith.constant 0 : index
    %355 = vector.load %arg7[%c3, %c0_73, %c0_74] : memref<4x8x32xf32, #tpu.memory_space<vmem>>, vector<1x8x32xf32>
    %356 = vector.shape_cast %355 : vector<1x8x32xf32> to vector<8x32xf32>
    %357 = vector.shape_cast %342 : vector<8x32xf32> to vector<1x8x32xf32>
    tpu.vector_store %arg7[%c3, %c0_73, %c0_74], %357 {strides = array<i32>} : memref<4x8x32xf32, #tpu.memory_space<vmem>>, vector<1x8x32xf32>,
    %c0_75 = arith.constant 0 : index
    %c0_76 = arith.constant 0 : index
    %358 = vector.load %arg8[%c0_75, %c0_76] : memref<64x32xf32, #tpu.memory_space<vmem>>, vector<64x32xf32>
    %c0_77 = arith.constant 0 : index
    %c0_78 = arith.constant 0 : index
    %359 = vector.load %arg4[%c0_77, %c0_78] : memref<32x6xf32, #tpu.memory_space<vmem>>, vector<32x6xf32>
    %cst_79 = arith.constant dense<0.000000e+00> : vector<64x6xf32>
    %360 = tpu.matmul %358, %359, %cst_79 {dimension_numbers = #tpu.dot_dimension_numbers<[1], [0], [0], [1], [0, 0, 1, 1], [], []>} : vector<64x32xf32>, vector<32x6xf32>, vector<64x6xf32> -> vector<64x6xf32>
    %c0_80 = arith.constant 0 : index
    %c0_81 = arith.constant 0 : index
    %361 = vector.load %arg5[%c0_80, %c0_81] : memref<1x6xf32, #tpu.memory_space<vmem>>, vector<1x6xf32>
    %362 = vector.broadcast %361 : vector<1x6xf32> to vector<64x6xf32>
    %363 = arith.addf %360, %362 : vector<64x6xf32>
    %c0_82 = arith.constant 0 : index
    %c0_83 = arith.constant 0 : index
    %364 = vector.load %arg6[%c0_82, %c0_83] : memref<64x6xf32, #tpu.memory_space<vmem>>, vector<64x6xf32>
    tpu.vector_store %arg6[%c0_82, %c0_83], %363 {strides = array<i32>} : memref<64x6xf32, #tpu.memory_space<vmem>>, vector<64x6xf32>,
    return
  }
}

</mosaic_0001>

<llo_original>
// kernel: tpu_custom_call.1
$region0: #{tpu_custom_call.1}
  #allocation0 [shape = 'u32[]', space=smem, size = 0x4, offset = 0x4, fixed_abs, tag = 'smem constant byte address 0x4 - core index']
  #allocation1 [shape = 'u32[144,128]{1,0:T(1,128)}', space=vmem, size = 0x12000, scoped, tag = 'internal scratch']
  #allocation2 [shape = 'f32[64,32]{1,0:T(8,128)}', space=vmem, size = 0x8000, scoped, tag = 'scratch operand']
  %s0 = inlined_call_operand.hbm [shape: f32[64,70], index: 0, kind: input, shape index: {}]
  %s1 = inlined_call_operand.hbm [shape: f32[70,128], index: 1, kind: input, shape index: {}]
  %s2 = inlined_call_operand.hbm [shape: f32[2,64,128], index: 2, kind: input, shape index: {}]
  %s3 = inlined_call_operand.vmem [shape: f32[2,128], index: 3, kind: input, shape index: {}]
  %s4 = inlined_call_operand.vmem [shape: f32[32,6], index: 4, kind: input, shape index: {}]
  %s5 = inlined_call_operand.vmem [shape: f32[1,6], index: 5, kind: input, shape index: {}]
  %s6 = inlined_call_operand.vmem [shape: f32[64,6], index: 6, kind: output, shape index: {0}]
  %s7 = inlined_call_operand.hbm [shape: f32[4,8,32], index: 7, kind: output, shape index: {1}]
  %8 = xla_tuple %s6, %s7
  %s9 = sld [smem:[#allocation0]]
  $region54: #{tpu_custom_call.1} parent=0
    _
  %s11 = ssub.s32 1, %s9
  %s12 = scalar_select 0, %s11, %s9
  $region1: #{tpu_custom_call.1} parent=0
    #allocation3 [shape = 'u8[32768]{0}', space=vmem, size = 0x8000, scoped, tag = 'input window, operand 0, single buffered']
    #allocation4 [shape = 's32[1]{0}', space=sflag, size = 0x4, scoped, tag = 'scoped memory for tpu_custom_call.1']
    #allocation5 [shape = 's32[1]{0}', space=sflag, size = 0x4, scoped, tag = 'scoped memory for tpu_custom_call.1']
    #allocation6 [shape = 'u8[36864]{0}', space=vmem, size = 0x9000, scoped, tag = 'input window, operand 1, single buffered']
    #allocation7 [shape = 's32[1]{0}', space=sflag, size = 0x4, scoped, tag = 'scoped memory for tpu_custom_call.1']
    #allocation8 [shape = 'u8[65536]{0}', space=vmem, size = 0x10000, scoped, tag = 'input window, operand 2, single buffered']
    #allocation9 [shape = 'u8[16384]{0}', space=vmem, size = 0x4000, scoped, tag = 'output window, operand 1, single buffered']
    %13 = vsyncpa [#allocation4], 0
    %14 = vsyncpa [#allocation7], 0
    %15 = vsyncpa [#allocation5], 0
    // Predicated region
    $region2: #{tpu_custom_call.1} parent=1 // pred_check
      _
    $region3: #{tpu_custom_call.1} parent=1 // pred_check_branch
      %17 = sbr.rel (0) target = $region5
    $region4: #{tpu_custom_call.1} parent=1 // pred_region
      %s19 = ssub.s32 1024, 1024
      %20 = vsyncadd [#allocation4], %s19
      %s21 = sshll.u32 [#allocation3], 4
      %s22 = int_to_ptr.vmem [resolvable:$true] %s21
      %27 = dma.hbm_to_vmem [thread:$0]  %s0, 1024, %s22, [#allocation4], 128, 128, 8
    $region5: #{tpu_custom_call.1} parent=1 // pred_fallthru
      _
    // Predicated region
    $region6: #{tpu_custom_call.1} parent=1 // pred_check
      _
    $region7: #{tpu_custom_call.1} parent=1 // pred_check_branch
      %29 = sbr.rel (0) target = $region9
    $region8: #{tpu_custom_call.1} parent=1 // pred_region
      %s31 = ssub.s32 1152, 1152
      %32 = vsyncadd [#allocation7], %s31
      %s33 = sshll.u32 [#allocation6], 4
      %s34 = int_to_ptr.vmem [resolvable:$true] %s33
      %39 = dma.hbm_to_vmem [thread:$0]  %s1, 1152, %s34, [#allocation7], 128, 128, 8
    $region9: #{tpu_custom_call.1} parent=1 // pred_fallthru
      _
    // Predicated region
    $region10: #{tpu_custom_call.1} parent=1 // pred_check
      _
    $region11: #{tpu_custom_call.1} parent=1 // pred_check_branch
      %41 = sbr.rel (0) target = $region13
    $region12: #{tpu_custom_call.1} parent=1 // pred_region
      %s43 = ssub.s32 2048, 2048
      %44 = vsyncadd [#allocation7], %s43
      %s45 = sshll.u32 [#allocation8], 4
      %s46 = int_to_ptr.vmem [resolvable:$true] %s45
      %51 = dma.hbm_to_vmem [thread:$0]  %s2, 2048, %s46, [#allocation7], 128, 128, 8
    $region13: #{tpu_custom_call.1} parent=1 // pred_fallthru
      _
    // Predicated region
    $region14: #{tpu_custom_call.1} parent=1 // pred_check
      _
    $region15: #{tpu_custom_call.1} parent=1 // pred_check_branch
      %53 = sbr.rel (0) target = $region17
    $region16: #{tpu_custom_call.1} parent=1 // pred_region
      _
    $region17: #{tpu_custom_call.1} parent=1 // pred_fallthru
      _
    // Predicated region
    $region18: #{tpu_custom_call.1} parent=1 // pred_check
      _
    $region19: #{tpu_custom_call.1} parent=1 // pred_check_branch
      %55 = sbr.rel (0) target = $region21
    $region20: #{tpu_custom_call.1} parent=1 // pred_region
      _
    $region21: #{tpu_custom_call.1} parent=1 // pred_fallthru
      _
    // Predicated region
    $region22: #{tpu_custom_call.1} parent=1 // pred_check
      _
    $region23: #{tpu_custom_call.1} parent=1 // pred_check_branch
      %57 = sbr.rel (0) target = $region25
    $region24: #{tpu_custom_call.1} parent=1 // pred_region
      _
    $region25: #{tpu_custom_call.1} parent=1 // pred_fallthru
      _
    // Predicated region
    $region26: #{tpu_custom_call.1} parent=1 // pred_check
      _
    $region27: #{tpu_custom_call.1} parent=1 // pred_check_branch
      %59 = sbr.rel (0) target = $region29
    $region28: #{tpu_custom_call.1} parent=1 // pred_region
      %60 = dma.done [#allocation4], 1024
    $region29: #{tpu_custom_call.1} parent=1 // pred_fallthru
      _
    // Predicated region
    $region30: #{tpu_custom_call.1} parent=1 // pred_check
      _
    $region31: #{tpu_custom_call.1} parent=1 // pred_check_branch
      %62 = sbr.rel (0) target = $region33
    $region32: #{tpu_custom_call.1} parent=1 // pred_region
      %63 = dma.done [#allocation7], 1152
    $region33: #{tpu_custom_call.1} parent=1 // pred_fallthru
      _
    // Predicated region
    $region34: #{tpu_custom_call.1} parent=1 // pred_check
      _
    $region35: #{tpu_custom_call.1} parent=1 // pred_check_branch
      %65 = sbr.rel (0) target = $region37
    $region36: #{tpu_custom_call.1} parent=1 // pred_region
      %66 = dma.done [#allocation7], 2048
    $region37: #{tpu_custom_call.1} parent=1 // pred_fallthru
      _
    %v67 = vld [vmem:[#allocation3] sm:$0xff]
    %v68 = vld [vmem:[#allocation3 + $0x8] sm:$0xff]
    %v69 = vld [vmem:[#allocation3 + $0x10] sm:$0xff]
    %v70 = vld [vmem:[#allocation3 + $0x18] sm:$0xff]
    %v71 = vld [vmem:[#allocation3 + $0x20] sm:$0xff]
    %v72 = vld [vmem:[#allocation3 + $0x28] sm:$0xff]
    %v73 = vld [vmem:[#allocation3 + $0x30] sm:$0xff]
    %v74 = vld [vmem:[#allocation3 + $0x38] sm:$0xff]
    %v75 = vld [vmem:[#allocation6] sm:$0xff]
    %v76 = vld [vmem:[#allocation6 + $0x8] sm:$0xff]
    %v77 = vld [vmem:[#allocation6 + $0x10] sm:$0xff]
    %v78 = vld [vmem:[#allocation6 + $0x18] sm:$0xff]
    %v79 = vld [vmem:[#allocation6 + $0x20] sm:$0xff]
    %v80 = vld [vmem:[#allocation6 + $0x28] sm:$0xff]
    %v81 = vld [vmem:[#allocation6 + $0x30] sm:$0xff]
    %v82 = vld [vmem:[#allocation6 + $0x38] sm:$0xff]
    %v83 = vld [vmem:[#allocation6 + $0x40] sm:$0x3f]
    %v84 = vld [vmem:[%s3] sm:$0x1]
    %v85 = vlaneseq
    %v86 = vshrl.u32 %v85, 7
    %v87 = vsub.s32 0, %v86
    %v88 = vrot.slane %v84, %v87
    %vm89 = vcmask 572416
    %v91 = vsel %vm89, %v67, 0
    %v94 = vsel %vm89, %v68, 0
    %v97 = vsel %vm89, %v69, 0
    %v100 = vsel %vm89, %v70, 0
    %v103 = vsel %vm89, %v71, 0
    %v106 = vsel %vm89, %v72, 0
    %v109 = vsel %vm89, %v73, 0
    %v112 = vsel %vm89, %v74, 0
    %vm114 = vcmask 1045504
    %v116 = vsel %vm114, %v83, 0
    %118 = vmatprep.subr.mxu0 0.0
    %119 = vmatpush1.msra.mxu0 0.0
    %120 = vmatprep.subr.mxu0 0.0
    %121 = vmatpush1.msra.mxu0 0.0
    %122 = vmatprep.subr.mxu0 0.0
    %123 = vmatpush1.msra.mxu0 0.0
    %124 = vmatprep.subr.mxu0 0.0
    %125 = vmatpush1.msra.mxu0 0.0
    %126 = vmatprep.subr.mxu0 0.0
    %127 = vmatpush1.msra.mxu0 0.0
    %128 = vmatprep.subr.mxu0 0.0
    %129 = vmatpush1.msra.mxu0 0.0
    %130 = vmatprep.subr.mxu0 0.0
    %131 = vmatpush1.msra.mxu0 0.0
    %132 = vmatprep.subr.mxu0 0.0
    %133 = vmatpush1.msra.mxu0 %v116
    %134 = vmatprep.subr.mxu0 0.0
    %135 = vmatpush1.msra.mxu0 %v82
    %136 = vmatprep.subr.mxu0 0.0
    %137 = vmatpush1.msra.mxu0 %v81
    %138 = vmatprep.subr.mxu0 0.0
    %139 = vmatpush1.msra.mxu0 %v80
    %140 = vmatprep.subr.mxu0 0.0
    %141 = vmatpush1.msra.mxu0 %v79
    %142 = vmatprep.subr.mxu0 0.0
    %143 = vmatpush1.msra.mxu0 %v78
    %144 = vmatprep.subr.mxu0 0.0
    %145 = vmatpush1.msra.mxu0 %v77
    %146 = vmatprep.subr.mxu0 0.0
    %147 = vmatpush1.msra.mxu0 %v76
    %148 = vmatprep.subr.mxu0 0.0
    %149 = vmatpush1.msra.mxu0 %v75
    %150 = vmatprep.subr.mxu0 0.0
    %151 = vmatpush2.msra.mxu0 0.0
    %152 = vmatprep.subr.mxu0 0.0
    %153 = vmatpush2.msra.mxu0 0.0
    %154 = vmatprep.subr.mxu0 0.0
    %155 = vmatpush2.msra.mxu0 0.0
    %156 = vmatprep.subr.mxu0 0.0
    %157 = vmatpush2.msra.mxu0 0.0
    %158 = vmatprep.subr.mxu0 0.0
    %159 = vmatpush2.msra.mxu0 0.0
    %160 = vmatprep.subr.mxu0 0.0
    %161 = vmatpush2.msra.mxu0 0.0
    %162 = vmatprep.subr.mxu0 0.0
    %163 = vmatpush2.msra.mxu0 0.0
    %164 = vmatprep.subr.mxu0 0.0
    %165 = vmatpush2.msra.mxu0 0.0
    %166 = vmatprep.subr.mxu0 0.0
    %167 = vmatpush2.msra.mxu0 0.0
    %168 = vmatprep.subr.mxu0 0.0
    %169 = vmatpush2.msra.mxu0 0.0
    %170 = vmatprep.subr.mxu0 0.0
    %171 = vmatpush2.msra.mxu0 0.0
    %172 = vmatprep.subr.mxu0 0.0
    %173 = vmatpush2.msra.mxu0 0.0
    %174 = vmatprep.subr.mxu0 0.0
    %175 = vmatpush2.msra.mxu0 0.0
    %176 = vmatprep.subr.mxu0 0.0
    %177 = vmatpush2.msra.mxu0 0.0
    %178 = vmatprep.subr.mxu0 0.0
    %179 = vmatpush2.msra.mxu0 0.0
    %180 = vmatprep.subr.mxu0 0.0
    %181 = vmatpush2.msra.mxu0 0.0
    %182 = vmatprep.mubr.f32.mxu0 0.0
    %183 = vmatmul.mubr.f32.gmra.mxu0 %v91
    %v184 = vpop.f32.mrf.mxu0
    %v185 = vadd.f32 %v88, %v184
    %v186 = vpop.f32.mrf.mxu0
    %187 = vmatprep.mubr.f32.mxu0 0.0
    %188 = vmatmul.mubr.f32.gmra.mxu0 %v94
    %v189 = vpop.f32.mrf.mxu0
    %v190 = vadd.f32 %v88, %v189
    %v191 = vpop.f32.mrf.mxu0
    %192 = vmatprep.mubr.f32.mxu0 0.0
    %193 = vmatmul.mubr.f32.gmra.mxu0 %v97
    %v194 = vpop.f32.mrf.mxu0
    %v195 = vadd.f32 %v88, %v194
    %v196 = vpop.f32.mrf.mxu0
    %197 = vmatprep.mubr.f32.mxu0 0.0
    %198 = vmatmul.mubr.f32.gmra.mxu0 %v100
    %v199 = vpop.f32.mrf.mxu0
    %v200 = vadd.f32 %v88, %v199
    %v201 = vpop.f32.mrf.mxu0
    %202 = vmatprep.mubr.f32.mxu0 0.0
    %203 = vmatmul.mubr.f32.gmra.mxu0 %v103
    %v204 = vpop.f32.mrf.mxu0
    %v205 = vadd.f32 %v88, %v204
    %v206 = vpop.f32.mrf.mxu0
    %207 = vmatprep.mubr.f32.mxu0 0.0
    %208 = vmatmul.mubr.f32.gmra.mxu0 %v106
    %v209 = vpop.f32.mrf.mxu0
    %v210 = vadd.f32 %v88, %v209
    %v211 = vpop.f32.mrf.mxu0
    %212 = vmatprep.mubr.f32.mxu0 0.0
    %213 = vmatmul.mubr.f32.gmra.mxu0 %v109
    %v214 = vpop.f32.mrf.mxu0
    %v215 = vadd.f32 %v88, %v214
    %v216 = vpop.f32.mrf.mxu0
    %217 = vmatprep.mubr.f32.mxu0 0.0
    %218 = vmatmul.mubr.f32.gmra.mxu0 %v112
    %v219 = vpop.f32.mrf.mxu0
    %v220 = vadd.f32 %v88, %v219
    %v221 = vpop.f32.mrf.mxu0
    %222 = vdwg.mxu0
    %v223 = vld [vmem:[#allocation8 + $0x20] sm:$0xff]
    %v224 = vld [vmem:[#allocation8 + $0x28] sm:$0xff]
    %v225 = vld [vmem:[#allocation8 + $0x30] sm:$0xff]
    %v226 = vld [vmem:[#allocation8 + $0x38] sm:$0xff]
    %s227 = scalar_lea.vmem [#allocation8], 64
    %v228 = vld [vmem:[%s227] sm:$0xff]
    %v229 = vld [vmem:[%s227 + $0x8] sm:$0xff]
    %v230 = vld [vmem:[%s227 + $0x10] sm:$0xff]
    %v231 = vld [vmem:[%s227 + $0x18] sm:$0xff]
    %v232 = vld [vmem:[%s227 + $0x20] sm:$0xff]
    %v233 = vld [vmem:[%s227 + $0x28] sm:$0xff]
    %v234 = vld [vmem:[%s227 + $0x30] sm:$0xff]
    %v235 = vld [vmem:[%s227 + $0x38] sm:$0xff]
    %v236 = vld [vmem:[%s3 + $0x1] sm:$0x1]
    %vm237 = vcmask 261120
    %v239 = vsel %vm237, 0.0, 0
    %241 = vmatprep.subr.mxu0 0.0
    %242 = vmatpush1.msra.mxu0 0.0
    %243 = vmatprep.subr.mxu0 0.0
    %244 = vmatpush1.msra.mxu0 0.0
    %245 = vmatprep.subr.mxu0 0.0
    %246 = vmatpush1.msra.mxu0 0.0
    %247 = vmatprep.subr.mxu0 0.0
    %248 = vmatpush1.msra.mxu0 0.0
    %249 = vmatprep.subr.mxu0 0.0
    %250 = vmatpush1.msra.mxu0 0.0
    %251 = vmatprep.subr.mxu0 0.0
    %252 = vmatpush1.msra.mxu0 0.0
    %253 = vmatprep.subr.mxu0 0.0
    %254 = vmatpush1.msra.mxu0 0.0
    %255 = vmatprep.subr.mxu0 0.0
    %256 = vmatpush1.msra.mxu0 0.0
    %257 = vmatprep.subr.mxu0 0.0
    %258 = vmatpush1.msra.mxu0 0.0
    %259 = vmatprep.subr.mxu0 0.0
    %260 = vmatpush1.msra.mxu0 0.0
    %261 = vmatprep.subr.mxu0 0.0
    %262 = vmatpush1.msra.mxu0 0.0
    %263 = vmatprep.subr.mxu0 0.0
    %264 = vmatpush1.msra.mxu0 0.0
    %265 = vmatprep.subr.mxu0 0.0
    %266 = vmatpush1.msra.mxu0 %v226
    %267 = vmatprep.subr.mxu0 0.0
    %268 = vmatpush1.msra.mxu0 %v225
    %269 = vmatprep.subr.mxu0 0.0
    %270 = vmatpush1.msra.mxu0 %v224
    %271 = vmatprep.subr.mxu0 0.0
    %272 = vmatpush1.msra.mxu0 %v223
    %273 = vmatprep.subr.mxu0 0.0
    %274 = vmatpush2.msra.mxu0 0.0
    %275 = vmatprep.subr.mxu0 0.0
    %276 = vmatpush2.msra.mxu0 0.0
    %277 = vmatprep.subr.mxu0 0.0
    %278 = vmatpush2.msra.mxu0 0.0
    %279 = vmatprep.subr.mxu0 0.0
    %280 = vmatpush2.msra.mxu0 0.0
    %281 = vmatprep.subr.mxu0 0.0
    %282 = vmatpush2.msra.mxu0 0.0
    %283 = vmatprep.subr.mxu0 0.0
    %284 = vmatpush2.msra.mxu0 0.0
    %285 = vmatprep.subr.mxu0 0.0
    %286 = vmatpush2.msra.mxu0 0.0
    %287 = vmatprep.subr.mxu0 0.0
    %288 = vmatpush2.msra.mxu0 0.0
    %289 = vmatprep.subr.mxu0 0.0
    %290 = vmatpush2.msra.mxu0 0.0
    %291 = vmatprep.subr.mxu0 0.0
    %292 = vmatpush2.msra.mxu0 0.0
    %293 = vmatprep.subr.mxu0 0.0
    %294 = vmatpush2.msra.mxu0 0.0
    %295 = vmatprep.subr.mxu0 0.0
    %296 = vmatpush2.msra.mxu0 0.0
    %297 = vmatprep.subr.mxu0 0.0
    %298 = vmatpush2.msra.mxu0 0.0
    %299 = vmatprep.subr.mxu0 0.0
    %300 = vmatpush2.msra.mxu0 0.0
    %301 = vmatprep.subr.mxu0 0.0
    %302 = vmatpush2.msra.mxu0 0.0
    %303 = vmatprep.subr.mxu0 0.0
    %304 = vmatpush2.msra.mxu0 0.0
    %305 = vmatprep.mubr.f32.mxu0 0.0
    %306 = vmatmul.mubr.f32.gmra.mxu0 %v239
    %v307 = vpop.f32.mrf.mxu0
    %v308 = vadd.f32 0.0, %v307
    %v309 = vpop.f32.mrf.mxu0
    %310 = vdwg.mxu0
    %v311 = vadd.f32 %v185, %v308
    %v312 = vxor.u32 %v311, 2147483648
    %v313 = vmul.f32 %v312, 1.442695
    %v314 = vpow.pop %v313
    %v315 = vadd.f32 %v314, 1.0
    %v316 = vrcp.pop %v315
    %v317 = vmul.f32 1.0, %v316
    %v318 = vtanh.pop %v311
    %v319 = vmul.f32 %v317, 0.0
    %321 = vrot.lane.b32.xlu0 %v318, 32
    %v322 = vpop.permute.xlu0 %321
    %v324 = vmul.f32 %v317, %v322
    %326 = vrot.lane.b32.xlu0 %v324, 32
    %v327 = vpop.permute.xlu0 %326
    %v329 = vadd.f32 %v319, %v327
    %v330 = vtanh.pop %v329
    %332 = vrot.lane.b32.xlu0 %v330, 32
    %v333 = vpop.permute.xlu0 %332
    %v335 = vmul.f32 %v317, %v333
    %336 = vmatprep.subr.mxu0 0.0
    %337 = vmatpush1.msra.mxu0 0.0
    %338 = vmatprep.subr.mxu0 0.0
    %339 = vmatpush1.msra.mxu0 0.0
    %340 = vmatprep.subr.mxu0 0.0
    %341 = vmatpush1.msra.mxu0 0.0
    %342 = vmatprep.subr.mxu0 0.0
    %343 = vmatpush1.msra.mxu0 0.0
    %344 = vmatprep.subr.mxu0 0.0
    %345 = vmatpush1.msra.mxu0 0.0
    %346 = vmatprep.subr.mxu0 0.0
    %347 = vmatpush1.msra.mxu0 0.0
    %348 = vmatprep.subr.mxu0 0.0
    %349 = vmatpush1.msra.mxu0 0.0
    %350 = vmatprep.subr.mxu0 0.0
    %351 = vmatpush1.msra.mxu0 0.0
    %352 = vmatprep.subr.mxu0 0.0
    %353 = vmatpush1.msra.mxu0 0.0
    %354 = vmatprep.subr.mxu0 0.0
    %355 = vmatpush1.msra.mxu0 0.0
    %356 = vmatprep.subr.mxu0 0.0
    %357 = vmatpush1.msra.mxu0 0.0
    %358 = vmatprep.subr.mxu0 0.0
    %359 = vmatpush1.msra.mxu0 0.0
    %360 = vmatprep.subr.mxu0 0.0
    %361 = vmatpush1.msra.mxu0 %v235
    %362 = vmatprep.subr.mxu0 0.0
    %363 = vmatpush1.msra.mxu0 %v234
    %364 = vmatprep.subr.mxu0 0.0
    %365 = vmatpush1.msra.mxu0 %v233
    %366 = vmatprep.subr.mxu0 0.0
    %367 = vmatpush1.msra.mxu0 %v232
    %368 = vmatprep.subr.mxu0 0.0
    %369 = vmatpush2.msra.mxu0 0.0
    %370 = vmatprep.subr.mxu0 0.0
    %371 = vmatpush2.msra.mxu0 0.0
    %372 = vmatprep.subr.mxu0 0.0
    %373 = vmatpush2.msra.mxu0 0.0
    %374 = vmatprep.subr.mxu0 0.0
    %375 = vmatpush2.msra.mxu0 0.0
    %376 = vmatprep.subr.mxu0 0.0
    %377 = vmatpush2.msra.mxu0 0.0
    %378 = vmatprep.subr.mxu0 0.0
    %379 = vmatpush2.msra.mxu0 0.0
    %380 = vmatprep.subr.mxu0 0.0
    %381 = vmatpush2.msra.mxu0 0.0
    %382 = vmatprep.subr.mxu0 0.0
    %383 = vmatpush2.msra.mxu0 0.0
    %384 = vmatprep.subr.mxu0 0.0
    %385 = vmatpush2.msra.mxu0 0.0
    %386 = vmatprep.subr.mxu0 0.0
    %387 = vmatpush2.msra.mxu0 0.0
    %388 = vmatprep.subr.mxu0 0.0
    %389 = vmatpush2.msra.mxu0 0.0
    %390 = vmatprep.subr.mxu0 0.0
    %391 = vmatpush2.msra.mxu0 0.0
    %392 = vmatprep.subr.mxu0 0.0
    %393 = vmatpush2.msra.mxu0 0.0
    %394 = vmatprep.subr.mxu0 0.0
    %395 = vmatpush2.msra.mxu0 0.0
    %396 = vmatprep.subr.mxu0 0.0
    %397 = vmatpush2.msra.mxu0 0.0
    %398 = vmatprep.subr.mxu0 0.0
    %399 = vmatpush2.msra.mxu0 0.0
    %400 = vmatprep.mubr.f32.mxu0 0.0
    %401 = vmatmul.mubr.f32.gmra.mxu0 %v239
    %v402 = vpop.f32.mrf.mxu0
    %v403 = vadd.f32 0.0, %v402
    %v404 = vpop.f32.mrf.mxu0
    %405 = vdwg.mxu0
    %407 = vrot.lane.b32.xlu0 %v335, 64
    %v408 = vpop.permute.xlu0 %407
    %v409 = vsel %vm237, %v408, 0
    %411 = vmatprep.subr.mxu0 0.0
    %412 = vmatpush1.msra.mxu0 0.0
    %413 = vmatprep.subr.mxu0 0.0
    %414 = vmatpush1.msra.mxu0 0.0
    %415 = vmatprep.subr.mxu0 0.0
    %416 = vmatpush1.msra.mxu0 0.0
    %417 = vmatprep.subr.mxu0 0.0
    %418 = vmatpush1.msra.mxu0 0.0
    %419 = vmatprep.subr.mxu0 0.0
    %420 = vmatpush1.msra.mxu0 0.0
    %421 = vmatprep.subr.mxu0 0.0
    %422 = vmatpush1.msra.mxu0 0.0
    %423 = vmatprep.subr.mxu0 0.0
    %424 = vmatpush1.msra.mxu0 0.0
    %425 = vmatprep.subr.mxu0 0.0
    %426 = vmatpush1.msra.mxu0 0.0
    %427 = vmatprep.subr.mxu0 0.0
    %428 = vmatpush1.msra.mxu0 0.0
    %429 = vmatprep.subr.mxu0 0.0
    %430 = vmatpush1.msra.mxu0 0.0
    %431 = vmatprep.subr.mxu0 0.0
    %432 = vmatpush1.msra.mxu0 0.0
    %433 = vmatprep.subr.mxu0 0.0
    %434 = vmatpush1.msra.mxu0 0.0
    %435 = vmatprep.subr.mxu0 0.0
    %436 = vmatpush1.msra.mxu0 %v231
    %437 = vmatprep.subr.mxu0 0.0
    %438 = vmatpush1.msra.mxu0 %v230
    %439 = vmatprep.subr.mxu0 0.0
    %440 = vmatpush1.msra.mxu0 %v229
    %441 = vmatprep.subr.mxu0 0.0
    %442 = vmatpush1.msra.mxu0 %v228
    %443 = vmatprep.subr.mxu0 0.0
    %444 = vmatpush2.msra.mxu0 0.0
    %445 = vmatprep.subr.mxu0 0.0
    %446 = vmatpush2.msra.mxu0 0.0
    %447 = vmatprep.subr.mxu0 0.0
    %448 = vmatpush2.msra.mxu0 0.0
    %449 = vmatprep.subr.mxu0 0.0
    %450 = vmatpush2.msra.mxu0 0.0
    %451 = vmatprep.subr.mxu0 0.0
    %452 = vmatpush2.msra.mxu0 0.0
    %453 = vmatprep.subr.mxu0 0.0
    %454 = vmatpush2.msra.mxu0 0.0
    %455 = vmatprep.subr.mxu0 0.0
    %456 = vmatpush2.msra.mxu0 0.0
    %457 = vmatprep.subr.mxu0 0.0
    %458 = vmatpush2.msra.mxu0 0.0
    %459 = vmatprep.subr.mxu0 0.0
    %460 = vmatpush2.msra.mxu0 0.0
    %461 = vmatprep.subr.mxu0 0.0
    %462 = vmatpush2.msra.mxu0 0.0
    %463 = vmatprep.subr.mxu0 0.0
    %464 = vmatpush2.msra.mxu0 0.0
    %465 = vmatprep.subr.mxu0 0.0
    %466 = vmatpush2.msra.mxu0 0.0
    %467 = vmatprep.subr.mxu0 0.0
    %468 = vmatpush2.msra.mxu0 0.0
    %469 = vmatprep.subr.mxu0 0.0
    %470 = vmatpush2.msra.mxu0 0.0
    %471 = vmatprep.subr.mxu0 0.0
    %472 = vmatpush2.msra.mxu0 0.0
    %473 = vmatprep.subr.mxu0 0.0
    %474 = vmatpush2.msra.mxu0 0.0
    %475 = vmatprep.mubr.f32.mxu0 0.0
    %476 = vmatmul.mubr.f32.gmra.mxu0 %v409
    %v477 = vpop.f32.mrf.mxu0
    %v478 = vadd.f32 %v403, %v477
    %v479 = vpop.f32.mrf.mxu0
    %480 = vdwg.mxu0
    %v481 = vlaneseq
    %v482 = vshrl.u32 %v481, 7
    %v483 = vsub.s32 0, %v482
    %v484 = vrot.slane %v236, %v483
    %v485 = vadd.f32 %v478, %v484
    %v486 = vxor.u32 %v485, 2147483648
    %v487 = vmul.f32 %v486, 1.442695
    %v488 = vpow.pop %v487
    %v489 = vadd.f32 %v488, 1.0
    %v490 = vrcp.pop %v489
    %v491 = vmul.f32 1.0, %v490
    %v492 = vtanh.pop %v485
    %v493 = vmul.f32 %v491, 0.0
    %495 = vrot.lane.b32.xlu0 %v492, 32
    %v496 = vpop.permute.xlu0 %495
    %v498 = vmul.f32 %v491, %v496
    %500 = vrot.lane.b32.xlu0 %v498, 32
    %v501 = vpop.permute.xlu0 %500
    %v503 = vadd.f32 %v493, %v501
    %v504 = vtanh.pop %v503
    %506 = vrot.lane.b32.xlu0 %v504, 32
    %v507 = vpop.permute.xlu0 %506
    %v509 = vmul.f32 %v491, %v507
    %511 = vrot.lane.b32.xlu0 %v509, 64
    %v512 = vpop.permute.xlu0 %511
    %514 = vst.msk [vmem:[#allocation2] sm:$0xff] %vm237, %v512
    %515 = vmatprep.subr.mxu0 0.0
    %516 = vmatpush1.msra.mxu0 0.0
    %517 = vmatprep.subr.mxu0 0.0
    %518 = vmatpush1.msra.mxu0 0.0
    %519 = vmatprep.subr.mxu0 0.0
    %520 = vmatpush1.msra.mxu0 0.0
    %521 = vmatprep.subr.mxu0 0.0
    %522 = vmatpush1.msra.mxu0 0.0
    %523 = vmatprep.subr.mxu0 0.0
    %524 = vmatpush1.msra.mxu0 0.0
    %525 = vmatprep.subr.mxu0 0.0
    %526 = vmatpush1.msra.mxu0 0.0
    %527 = vmatprep.subr.mxu0 0.0
    %528 = vmatpush1.msra.mxu0 0.0
    %529 = vmatprep.subr.mxu0 0.0
    %530 = vmatpush1.msra.mxu0 0.0
    %531 = vmatprep.subr.mxu0 0.0
    %532 = vmatpush1.msra.mxu0 0.0
    %533 = vmatprep.subr.mxu0 0.0
    %534 = vmatpush1.msra.mxu0 0.0
    %535 = vmatprep.subr.mxu0 0.0
    %536 = vmatpush1.msra.mxu0 0.0
    %537 = vmatprep.subr.mxu0 0.0
    %538 = vmatpush1.msra.mxu0 0.0
    %539 = vmatprep.subr.mxu0 0.0
    %540 = vmatpush1.msra.mxu0 %v226
    %541 = vmatprep.subr.mxu0 0.0
    %542 = vmatpush1.msra.mxu0 %v225
    %543 = vmatprep.subr.mxu0 0.0
    %544 = vmatpush1.msra.mxu0 %v224
    %545 = vmatprep.subr.mxu0 0.0
    %546 = vmatpush1.msra.mxu0 %v223
    %547 = vmatprep.subr.mxu0 0.0
    %548 = vmatpush2.msra.mxu0 0.0
    %549 = vmatprep.subr.mxu0 0.0
    %550 = vmatpush2.msra.mxu0 0.0
    %551 = vmatprep.subr.mxu0 0.0
    %552 = vmatpush2.msra.mxu0 0.0
    %553 = vmatprep.subr.mxu0 0.0
    %554 = vmatpush2.msra.mxu0 0.0
    %555 = vmatprep.subr.mxu0 0.0
    %556 = vmatpush2.msra.mxu0 0.0
    %557 = vmatprep.subr.mxu0 0.0
    %558 = vmatpush2.msra.mxu0 0.0
    %559 = vmatprep.subr.mxu0 0.0
    %560 = vmatpush2.msra.mxu0 0.0
    %561 = vmatprep.subr.mxu0 0.0
    %562 = vmatpush2.msra.mxu0 0.0
    %563 = vmatprep.subr.mxu0 0.0
    %564 = vmatpush2.msra.mxu0 0.0
    %565 = vmatprep.subr.mxu0 0.0
    %566 = vmatpush2.msra.mxu0 0.0
    %567 = vmatprep.subr.mxu0 0.0
    %568 = vmatpush2.msra.mxu0 0.0
    %569 = vmatprep.subr.mxu0 0.0
    %570 = vmatpush2.msra.mxu0 0.0
    %571 = vmatprep.subr.mxu0 0.0
    %572 = vmatpush2.msra.mxu0 0.0
    %573 = vmatprep.subr.mxu0 0.0
    %574 = vmatpush2.msra.mxu0 0.0
    %575 = vmatprep.subr.mxu0 0.0
    %576 = vmatpush2.msra.mxu0 0.0
    %577 = vmatprep.subr.mxu0 0.0
    %578 = vmatpush2.msra.mxu0 0.0
    %579 = vmatprep.mubr.f32.mxu0 0.0
    %580 = vmatmul.mubr.f32.gmra.mxu0 %v409
    %v581 = vpop.f32.mrf.mxu0
    %v582 = vadd.f32 0.0, %v581
    %v583 = vpop.f32.mrf.mxu0
    %584 = vdwg.mxu0
    %v585 = vadd.f32 %v190, %v582
    %v586 = vxor.u32 %v585, 2147483648
    %v587 = vmul.f32 %v586, 1.442695
    %v588 = vpow.pop %v587
    %v589 = vadd.f32 %v588, 1.0
    %v590 = vrcp.pop %v589
    %v591 = vmul.f32 1.0, %v590
    %v592 = vtanh.pop %v585
    %v593 = vmul.f32 %v591, %v329
    %595 = vrot.lane.b32.xlu0 %v592, 32
    %v596 = vpop.permute.xlu0 %595
    %v598 = vmul.f32 %v591, %v596
    %600 = vrot.lane.b32.xlu0 %v598, 32
    %v601 = vpop.permute.xlu0 %600
    %v603 = vadd.f32 %v593, %v601
    %v604 = vtanh.pop %v603
    %606 = vrot.lane.b32.xlu0 %v604, 32
    %v607 = vpop.permute.xlu0 %606
    %v609 = vmul.f32 %v591, %v607
    %v610 = vsel %vm237, %v512, 0
    %612 = vmatprep.subr.mxu0 0.0
    %613 = vmatpush1.msra.mxu0 0.0
    %614 = vmatprep.subr.mxu0 0.0
    %615 = vmatpush1.msra.mxu0 0.0
    %616 = vmatprep.subr.mxu0 0.0
    %617 = vmatpush1.msra.mxu0 0.0
    %618 = vmatprep.subr.mxu0 0.0
    %619 = vmatpush1.msra.mxu0 0.0
    %620 = vmatprep.subr.mxu0 0.0
    %621 = vmatpush1.msra.mxu0 0.0
    %622 = vmatprep.subr.mxu0 0.0
    %623 = vmatpush1.msra.mxu0 0.0
    %624 = vmatprep.subr.mxu0 0.0
    %625 = vmatpush1.msra.mxu0 0.0
    %626 = vmatprep.subr.mxu0 0.0
    %627 = vmatpush1.msra.mxu0 0.0
    %628 = vmatprep.subr.mxu0 0.0
    %629 = vmatpush1.msra.mxu0 0.0
    %630 = vmatprep.subr.mxu0 0.0
    %631 = vmatpush1.msra.mxu0 0.0
    %632 = vmatprep.subr.mxu0 0.0
    %633 = vmatpush1.msra.mxu0 0.0
    %634 = vmatprep.subr.mxu0 0.0
    %635 = vmatpush1.msra.mxu0 0.0
    %636 = vmatprep.subr.mxu0 0.0
    %637 = vmatpush1.msra.mxu0 %v235
    %638 = vmatprep.subr.mxu0 0.0
    %639 = vmatpush1.msra.mxu0 %v234
    %640 = vmatprep.subr.mxu0 0.0
    %641 = vmatpush1.msra.mxu0 %v233
    %642 = vmatprep.subr.mxu0 0.0
    %643 = vmatpush1.msra.mxu0 %v232
    %644 = vmatprep.subr.mxu0 0.0
    %645 = vmatpush2.msra.mxu0 0.0
    %646 = vmatprep.subr.mxu0 0.0
    %647 = vmatpush2.msra.mxu0 0.0
    %648 = vmatprep.subr.mxu0 0.0
    %649 = vmatpush2.msra.mxu0 0.0
    %650 = vmatprep.subr.mxu0 0.0
    %651 = vmatpush2.msra.mxu0 0.0
    %652 = vmatprep.subr.mxu0 0.0
    %653 = vmatpush2.msra.mxu0 0.0
    %654 = vmatprep.subr.mxu0 0.0
    %655 = vmatpush2.msra.mxu0 0.0
    %656 = vmatprep.subr.mxu0 0.0
    %657 = vmatpush2.msra.mxu0 0.0
    %658 = vmatprep.subr.mxu0 0.0
    %659 = vmatpush2.msra.mxu0 0.0
    %660 = vmatprep.subr.mxu0 0.0
    %661 = vmatpush2.msra.mxu0 0.0
    %662 = vmatprep.subr.mxu0 0.0
    %663 = vmatpush2.msra.mxu0 0.0
    %664 = vmatprep.subr.mxu0 0.0
    %665 = vmatpush2.msra.mxu0 0.0
    %666 = vmatprep.subr.mxu0 0.0
    %667 = vmatpush2.msra.mxu0 0.0
    %668 = vmatprep.subr.mxu0 0.0
    %669 = vmatpush2.msra.mxu0 0.0
    %670 = vmatprep.subr.mxu0 0.0
    %671 = vmatpush2.msra.mxu0 0.0
    %672 = vmatprep.subr.mxu0 0.0
    %673 = vmatpush2.msra.mxu0 0.0
    %674 = vmatprep.subr.mxu0 0.0
    %675 = vmatpush2.msra.mxu0 0.0
    %676 = vmatprep.mubr.f32.mxu0 0.0
    %677 = vmatmul.mubr.f32.gmra.mxu0 %v610
    %v678 = vpop.f32.mrf.mxu0
    %v679 = vadd.f32 0.0, %v678
    %v680 = vpop.f32.mrf.mxu0
    %681 = vdwg.mxu0
    %683 = vrot.lane.b32.xlu0 %v609, 64
    %v684 = vpop.permute.xlu0 %683
    %v685 = vsel %vm237, %v684, 0
    %687 = vmatprep.subr.mxu0 0.0
    %688 = vmatpush1.msra.mxu0 0.0
    %689 = vmatprep.subr.mxu0 0.0
    %690 = vmatpush1.msra.mxu0 0.0
    %691 = vmatprep.subr.mxu0 0.0
    %692 = vmatpush1.msra.mxu0 0.0
    %693 = vmatprep.subr.mxu0 0.0
    %694 = vmatpush1.msra.mxu0 0.0
    %695 = vmatprep.subr.mxu0 0.0
    %696 = vmatpush1.msra.mxu0 0.0
    %697 = vmatprep.subr.mxu0 0.0
    %698 = vmatpush1.msra.mxu0 0.0
    %699 = vmatprep.subr.mxu0 0.0
    %700 = vmatpush1.msra.mxu0 0.0
    %701 = vmatprep.subr.mxu0 0.0
    %702 = vmatpush1.msra.mxu0 0.0
    %703 = vmatprep.subr.mxu0 0.0
    %704 = vmatpush1.msra.mxu0 0.0
    %705 = vmatprep.subr.mxu0 0.0
    %706 = vmatpush1.msra.mxu0 0.0
    %707 = vmatprep.subr.mxu0 0.0
    %708 = vmatpush1.msra.mxu0 0.0
    %709 = vmatprep.subr.mxu0 0.0
    %710 = vmatpush1.msra.mxu0 0.0
    %711 = vmatprep.subr.mxu0 0.0
    %712 = vmatpush1.msra.mxu0 %v231
    %713 = vmatprep.subr.mxu0 0.0
    %714 = vmatpush1.msra.mxu0 %v230
    %715 = vmatprep.subr.mxu0 0.0
    %716 = vmatpush1.msra.mxu0 %v229
    %717 = vmatprep.subr.mxu0 0.0
    %718 = vmatpush1.msra.mxu0 %v228
    %719 = vmatprep.subr.mxu0 0.0
    %720 = vmatpush2.msra.mxu0 0.0
    %721 = vmatprep.subr.mxu0 0.0
    %722 = vmatpush2.msra.mxu0 0.0
    %723 = vmatprep.subr.mxu0 0.0
    %724 = vmatpush2.msra.mxu0 0.0
    %725 = vmatprep.subr.mxu0 0.0
    %726 = vmatpush2.msra.mxu0 0.0
    %727 = vmatprep.subr.mxu0 0.0
    %728 = vmatpush2.msra.mxu0 0.0
    %729 = vmatprep.subr.mxu0 0.0
    %730 = vmatpush2.msra.mxu0 0.0
    %731 = vmatprep.subr.mxu0 0.0
    %732 = vmatpush2.msra.mxu0 0.0
    %733 = vmatprep.subr.mxu0 0.0
    %734 = vmatpush2.msra.mxu0 0.0
    %735 = vmatprep.subr.mxu0 0.0
    %736 = vmatpush2.msra.mxu0 0.0
    %737 = vmatprep.subr.mxu0 0.0
    %738 = vmatpush2.msra.mxu0 0.0
    %739 = vmatprep.subr.mxu0 0.0
    %740 = vmatpush2.msra.mxu0 0.0
    %741 = vmatprep.subr.mxu0 0.0
    %742 = vmatpush2.msra.mxu0 0.0
    %743 = vmatprep.subr.mxu0 0.0
    %744 = vmatpush2.msra.mxu0 0.0
    %745 = vmatprep.subr.mxu0 0.0
    %746 = vmatpush2.msra.mxu0 0.0
    %747 = vmatprep.subr.mxu0 0.0
    %748 = vmatpush2.msra.mxu0 0.0
    %749 = vmatprep.subr.mxu0 0.0
    %750 = vmatpush2.msra.mxu0 0.0
    %751 = vmatprep.mubr.f32.mxu0 0.0
    %752 = vmatmul.mubr.f32.gmra.mxu0 %v685
    %v753 = vpop.f32.mrf.mxu0
    %v754 = vadd.f32 %v679, %v753
    %v755 = vpop.f32.mrf.mxu0
    %756 = vdwg.mxu0
    %v757 = vadd.f32 %v754, %v484
    %v758 = vxor.u32 %v757, 2147483648
    %v759 = vmul.f32 %v758, 1.442695
    %v760 = vpow.pop %v759
    %v761 = vadd.f32 %v760, 1.0
    %v762 = vrcp.pop %v761
    %v763 = vmul.f32 1.0, %v762
    %v764 = vtanh.pop %v757
    %v765 = vmul.f32 %v763, %v503
    %767 = vrot.lane.b32.xlu0 %v764, 32
    %v768 = vpop.permute.xlu0 %767
    %v770 = vmul.f32 %v763, %v768
    %772 = vrot.lane.b32.xlu0 %v770, 32
    %v773 = vpop.permute.xlu0 %772
    %v775 = vadd.f32 %v765, %v773
    %v776 = vtanh.pop %v775
    %778 = vrot.lane.b32.xlu0 %v776, 32
    %v779 = vpop.permute.xlu0 %778
    %v781 = vmul.f32 %v763, %v779
    %783 = vrot.lane.b32.xlu0 %v781, 64
    %v784 = vpop.permute.xlu0 %783
    %786 = vst.msk [vmem:[#allocation2 + $0x8] sm:$0xff] %vm237, %v784
    %787 = vmatprep.subr.mxu0 0.0
    %788 = vmatpush1.msra.mxu0 0.0
    %789 = vmatprep.subr.mxu0 0.0
    %790 = vmatpush1.msra.mxu0 0.0
    %791 = vmatprep.subr.mxu0 0.0
    %792 = vmatpush1.msra.mxu0 0.0
    %793 = vmatprep.subr.mxu0 0.0
    %794 = vmatpush1.msra.mxu0 0.0
    %795 = vmatprep.subr.mxu0 0.0
    %796 = vmatpush1.msra.mxu0 0.0
    %797 = vmatprep.subr.mxu0 0.0
    %798 = vmatpush1.msra.mxu0 0.0
    %799 = vmatprep.subr.mxu0 0.0
    %800 = vmatpush1.msra.mxu0 0.0
    %801 = vmatprep.subr.mxu0 0.0
    %802 = vmatpush1.msra.mxu0 0.0
    %803 = vmatprep.subr.mxu0 0.0
    %804 = vmatpush1.msra.mxu0 0.0
    %805 = vmatprep.subr.mxu0 0.0
    %806 = vmatpush1.msra.mxu0 0.0
    %807 = vmatprep.subr.mxu0 0.0
    %808 = vmatpush1.msra.mxu0 0.0
    %809 = vmatprep.subr.mxu0 0.0
    %810 = vmatpush1.msra.mxu0 0.0
    %811 = vmatprep.subr.mxu0 0.0
    %812 = vmatpush1.msra.mxu0 %v226
    %813 = vmatprep.subr.mxu0 0.0
    %814 = vmatpush1.msra.mxu0 %v225
    %815 = vmatprep.subr.mxu0 0.0
    %816 = vmatpush1.msra.mxu0 %v224
    %817 = vmatprep.subr.mxu0 0.0
    %818 = vmatpush1.msra.mxu0 %v223
    %819 = vmatprep.subr.mxu0 0.0
    %820 = vmatpush2.msra.mxu0 0.0
    %821 = vmatprep.subr.mxu0 0.0
    %822 = vmatpush2.msra.mxu0 0.0
    %823 = vmatprep.subr.mxu0 0.0
    %824 = vmatpush2.msra.mxu0 0.0
    %825 = vmatprep.subr.mxu0 0.0
    %826 = vmatpush2.msra.mxu0 0.0
    %827 = vmatprep.subr.mxu0 0.0
    %828 = vmatpush2.msra.mxu0 0.0
    %829 = vmatprep.subr.mxu0 0.0
    %830 = vmatpush2.msra.mxu0 0.0
    %831 = vmatprep.subr.mxu0 0.0
    %832 = vmatpush2.msra.mxu0 0.0
    %833 = vmatprep.subr.mxu0 0.0
    %834 = vmatpush2.msra.mxu0 0.0
    %835 = vmatprep.subr.mxu0 0.0
    %836 = vmatpush2.msra.mxu0 0.0
    %837 = vmatprep.subr.mxu0 0.0
    %838 = vmatpush2.msra.mxu0 0.0
    %839 = vmatprep.subr.mxu0 0.0
    %840 = vmatpush2.msra.mxu0 0.0
    %841 = vmatprep.subr.mxu0 0.0
    %842 = vmatpush2.msra.mxu0 0.0
    %843 = vmatprep.subr.mxu0 0.0
    %844 = vmatpush2.msra.mxu0 0.0
    %845 = vmatprep.subr.mxu0 0.0
    %846 = vmatpush2.msra.mxu0 0.0
    %847 = vmatprep.subr.mxu0 0.0
    %848 = vmatpush2.msra.mxu0 0.0
    %849 = vmatprep.subr.mxu0 0.0
    %850 = vmatpush2.msra.mxu0 0.0
    %851 = vmatprep.mubr.f32.mxu0 0.0
    %852 = vmatmul.mubr.f32.gmra.mxu0 %v685
    %v853 = vpop.f32.mrf.mxu0
    %v854 = vadd.f32 0.0, %v853
    %v855 = vpop.f32.mrf.mxu0
    %856 = vdwg.mxu0
    %v857 = vadd.f32 %v195, %v854
    %v858 = vxor.u32 %v857, 2147483648
    %v859 = vmul.f32 %v858, 1.442695
    %v860 = vpow.pop %v859
    %v861 = vadd.f32 %v860, 1.0
    %v862 = vrcp.pop %v861
    %v863 = vmul.f32 1.0, %v862
    %v864 = vtanh.pop %v857
    %v865 = vmul.f32 %v863, %v603
    %867 = vrot.lane.b32.xlu0 %v864, 32
    %v868 = vpop.permute.xlu0 %867
    %v870 = vmul.f32 %v863, %v868
    %872 = vrot.lane.b32.xlu0 %v870, 32
    %v873 = vpop.permute.xlu0 %872
    %v875 = vadd.f32 %v865, %v873
    %v876 = vtanh.pop %v875
    %878 = vrot.lane.b32.xlu0 %v876, 32
    %v879 = vpop.permute.xlu0 %878
    %v881 = vmul.f32 %v863, %v879
    %v882 = vsel %vm237, %v784, 0
    %884 = vmatprep.subr.mxu0 0.0
    %885 = vmatpush1.msra.mxu0 0.0
    %886 = vmatprep.subr.mxu0 0.0
    %887 = vmatpush1.msra.mxu0 0.0
    %888 = vmatprep.subr.mxu0 0.0
    %889 = vmatpush1.msra.mxu0 0.0
    %890 = vmatprep.subr.mxu0 0.0
    %891 = vmatpush1.msra.mxu0 0.0
    %892 = vmatprep.subr.mxu0 0.0
    %893 = vmatpush1.msra.mxu0 0.0
    %894 = vmatprep.subr.mxu0 0.0
    %895 = vmatpush1.msra.mxu0 0.0
    %896 = vmatprep.subr.mxu0 0.0
    %897 = vmatpush1.msra.mxu0 0.0
    %898 = vmatprep.subr.mxu0 0.0
    %899 = vmatpush1.msra.mxu0 0.0
    %900 = vmatprep.subr.mxu0 0.0
    %901 = vmatpush1.msra.mxu0 0.0
    %902 = vmatprep.subr.mxu0 0.0
    %903 = vmatpush1.msra.mxu0 0.0
    %904 = vmatprep.subr.mxu0 0.0
    %905 = vmatpush1.msra.mxu0 0.0
    %906 = vmatprep.subr.mxu0 0.0
    %907 = vmatpush1.msra.mxu0 0.0
    %908 = vmatprep.subr.mxu0 0.0
    %909 = vmatpush1.msra.mxu0 %v235
    %910 = vmatprep.subr.mxu0 0.0
    %911 = vmatpush1.msra.mxu0 %v234
    %912 = vmatprep.subr.mxu0 0.0
    %913 = vmatpush1.msra.mxu0 %v233
    %914 = vmatprep.subr.mxu0 0.0
    %915 = vmatpush1.msra.mxu0 %v232
    %916 = vmatprep.subr.mxu0 0.0
    %917 = vmatpush2.msra.mxu0 0.0
    %918 = vmatprep.subr.mxu0 0.0
    %919 = vmatpush2.msra.mxu0 0.0
    %920 = vmatprep.subr.mxu0 0.0
    %921 = vmatpush2.msra.mxu0 0.0
    %922 = vmatprep.subr.mxu0 0.0
    %923 = vmatpush2.msra.mxu0 0.0
    %924 = vmatprep.subr.mxu0 0.0
    %925 = vmatpush2.msra.mxu0 0.0
    %926 = vmatprep.subr.mxu0 0.0
    %927 = vmatpush2.msra.mxu0 0.0
    %928 = vmatprep.subr.mxu0 0.0
    %929 = vmatpush2.msra.mxu0 0.0
    %930 = vmatprep.subr.mxu0 0.0
    %931 = vmatpush2.msra.mxu0 0.0
    %932 = vmatprep.subr.mxu0 0.0
    %933 = vmatpush2.msra.mxu0 0.0
    %934 = vmatprep.subr.mxu0 0.0
    %935 = vmatpush2.msra.mxu0 0.0
    %936 = vmatprep.subr.mxu0 0.0
    %937 = vmatpush2.msra.mxu0 0.0
    %938 = vmatprep.subr.mxu0 0.0
    %939 = vmatpush2.msra.mxu0 0.0
    %940 = vmatprep.subr.mxu0 0.0
    %941 = vmatpush2.msra.mxu0 0.0
    %942 = vmatprep.subr.mxu0 0.0
    %943 = vmatpush2.msra.mxu0 0.0
    %944 = vmatprep.subr.mxu0 0.0
    %945 = vmatpush2.msra.mxu0 0.0
    %946 = vmatprep.subr.mxu0 0.0
    %947 = vmatpush2.msra.mxu0 0.0
    %948 = vmatprep.mubr.f32.mxu0 0.0
    %949 = vmatmul.mubr.f32.gmra.mxu0 %v882
    %v950 = vpop.f32.mrf.mxu0
    %v951 = vadd.f32 0.0, %v950
    %v952 = vpop.f32.mrf.mxu0
    %953 = vdwg.mxu0
    %955 = vrot.lane.b32.xlu0 %v881, 64
    %v956 = vpop.permute.xlu0 %955
    %v957 = vsel %vm237, %v956, 0
    %959 = vmatprep.subr.mxu0 0.0
    %960 = vmatpush1.msra.mxu0 0.0
    %961 = vmatprep.subr.mxu0 0.0
    %962 = vmatpush1.msra.mxu0 0.0
    %963 = vmatprep.subr.mxu0 0.0
    %964 = vmatpush1.msra.mxu0 0.0
    %965 = vmatprep.subr.mxu0 0.0
    %966 = vmatpush1.msra.mxu0 0.0
    %967 = vmatprep.subr.mxu0 0.0
    %968 = vmatpush1.msra.mxu0 0.0
    %969 = vmatprep.subr.mxu0 0.0
    %970 = vmatpush1.msra.mxu0 0.0
    %971 = vmatprep.subr.mxu0 0.0
    %972 = vmatpush1.msra.mxu0 0.0
    %973 = vmatprep.subr.mxu0 0.0
    %974 = vmatpush1.msra.mxu0 0.0
    %975 = vmatprep.subr.mxu0 0.0
    %976 = vmatpush1.msra.mxu0 0.0
    %977 = vmatprep.subr.mxu0 0.0
    %978 = vmatpush1.msra.mxu0 0.0
    %979 = vmatprep.subr.mxu0 0.0
    %980 = vmatpush1.msra.mxu0 0.0
    %981 = vmatprep.subr.mxu0 0.0
    %982 = vmatpush1.msra.mxu0 0.0
    %983 = vmatprep.subr.mxu0 0.0
    %984 = vmatpush1.msra.mxu0 %v231
    %985 = vmatprep.subr.mxu0 0.0
    %986 = vmatpush1.msra.mxu0 %v230
    %987 = vmatprep.subr.mxu0 0.0
    %988 = vmatpush1.msra.mxu0 %v229
    %989 = vmatprep.subr.mxu0 0.0
    %990 = vmatpush1.msra.mxu0 %v228
    %991 = vmatprep.subr.mxu0 0.0
    %992 = vmatpush2.msra.mxu0 0.0
    %993 = vmatprep.subr.mxu0 0.0
    %994 = vmatpush2.msra.mxu0 0.0
    %995 = vmatprep.subr.mxu0 0.0
    %996 = vmatpush2.msra.mxu0 0.0
    %997 = vmatprep.subr.mxu0 0.0
    %998 = vmatpush2.msra.mxu0 0.0
    %999 = vmatprep.subr.mxu0 0.0
    %1000 = vmatpush2.msra.mxu0 0.0
    %1001 = vmatprep.subr.mxu0 0.0
    %1002 = vmatpush2.msra.mxu0 0.0
    %1003 = vmatprep.subr.mxu0 0.0
    %1004 = vmatpush2.msra.mxu0 0.0
    %1005 = vmatprep.subr.mxu0 0.0
    %1006 = vmatpush2.msra.mxu0 0.0
    %1007 = vmatprep.subr.mxu0 0.0
    %1008 = vmatpush2.msra.mxu0 0.0
    %1009 = vmatprep.subr.mxu0 0.0
    %1010 = vmatpush2.msra.mxu0 0.0
    %1011 = vmatprep.subr.mxu0 0.0
    %1012 = vmatpush2.msra.mxu0 0.0
    %1013 = vmatprep.subr.mxu0 0.0
    %1014 = vmatpush2.msra.mxu0 0.0
    %1015 = vmatprep.subr.mxu0 0.0
    %1016 = vmatpush2.msra.mxu0 0.0
    %1017 = vmatprep.subr.mxu0 0.0
    %1018 = vmatpush2.msra.mxu0 0.0
    %1019 = vmatprep.subr.mxu0 0.0
    %1020 = vmatpush2.msra.mxu0 0.0
    %1021 = vmatprep.subr.mxu0 0.0
    %1022 = vmatpush2.msra.mxu0 0.0
    %1023 = vmatprep.mubr.f32.mxu0 0.0
    %1024 = vmatmul.mubr.f32.gmra.mxu0 %v957
    %v1025 = vpop.f32.mrf.mxu0
    %v1026 = vadd.f32 %v951, %v1025
    %v1027 = vpop.f32.mrf.mxu0
    %1028 = vdwg.mxu0
    %v1029 = vadd.f32 %v1026, %v484
    %v1030 = vxor.u32 %v1029, 2147483648
    %v1031 = vmul.f32 %v1030, 1.442695
    %v1032 = vpow.pop %v1031
    %v1033 = vadd.f32 %v1032, 1.0
    %v1034 = vrcp.pop %v1033
    %v1035 = vmul.f32 1.0, %v1034
    %v1036 = vtanh.pop %v1029
    %v1037 = vmul.f32 %v1035, %v775
    %1039 = vrot.lane.b32.xlu0 %v1036, 32
    %v1040 = vpop.permute.xlu0 %1039
    %v1042 = vmul.f32 %v1035, %v1040
    %1044 = vrot.lane.b32.xlu0 %v1042, 32
    %v1045 = vpop.permute.xlu0 %1044
    %v1047 = vadd.f32 %v1037, %v1045
    %v1048 = vtanh.pop %v1047
    %1050 = vrot.lane.b32.xlu0 %v1048, 32
    %v1051 = vpop.permute.xlu0 %1050
    %v1053 = vmul.f32 %v1035, %v1051
    %1055 = vrot.lane.b32.xlu0 %v1053, 64
    %v1056 = vpop.permute.xlu0 %1055
    %1058 = vst.msk [vmem:[#allocation2 + $0x10] sm:$0xff] %vm237, %v1056
    %1059 = vmatprep.subr.mxu0 0.0
    %1060 = vmatpush1.msra.mxu0 0.0
    %1061 = vmatprep.subr.mxu0 0.0
    %1062 = vmatpush1.msra.mxu0 0.0
    %1063 = vmatprep.subr.mxu0 0.0
    %1064 = vmatpush1.msra.mxu0 0.0
    %1065 = vmatprep.subr.mxu0 0.0
    %1066 = vmatpush1.msra.mxu0 0.0
    %1067 = vmatprep.subr.mxu0 0.0
    %1068 = vmatpush1.msra.mxu0 0.0
    %1069 = vmatprep.subr.mxu0 0.0
    %1070 = vmatpush1.msra.mxu0 0.0
    %1071 = vmatprep.subr.mxu0 0.0
    %1072 = vmatpush1.msra.mxu0 0.0
    %1073 = vmatprep.subr.mxu0 0.0
    %1074 = vmatpush1.msra.mxu0 0.0
    %1075 = vmatprep.subr.mxu0 0.0
    %1076 = vmatpush1.msra.mxu0 0.0
    %1077 = vmatprep.subr.mxu0 0.0
    %1078 = vmatpush1.msra.mxu0 0.0
    %1079 = vmatprep.subr.mxu0 0.0
    %1080 = vmatpush1.msra.mxu0 0.0
    %1081 = vmatprep.subr.mxu0 0.0
    %1082 = vmatpush1.msra.mxu0 0.0
    %1083 = vmatprep.subr.mxu0 0.0
    %1084 = vmatpush1.msra.mxu0 %v226
    %1085 = vmatprep.subr.mxu0 0.0
    %1086 = vmatpush1.msra.mxu0 %v225
    %1087 = vmatprep.subr.mxu0 0.0
    %1088 = vmatpush1.msra.mxu0 %v224
    %1089 = vmatprep.subr.mxu0 0.0
    %1090 = vmatpush1.msra.mxu0 %v223
    %1091 = vmatprep.subr.mxu0 0.0
    %1092 = vmatpush2.msra.mxu0 0.0
    %1093 = vmatprep.subr.mxu0 0.0
    %1094 = vmatpush2.msra.mxu0 0.0
    %1095 = vmatprep.subr.mxu0 0.0
    %1096 = vmatpush2.msra.mxu0 0.0
    %1097 = vmatprep.subr.mxu0 0.0
    %1098 = vmatpush2.msra.mxu0 0.0
    %1099 = vmatprep.subr.mxu0 0.0
    %1100 = vmatpush2.msra.mxu0 0.0
    %1101 = vmatprep.subr.mxu0 0.0
    %1102 = vmatpush2.msra.mxu0 0.0
    %1103 = vmatprep.subr.mxu0 0.0
    %1104 = vmatpush2.msra.mxu0 0.0
    %1105 = vmatprep.subr.mxu0 0.0
    %1106 = vmatpush2.msra.mxu0 0.0
    %1107 = vmatprep.subr.mxu0 0.0
    %1108 = vmatpush2.msra.mxu0 0.0
    %1109 = vmatprep.subr.mxu0 0.0
    %1110 = vmatpush2.msra.mxu0 0.0
    %1111 = vmatprep.subr.mxu0 0.0
    %1112 = vmatpush2.msra.mxu0 0.0
    %1113 = vmatprep.subr.mxu0 0.0
    %1114 = vmatpush2.msra.mxu0 0.0
    %1115 = vmatprep.subr.mxu0 0.0
    %1116 = vmatpush2.msra.mxu0 0.0
    %1117 = vmatprep.subr.mxu0 0.0
    %1118 = vmatpush2.msra.mxu0 0.0
    %1119 = vmatprep.subr.mxu0 0.0
    %1120 = vmatpush2.msra.mxu0 0.0
    %1121 = vmatprep.subr.mxu0 0.0
    %1122 = vmatpush2.msra.mxu0 0.0
    %1123 = vmatprep.mubr.f32.mxu0 0.0
    %1124 = vmatmul.mubr.f32.gmra.mxu0 %v957
    %v1125 = vpop.f32.mrf.mxu0
    %v1126 = vadd.f32 0.0, %v1125
    %v1127 = vpop.f32.mrf.mxu0
    %1128 = vdwg.mxu0
    %v1129 = vadd.f32 %v200, %v1126
    %v1130 = vxor.u32 %v1129, 2147483648
    %v1131 = vmul.f32 %v1130, 1.442695
    %v1132 = vpow.pop %v1131
    %v1133 = vadd.f32 %v1132, 1.0
    %v1134 = vrcp.pop %v1133
    %v1135 = vmul.f32 1.0, %v1134
    %v1136 = vtanh.pop %v1129
    %v1137 = vmul.f32 %v1135, %v875
    %1139 = vrot.lane.b32.xlu0 %v1136, 32
    %v1140 = vpop.permute.xlu0 %1139
    %v1142 = vmul.f32 %v1135, %v1140
    %1144 = vrot.lane.b32.xlu0 %v1142, 32
    %v1145 = vpop.permute.xlu0 %1144
    %v1147 = vadd.f32 %v1137, %v1145
    %v1148 = vtanh.pop %v1147
    %1150 = vrot.lane.b32.xlu0 %v1148, 32
    %v1151 = vpop.permute.xlu0 %1150
    %v1153 = vmul.f32 %v1135, %v1151
    %v1154 = vsel %vm237, %v1056, 0
    %1156 = vmatprep.subr.mxu0 0.0
    %1157 = vmatpush1.msra.mxu0 0.0
    %1158 = vmatprep.subr.mxu0 0.0
    %1159 = vmatpush1.msra.mxu0 0.0
    %1160 = vmatprep.subr.mxu0 0.0
    %1161 = vmatpush1.msra.mxu0 0.0
    %1162 = vmatprep.subr.mxu0 0.0
    %1163 = vmatpush1.msra.mxu0 0.0
    %1164 = vmatprep.subr.mxu0 0.0
    %1165 = vmatpush1.msra.mxu0 0.0
    %1166 = vmatprep.subr.mxu0 0.0
    %1167 = vmatpush1.msra.mxu0 0.0
    %1168 = vmatprep.subr.mxu0 0.0
    %1169 = vmatpush1.msra.mxu0 0.0
    %1170 = vmatprep.subr.mxu0 0.0
    %1171 = vmatpush1.msra.mxu0 0.0
    %1172 = vmatprep.subr.mxu0 0.0
    %1173 = vmatpush1.msra.mxu0 0.0
    %1174 = vmatprep.subr.mxu0 0.0
    %1175 = vmatpush1.msra.mxu0 0.0
    %1176 = vmatprep.subr.mxu0 0.0
    %1177 = vmatpush1.msra.mxu0 0.0
    %1178 = vmatprep.subr.mxu0 0.0
    %1179 = vmatpush1.msra.mxu0 0.0
    %1180 = vmatprep.subr.mxu0 0.0
    %1181 = vmatpush1.msra.mxu0 %v235
    %1182 = vmatprep.subr.mxu0 0.0
    %1183 = vmatpush1.msra.mxu0 %v234
    %1184 = vmatprep.subr.mxu0 0.0
    %1185 = vmatpush1.msra.mxu0 %v233
    %1186 = vmatprep.subr.mxu0 0.0
    %1187 = vmatpush1.msra.mxu0 %v232
    %1188 = vmatprep.subr.mxu0 0.0
    %1189 = vmatpush2.msra.mxu0 0.0
    %1190 = vmatprep.subr.mxu0 0.0
    %1191 = vmatpush2.msra.mxu0 0.0
    %1192 = vmatprep.subr.mxu0 0.0
    %1193 = vmatpush2.msra.mxu0 0.0
    %1194 = vmatprep.subr.mxu0 0.0
    %1195 = vmatpush2.msra.mxu0 0.0
    %1196 = vmatprep.subr.mxu0 0.0
    %1197 = vmatpush2.msra.mxu0 0.0
    %1198 = vmatprep.subr.mxu0 0.0
    %1199 = vmatpush2.msra.mxu0 0.0
    %1200 = vmatprep.subr.mxu0 0.0
    %1201 = vmatpush2.msra.mxu0 0.0
    %1202 = vmatprep.subr.mxu0 0.0
    %1203 = vmatpush2.msra.mxu0 0.0
    %1204 = vmatprep.subr.mxu0 0.0
    %1205 = vmatpush2.msra.mxu0 0.0
    %1206 = vmatprep.subr.mxu0 0.0
    %1207 = vmatpush2.msra.mxu0 0.0
    %1208 = vmatprep.subr.mxu0 0.0
    %1209 = vmatpush2.msra.mxu0 0.0
    %1210 = vmatprep.subr.mxu0 0.0
    %1211 = vmatpush2.msra.mxu0 0.0
    %1212 = vmatprep.subr.mxu0 0.0
    %1213 = vmatpush2.msra.mxu0 0.0
    %1214 = vmatprep.subr.mxu0 0.0
    %1215 = vmatpush2.msra.mxu0 0.0
    %1216 = vmatprep.subr.mxu0 0.0
    %1217 = vmatpush2.msra.mxu0 0.0
    %1218 = vmatprep.subr.mxu0 0.0
    %1219 = vmatpush2.msra.mxu0 0.0
    %1220 = vmatprep.mubr.f32.mxu0 0.0
    %1221 = vmatmul.mubr.f32.gmra.mxu0 %v1154
    %v1222 = vpop.f32.mrf.mxu0
    %v1223 = vadd.f32 0.0, %v1222
    %v1224 = vpop.f32.mrf.mxu0
    %1225 = vdwg.mxu0
    %1227 = vrot.lane.b32.xlu0 %v1153, 64
    %v1228 = vpop.permute.xlu0 %1227
    %v1229 = vsel %vm237, %v1228, 0
    %1231 = vmatprep.subr.mxu0 0.0
    %1232 = vmatpush1.msra.mxu0 0.0
    %1233 = vmatprep.subr.mxu0 0.0
    %1234 = vmatpush1.msra.mxu0 0.0
    %1235 = vmatprep.subr.mxu0 0.0
    %1236 = vmatpush1.msra.mxu0 0.0
    %1237 = vmatprep.subr.mxu0 0.0
    %1238 = vmatpush1.msra.mxu0 0.0
    %1239 = vmatprep.subr.mxu0 0.0
    %1240 = vmatpush1.msra.mxu0 0.0
    %1241 = vmatprep.subr.mxu0 0.0
    %1242 = vmatpush1.msra.mxu0 0.0
    %1243 = vmatprep.subr.mxu0 0.0
    %1244 = vmatpush1.msra.mxu0 0.0
    %1245 = vmatprep.subr.mxu0 0.0
    %1246 = vmatpush1.msra.mxu0 0.0
    %1247 = vmatprep.subr.mxu0 0.0
    %1248 = vmatpush1.msra.mxu0 0.0
    %1249 = vmatprep.subr.mxu0 0.0
    %1250 = vmatpush1.msra.mxu0 0.0
    %1251 = vmatprep.subr.mxu0 0.0
    %1252 = vmatpush1.msra.mxu0 0.0
    %1253 = vmatprep.subr.mxu0 0.0
    %1254 = vmatpush1.msra.mxu0 0.0
    %1255 = vmatprep.subr.mxu0 0.0
    %1256 = vmatpush1.msra.mxu0 %v231
    %1257 = vmatprep.subr.mxu0 0.0
    %1258 = vmatpush1.msra.mxu0 %v230
    %1259 = vmatprep.subr.mxu0 0.0
    %1260 = vmatpush1.msra.mxu0 %v229
    %1261 = vmatprep.subr.mxu0 0.0
    %1262 = vmatpush1.msra.mxu0 %v228
    %1263 = vmatprep.subr.mxu0 0.0
    %1264 = vmatpush2.msra.mxu0 0.0
    %1265 = vmatprep.subr.mxu0 0.0
    %1266 = vmatpush2.msra.mxu0 0.0
    %1267 = vmatprep.subr.mxu0 0.0
    %1268 = vmatpush2.msra.mxu0 0.0
    %1269 = vmatprep.subr.mxu0 0.0
    %1270 = vmatpush2.msra.mxu0 0.0
    %1271 = vmatprep.subr.mxu0 0.0
    %1272 = vmatpush2.msra.mxu0 0.0
    %1273 = vmatprep.subr.mxu0 0.0
    %1274 = vmatpush2.msra.mxu0 0.0
    %1275 = vmatprep.subr.mxu0 0.0
    %1276 = vmatpush2.msra.mxu0 0.0
    %1277 = vmatprep.subr.mxu0 0.0
    %1278 = vmatpush2.msra.mxu0 0.0
    %1279 = vmatprep.subr.mxu0 0.0
    %1280 = vmatpush2.msra.mxu0 0.0
    %1281 = vmatprep.subr.mxu0 0.0
    %1282 = vmatpush2.msra.mxu0 0.0
    %1283 = vmatprep.subr.mxu0 0.0
    %1284 = vmatpush2.msra.mxu0 0.0
    %1285 = vmatprep.subr.mxu0 0.0
    %1286 = vmatpush2.msra.mxu0 0.0
    %1287 = vmatprep.subr.mxu0 0.0
    %1288 = vmatpush2.msra.mxu0 0.0
    %1289 = vmatprep.subr.mxu0 0.0
    %1290 = vmatpush2.msra.mxu0 0.0
    %1291 = vmatprep.subr.mxu0 0.0
    %1292 = vmatpush2.msra.mxu0 0.0
    %1293 = vmatprep.subr.mxu0 0.0
    %1294 = vmatpush2.msra.mxu0 0.0
    %1295 = vmatprep.mubr.f32.mxu0 0.0
    %1296 = vmatmul.mubr.f32.gmra.mxu0 %v1229
    %v1297 = vpop.f32.mrf.mxu0
    %v1298 = vadd.f32 %v1223, %v1297
    %v1299 = vpop.f32.mrf.mxu0
    %1300 = vdwg.mxu0
    %v1301 = vadd.f32 %v1298, %v484
    %v1302 = vxor.u32 %v1301, 2147483648
    %v1303 = vmul.f32 %v1302, 1.442695
    %v1304 = vpow.pop %v1303
    %v1305 = vadd.f32 %v1304, 1.0
    %v1306 = vrcp.pop %v1305
    %v1307 = vmul.f32 1.0, %v1306
    %v1308 = vtanh.pop %v1301
    %v1309 = vmul.f32 %v1307, %v1047
    %1311 = vrot.lane.b32.xlu0 %v1308, 32
    %v1312 = vpop.permute.xlu0 %1311
    %v1314 = vmul.f32 %v1307, %v1312
    %1316 = vrot.lane.b32.xlu0 %v1314, 32
    %v1317 = vpop.permute.xlu0 %1316
    %v1319 = vadd.f32 %v1309, %v1317
    %v1320 = vtanh.pop %v1319
    %1322 = vrot.lane.b32.xlu0 %v1320, 32
    %v1323 = vpop.permute.xlu0 %1322
    %v1325 = vmul.f32 %v1307, %v1323
    %1327 = vrot.lane.b32.xlu0 %v1325, 64
    %v1328 = vpop.permute.xlu0 %1327
    %1330 = vst.msk [vmem:[#allocation2 + $0x18] sm:$0xff] %vm237, %v1328
    %1331 = vmatprep.subr.mxu0 0.0
    %1332 = vmatpush1.msra.mxu0 0.0
    %1333 = vmatprep.subr.mxu0 0.0
    %1334 = vmatpush1.msra.mxu0 0.0
    %1335 = vmatprep.subr.mxu0 0.0
    %1336 = vmatpush1.msra.mxu0 0.0
    %1337 = vmatprep.subr.mxu0 0.0
    %1338 = vmatpush1.msra.mxu0 0.0
    %1339 = vmatprep.subr.mxu0 0.0
    %1340 = vmatpush1.msra.mxu0 0.0
    %1341 = vmatprep.subr.mxu0 0.0
    %1342 = vmatpush1.msra.mxu0 0.0
    %1343 = vmatprep.subr.mxu0 0.0
    %1344 = vmatpush1.msra.mxu0 0.0
    %1345 = vmatprep.subr.mxu0 0.0
    %1346 = vmatpush1.msra.mxu0 0.0
    %1347 = vmatprep.subr.mxu0 0.0
    %1348 = vmatpush1.msra.mxu0 0.0
    %1349 = vmatprep.subr.mxu0 0.0
    %1350 = vmatpush1.msra.mxu0 0.0
    %1351 = vmatprep.subr.mxu0 0.0
    %1352 = vmatpush1.msra.mxu0 0.0
    %1353 = vmatprep.subr.mxu0 0.0
    %1354 = vmatpush1.msra.mxu0 0.0
    %1355 = vmatprep.subr.mxu0 0.0
    %1356 = vmatpush1.msra.mxu0 %v226
    %1357 = vmatprep.subr.mxu0 0.0
    %1358 = vmatpush1.msra.mxu0 %v225
    %1359 = vmatprep.subr.mxu0 0.0
    %1360 = vmatpush1.msra.mxu0 %v224
    %1361 = vmatprep.subr.mxu0 0.0
    %1362 = vmatpush1.msra.mxu0 %v223
    %1363 = vmatprep.subr.mxu0 0.0
    %1364 = vmatpush2.msra.mxu0 0.0
    %1365 = vmatprep.subr.mxu0 0.0
    %1366 = vmatpush2.msra.mxu0 0.0
    %1367 = vmatprep.subr.mxu0 0.0
    %1368 = vmatpush2.msra.mxu0 0.0
    %1369 = vmatprep.subr.mxu0 0.0
    %1370 = vmatpush2.msra.mxu0 0.0
    %1371 = vmatprep.subr.mxu0 0.0
    %1372 = vmatpush2.msra.mxu0 0.0
    %1373 = vmatprep.subr.mxu0 0.0
    %1374 = vmatpush2.msra.mxu0 0.0
    %1375 = vmatprep.subr.mxu0 0.0
    %1376 = vmatpush2.msra.mxu0 0.0
    %1377 = vmatprep.subr.mxu0 0.0
    %1378 = vmatpush2.msra.mxu0 0.0
    %1379 = vmatprep.subr.mxu0 0.0
    %1380 = vmatpush2.msra.mxu0 0.0
    %1381 = vmatprep.subr.mxu0 0.0
    %1382 = vmatpush2.msra.mxu0 0.0
    %1383 = vmatprep.subr.mxu0 0.0
    %1384 = vmatpush2.msra.mxu0 0.0
    %1385 = vmatprep.subr.mxu0 0.0
    %1386 = vmatpush2.msra.mxu0 0.0
    %1387 = vmatprep.subr.mxu0 0.0
    %1388 = vmatpush2.msra.mxu0 0.0
    %1389 = vmatprep.subr.mxu0 0.0
    %1390 = vmatpush2.msra.mxu0 0.0
    %1391 = vmatprep.subr.mxu0 0.0
    %1392 = vmatpush2.msra.mxu0 0.0
    %1393 = vmatprep.subr.mxu0 0.0
    %1394 = vmatpush2.msra.mxu0 0.0
    %1395 = vmatprep.mubr.f32.mxu0 0.0
    %1396 = vmatmul.mubr.f32.gmra.mxu0 %v1229
    %v1397 = vpop.f32.mrf.mxu0
    %v1398 = vadd.f32 0.0, %v1397
    %v1399 = vpop.f32.mrf.mxu0
    %1400 = vdwg.mxu0
    %v1401 = vadd.f32 %v205, %v1398
    %v1402 = vxor.u32 %v1401, 2147483648
    %v1403 = vmul.f32 %v1402, 1.442695
    %v1404 = vpow.pop %v1403
    %v1405 = vadd.f32 %v1404, 1.0
    %v1406 = vrcp.pop %v1405
    %v1407 = vmul.f32 1.0, %v1406
    %v1408 = vtanh.pop %v1401
    %v1409 = vmul.f32 %v1407, %v1147
    %1411 = vrot.lane.b32.xlu0 %v1408, 32
    %v1412 = vpop.permute.xlu0 %1411
    %v1414 = vmul.f32 %v1407, %v1412
    %1416 = vrot.lane.b32.xlu0 %v1414, 32
    %v1417 = vpop.permute.xlu0 %1416
    %v1419 = vadd.f32 %v1409, %v1417
    %v1420 = vtanh.pop %v1419
    %1422 = vrot.lane.b32.xlu0 %v1420, 32
    %v1423 = vpop.permute.xlu0 %1422
    %v1425 = vmul.f32 %v1407, %v1423
    %v1426 = vsel %vm237, %v1328, 0
    %1428 = vmatprep.subr.mxu0 0.0
    %1429 = vmatpush1.msra.mxu0 0.0
    %1430 = vmatprep.subr.mxu0 0.0
    %1431 = vmatpush1.msra.mxu0 0.0
    %1432 = vmatprep.subr.mxu0 0.0
    %1433 = vmatpush1.msra.mxu0 0.0
    %1434 = vmatprep.subr.mxu0 0.0
    %1435 = vmatpush1.msra.mxu0 0.0
    %1436 = vmatprep.subr.mxu0 0.0
    %1437 = vmatpush1.msra.mxu0 0.0
    %1438 = vmatprep.subr.mxu0 0.0
    %1439 = vmatpush1.msra.mxu0 0.0
    %1440 = vmatprep.subr.mxu0 0.0
    %1441 = vmatpush1.msra.mxu0 0.0
    %1442 = vmatprep.subr.mxu0 0.0
    %1443 = vmatpush1.msra.mxu0 0.0
    %1444 = vmatprep.subr.mxu0 0.0
    %1445 = vmatpush1.msra.mxu0 0.0
    %1446 = vmatprep.subr.mxu0 0.0
    %1447 = vmatpush1.msra.mxu0 0.0
    %1448 = vmatprep.subr.mxu0 0.0
    %1449 = vmatpush1.msra.mxu0 0.0
    %1450 = vmatprep.subr.mxu0 0.0
    %1451 = vmatpush1.msra.mxu0 0.0
    %1452 = vmatprep.subr.mxu0 0.0
    %1453 = vmatpush1.msra.mxu0 %v235
    %1454 = vmatprep.subr.mxu0 0.0
    %1455 = vmatpush1.msra.mxu0 %v234
    %1456 = vmatprep.subr.mxu0 0.0
    %1457 = vmatpush1.msra.mxu0 %v233
    %1458 = vmatprep.subr.mxu0 0.0
    %1459 = vmatpush1.msra.mxu0 %v232
    %1460 = vmatprep.subr.mxu0 0.0
    %1461 = vmatpush2.msra.mxu0 0.0
    %1462 = vmatprep.subr.mxu0 0.0
    %1463 = vmatpush2.msra.mxu0 0.0
    %1464 = vmatprep.subr.mxu0 0.0
    %1465 = vmatpush2.msra.mxu0 0.0
    %1466 = vmatprep.subr.mxu0 0.0
    %1467 = vmatpush2.msra.mxu0 0.0
    %1468 = vmatprep.subr.mxu0 0.0
    %1469 = vmatpush2.msra.mxu0 0.0
    %1470 = vmatprep.subr.mxu0 0.0
    %1471 = vmatpush2.msra.mxu0 0.0
    %1472 = vmatprep.subr.mxu0 0.0
    %1473 = vmatpush2.msra.mxu0 0.0
    %1474 = vmatprep.subr.mxu0 0.0
    %1475 = vmatpush2.msra.mxu0 0.0
    %1476 = vmatprep.subr.mxu0 0.0
    %1477 = vmatpush2.msra.mxu0 0.0
    %1478 = vmatprep.subr.mxu0 0.0
    %1479 = vmatpush2.msra.mxu0 0.0
    %1480 = vmatprep.subr.mxu0 0.0
    %1481 = vmatpush2.msra.mxu0 0.0
    %1482 = vmatprep.subr.mxu0 0.0
    %1483 = vmatpush2.msra.mxu0 0.0
    %1484 = vmatprep.subr.mxu0 0.0
    %1485 = vmatpush2.msra.mxu0 0.0
    %1486 = vmatprep.subr.mxu0 0.0
    %1487 = vmatpush2.msra.mxu0 0.0
    %1488 = vmatprep.subr.mxu0 0.0
    %1489 = vmatpush2.msra.mxu0 0.0
    %1490 = vmatprep.subr.mxu0 0.0
    %1491 = vmatpush2.msra.mxu0 0.0
    %1492 = vmatprep.mubr.f32.mxu0 0.0
    %1493 = vmatmul.mubr.f32.gmra.mxu0 %v1426
    %v1494 = vpop.f32.mrf.mxu0
    %v1495 = vadd.f32 0.0, %v1494
    %v1496 = vpop.f32.mrf.mxu0
    %1497 = vdwg.mxu0
    %1499 = vrot.lane.b32.xlu0 %v1425, 64
    %v1500 = vpop.permute.xlu0 %1499
    %v1501 = vsel %vm237, %v1500, 0
    %1503 = vmatprep.subr.mxu0 0.0
    %1504 = vmatpush1.msra.mxu0 0.0
    %1505 = vmatprep.subr.mxu0 0.0
    %1506 = vmatpush1.msra.mxu0 0.0
    %1507 = vmatprep.subr.mxu0 0.0
    %1508 = vmatpush1.msra.mxu0 0.0
    %1509 = vmatprep.subr.mxu0 0.0
    %1510 = vmatpush1.msra.mxu0 0.0
    %1511 = vmatprep.subr.mxu0 0.0
    %1512 = vmatpush1.msra.mxu0 0.0
    %1513 = vmatprep.subr.mxu0 0.0
    %1514 = vmatpush1.msra.mxu0 0.0
    %1515 = vmatprep.subr.mxu0 0.0
    %1516 = vmatpush1.msra.mxu0 0.0
    %1517 = vmatprep.subr.mxu0 0.0
    %1518 = vmatpush1.msra.mxu0 0.0
    %1519 = vmatprep.subr.mxu0 0.0
    %1520 = vmatpush1.msra.mxu0 0.0
    %1521 = vmatprep.subr.mxu0 0.0
    %1522 = vmatpush1.msra.mxu0 0.0
    %1523 = vmatprep.subr.mxu0 0.0
    %1524 = vmatpush1.msra.mxu0 0.0
    %1525 = vmatprep.subr.mxu0 0.0
    %1526 = vmatpush1.msra.mxu0 0.0
    %1527 = vmatprep.subr.mxu0 0.0
    %1528 = vmatpush1.msra.mxu0 %v231
    %1529 = vmatprep.subr.mxu0 0.0
    %1530 = vmatpush1.msra.mxu0 %v230
    %1531 = vmatprep.subr.mxu0 0.0
    %1532 = vmatpush1.msra.mxu0 %v229
    %1533 = vmatprep.subr.mxu0 0.0
    %1534 = vmatpush1.msra.mxu0 %v228
    %1535 = vmatprep.subr.mxu0 0.0
    %1536 = vmatpush2.msra.mxu0 0.0
    %1537 = vmatprep.subr.mxu0 0.0
    %1538 = vmatpush2.msra.mxu0 0.0
    %1539 = vmatprep.subr.mxu0 0.0
    %1540 = vmatpush2.msra.mxu0 0.0
    %1541 = vmatprep.subr.mxu0 0.0
    %1542 = vmatpush2.msra.mxu0 0.0
    %1543 = vmatprep.subr.mxu0 0.0
    %1544 = vmatpush2.msra.mxu0 0.0
    %1545 = vmatprep.subr.mxu0 0.0
    %1546 = vmatpush2.msra.mxu0 0.0
    %1547 = vmatprep.subr.mxu0 0.0
    %1548 = vmatpush2.msra.mxu0 0.0
    %1549 = vmatprep.subr.mxu0 0.0
    %1550 = vmatpush2.msra.mxu0 0.0
    %1551 = vmatprep.subr.mxu0 0.0
    %1552 = vmatpush2.msra.mxu0 0.0
    %1553 = vmatprep.subr.mxu0 0.0
    %1554 = vmatpush2.msra.mxu0 0.0
    %1555 = vmatprep.subr.mxu0 0.0
    %1556 = vmatpush2.msra.mxu0 0.0
    %1557 = vmatprep.subr.mxu0 0.0
    %1558 = vmatpush2.msra.mxu0 0.0
    %1559 = vmatprep.subr.mxu0 0.0
    %1560 = vmatpush2.msra.mxu0 0.0
    %1561 = vmatprep.subr.mxu0 0.0
    %1562 = vmatpush2.msra.mxu0 0.0
    %1563 = vmatprep.subr.mxu0 0.0
    %1564 = vmatpush2.msra.mxu0 0.0
    %1565 = vmatprep.subr.mxu0 0.0
    %1566 = vmatpush2.msra.mxu0 0.0
    %1567 = vmatprep.mubr.f32.mxu0 0.0
    %1568 = vmatmul.mubr.f32.gmra.mxu0 %v1501
    %v1569 = vpop.f32.mrf.mxu0
    %v1570 = vadd.f32 %v1495, %v1569
    %v1571 = vpop.f32.mrf.mxu0
    %1572 = vdwg.mxu0
    %v1573 = vadd.f32 %v1570, %v484
    %v1574 = vxor.u32 %v1573, 2147483648
    %v1575 = vmul.f32 %v1574, 1.442695
    %v1576 = vpow.pop %v1575
    %v1577 = vadd.f32 %v1576, 1.0
    %v1578 = vrcp.pop %v1577
    %v1579 = vmul.f32 1.0, %v1578
    %v1580 = vtanh.pop %v1573
    %v1581 = vmul.f32 %v1579, %v1319
    %1583 = vrot.lane.b32.xlu0 %v1580, 32
    %v1584 = vpop.permute.xlu0 %1583
    %v1586 = vmul.f32 %v1579, %v1584
    %1588 = vrot.lane.b32.xlu0 %v1586, 32
    %v1589 = vpop.permute.xlu0 %1588
    %v1591 = vadd.f32 %v1581, %v1589
    %v1592 = vtanh.pop %v1591
    %1594 = vrot.lane.b32.xlu0 %v1592, 32
    %v1595 = vpop.permute.xlu0 %1594
    %v1597 = vmul.f32 %v1579, %v1595
    %1599 = vrot.lane.b32.xlu0 %v1597, 64
    %v1600 = vpop.permute.xlu0 %1599
    %1602 = vst.msk [vmem:[#allocation2 + $0x20] sm:$0xff] %vm237, %v1600
    %1603 = vmatprep.subr.mxu0 0.0
    %1604 = vmatpush1.msra.mxu0 0.0
    %1605 = vmatprep.subr.mxu0 0.0
    %1606 = vmatpush1.msra.mxu0 0.0
    %1607 = vmatprep.subr.mxu0 0.0
    %1608 = vmatpush1.msra.mxu0 0.0
    %1609 = vmatprep.subr.mxu0 0.0
    %1610 = vmatpush1.msra.mxu0 0.0
    %1611 = vmatprep.subr.mxu0 0.0
    %1612 = vmatpush1.msra.mxu0 0.0
    %1613 = vmatprep.subr.mxu0 0.0
    %1614 = vmatpush1.msra.mxu0 0.0
    %1615 = vmatprep.subr.mxu0 0.0
    %1616 = vmatpush1.msra.mxu0 0.0
    %1617 = vmatprep.subr.mxu0 0.0
    %1618 = vmatpush1.msra.mxu0 0.0
    %1619 = vmatprep.subr.mxu0 0.0
    %1620 = vmatpush1.msra.mxu0 0.0
    %1621 = vmatprep.subr.mxu0 0.0
    %1622 = vmatpush1.msra.mxu0 0.0
    %1623 = vmatprep.subr.mxu0 0.0
    %1624 = vmatpush1.msra.mxu0 0.0
    %1625 = vmatprep.subr.mxu0 0.0
    %1626 = vmatpush1.msra.mxu0 0.0
    %1627 = vmatprep.subr.mxu0 0.0
    %1628 = vmatpush1.msra.mxu0 %v226
    %1629 = vmatprep.subr.mxu0 0.0
    %1630 = vmatpush1.msra.mxu0 %v225
    %1631 = vmatprep.subr.mxu0 0.0
    %1632 = vmatpush1.msra.mxu0 %v224
    %1633 = vmatprep.subr.mxu0 0.0
    %1634 = vmatpush1.msra.mxu0 %v223
    %1635 = vmatprep.subr.mxu0 0.0
    %1636 = vmatpush2.msra.mxu0 0.0
    %1637 = vmatprep.subr.mxu0 0.0
    %1638 = vmatpush2.msra.mxu0 0.0
    %1639 = vmatprep.subr.mxu0 0.0
    %1640 = vmatpush2.msra.mxu0 0.0
    %1641 = vmatprep.subr.mxu0 0.0
    %1642 = vmatpush2.msra.mxu0 0.0
    %1643 = vmatprep.subr.mxu0 0.0
    %1644 = vmatpush2.msra.mxu0 0.0
    %1645 = vmatprep.subr.mxu0 0.0
    %1646 = vmatpush2.msra.mxu0 0.0
    %1647 = vmatprep.subr.mxu0 0.0
    %1648 = vmatpush2.msra.mxu0 0.0
    %1649 = vmatprep.subr.mxu0 0.0
    %1650 = vmatpush2.msra.mxu0 0.0
    %1651 = vmatprep.subr.mxu0 0.0
    %1652 = vmatpush2.msra.mxu0 0.0
    %1653 = vmatprep.subr.mxu0 0.0
    %1654 = vmatpush2.msra.mxu0 0.0
    %1655 = vmatprep.subr.mxu0 0.0
    %1656 = vmatpush2.msra.mxu0 0.0
    %1657 = vmatprep.subr.mxu0 0.0
    %1658 = vmatpush2.msra.mxu0 0.0
    %1659 = vmatprep.subr.mxu0 0.0
    %1660 = vmatpush2.msra.mxu0 0.0
    %1661 = vmatprep.subr.mxu0 0.0
    %1662 = vmatpush2.msra.mxu0 0.0
    %1663 = vmatprep.subr.mxu0 0.0
    %1664 = vmatpush2.msra.mxu0 0.0
    %1665 = vmatprep.subr.mxu0 0.0
    %1666 = vmatpush2.msra.mxu0 0.0
    %1667 = vmatprep.mubr.f32.mxu0 0.0
    %1668 = vmatmul.mubr.f32.gmra.mxu0 %v1501
    %v1669 = vpop.f32.mrf.mxu0
    %v1670 = vadd.f32 0.0, %v1669
    %v1671 = vpop.f32.mrf.mxu0
    %1672 = vdwg.mxu0
    %v1673 = vadd.f32 %v210, %v1670
    %v1674 = vxor.u32 %v1673, 2147483648
    %v1675 = vmul.f32 %v1674, 1.442695
    %v1676 = vpow.pop %v1675
    %v1677 = vadd.f32 %v1676, 1.0
    %v1678 = vrcp.pop %v1677
    %v1679 = vmul.f32 1.0, %v1678
    %v1680 = vtanh.pop %v1673
    %v1681 = vmul.f32 %v1679, %v1419
    %1683 = vrot.lane.b32.xlu0 %v1680, 32
    %v1684 = vpop.permute.xlu0 %1683
    %v1686 = vmul.f32 %v1679, %v1684
    %1688 = vrot.lane.b32.xlu0 %v1686, 32
    %v1689 = vpop.permute.xlu0 %1688
    %v1691 = vadd.f32 %v1681, %v1689
    %v1692 = vtanh.pop %v1691
    %1694 = vrot.lane.b32.xlu0 %v1692, 32
    %v1695 = vpop.permute.xlu0 %1694
    %v1697 = vmul.f32 %v1679, %v1695
    %v1698 = vsel %vm237, %v1600, 0
    %1700 = vmatprep.subr.mxu0 0.0
    %1701 = vmatpush1.msra.mxu0 0.0
    %1702 = vmatprep.subr.mxu0 0.0
    %1703 = vmatpush1.msra.mxu0 0.0
    %1704 = vmatprep.subr.mxu0 0.0
    %1705 = vmatpush1.msra.mxu0 0.0
    %1706 = vmatprep.subr.mxu0 0.0
    %1707 = vmatpush1.msra.mxu0 0.0
    %1708 = vmatprep.subr.mxu0 0.0
    %1709 = vmatpush1.msra.mxu0 0.0
    %1710 = vmatprep.subr.mxu0 0.0
    %1711 = vmatpush1.msra.mxu0 0.0
    %1712 = vmatprep.subr.mxu0 0.0
    %1713 = vmatpush1.msra.mxu0 0.0
    %1714 = vmatprep.subr.mxu0 0.0
    %1715 = vmatpush1.msra.mxu0 0.0
    %1716 = vmatprep.subr.mxu0 0.0
    %1717 = vmatpush1.msra.mxu0 0.0
    %1718 = vmatprep.subr.mxu0 0.0
    %1719 = vmatpush1.msra.mxu0 0.0
    %1720 = vmatprep.subr.mxu0 0.0
    %1721 = vmatpush1.msra.mxu0 0.0
    %1722 = vmatprep.subr.mxu0 0.0
    %1723 = vmatpush1.msra.mxu0 0.0
    %1724 = vmatprep.subr.mxu0 0.0
    %1725 = vmatpush1.msra.mxu0 %v235
    %1726 = vmatprep.subr.mxu0 0.0
    %1727 = vmatpush1.msra.mxu0 %v234
    %1728 = vmatprep.subr.mxu0 0.0
    %1729 = vmatpush1.msra.mxu0 %v233
    %1730 = vmatprep.subr.mxu0 0.0
    %1731 = vmatpush1.msra.mxu0 %v232
    %1732 = vmatprep.subr.mxu0 0.0
    %1733 = vmatpush2.msra.mxu0 0.0
    %1734 = vmatprep.subr.mxu0 0.0
    %1735 = vmatpush2.msra.mxu0 0.0
    %1736 = vmatprep.subr.mxu0 0.0
    %1737 = vmatpush2.msra.mxu0 0.0
    %1738 = vmatprep.subr.mxu0 0.0
    %1739 = vmatpush2.msra.mxu0 0.0
    %1740 = vmatprep.subr.mxu0 0.0
    %1741 = vmatpush2.msra.mxu0 0.0
    %1742 = vmatprep.subr.mxu0 0.0
    %1743 = vmatpush2.msra.mxu0 0.0
    %1744 = vmatprep.subr.mxu0 0.0
    %1745 = vmatpush2.msra.mxu0 0.0
    %1746 = vmatprep.subr.mxu0 0.0
    %1747 = vmatpush2.msra.mxu0 0.0
    %1748 = vmatprep.subr.mxu0 0.0
    %1749 = vmatpush2.msra.mxu0 0.0
    %1750 = vmatprep.subr.mxu0 0.0
    %1751 = vmatpush2.msra.mxu0 0.0
    %1752 = vmatprep.subr.mxu0 0.0
    %1753 = vmatpush2.msra.mxu0 0.0
    %1754 = vmatprep.subr.mxu0 0.0
    %1755 = vmatpush2.msra.mxu0 0.0
    %1756 = vmatprep.subr.mxu0 0.0
    %1757 = vmatpush2.msra.mxu0 0.0
    %1758 = vmatprep.subr.mxu0 0.0
    %1759 = vmatpush2.msra.mxu0 0.0
    %1760 = vmatprep.subr.mxu0 0.0
    %1761 = vmatpush2.msra.mxu0 0.0
    %1762 = vmatprep.subr.mxu0 0.0
    %1763 = vmatpush2.msra.mxu0 0.0
    %1764 = vmatprep.mubr.f32.mxu0 0.0
    %1765 = vmatmul.mubr.f32.gmra.mxu0 %v1698
    %v1766 = vpop.f32.mrf.mxu0
    %v1767 = vadd.f32 0.0, %v1766
    %v1768 = vpop.f32.mrf.mxu0
    %1769 = vdwg.mxu0
    %1771 = vrot.lane.b32.xlu0 %v1697, 64
    %v1772 = vpop.permute.xlu0 %1771
    %v1773 = vsel %vm237, %v1772, 0
    %1775 = vmatprep.subr.mxu0 0.0
    %1776 = vmatpush1.msra.mxu0 0.0
    %1777 = vmatprep.subr.mxu0 0.0
    %1778 = vmatpush1.msra.mxu0 0.0
    %1779 = vmatprep.subr.mxu0 0.0
    %1780 = vmatpush1.msra.mxu0 0.0
    %1781 = vmatprep.subr.mxu0 0.0
    %1782 = vmatpush1.msra.mxu0 0.0
    %1783 = vmatprep.subr.mxu0 0.0
    %1784 = vmatpush1.msra.mxu0 0.0
    %1785 = vmatprep.subr.mxu0 0.0
    %1786 = vmatpush1.msra.mxu0 0.0
    %1787 = vmatprep.subr.mxu0 0.0
    %1788 = vmatpush1.msra.mxu0 0.0
    %1789 = vmatprep.subr.mxu0 0.0
    %1790 = vmatpush1.msra.mxu0 0.0
    %1791 = vmatprep.subr.mxu0 0.0
    %1792 = vmatpush1.msra.mxu0 0.0
    %1793 = vmatprep.subr.mxu0 0.0
    %1794 = vmatpush1.msra.mxu0 0.0
    %1795 = vmatprep.subr.mxu0 0.0
    %1796 = vmatpush1.msra.mxu0 0.0
    %1797 = vmatprep.subr.mxu0 0.0
    %1798 = vmatpush1.msra.mxu0 0.0
    %1799 = vmatprep.subr.mxu0 0.0
    %1800 = vmatpush1.msra.mxu0 %v231
    %1801 = vmatprep.subr.mxu0 0.0
    %1802 = vmatpush1.msra.mxu0 %v230
    %1803 = vmatprep.subr.mxu0 0.0
    %1804 = vmatpush1.msra.mxu0 %v229
    %1805 = vmatprep.subr.mxu0 0.0
    %1806 = vmatpush1.msra.mxu0 %v228
    %1807 = vmatprep.subr.mxu0 0.0
    %1808 = vmatpush2.msra.mxu0 0.0
    %1809 = vmatprep.subr.mxu0 0.0
    %1810 = vmatpush2.msra.mxu0 0.0
    %1811 = vmatprep.subr.mxu0 0.0
    %1812 = vmatpush2.msra.mxu0 0.0
    %1813 = vmatprep.subr.mxu0 0.0
    %1814 = vmatpush2.msra.mxu0 0.0
    %1815 = vmatprep.subr.mxu0 0.0
    %1816 = vmatpush2.msra.mxu0 0.0
    %1817 = vmatprep.subr.mxu0 0.0
    %1818 = vmatpush2.msra.mxu0 0.0
    %1819 = vmatprep.subr.mxu0 0.0
    %1820 = vmatpush2.msra.mxu0 0.0
    %1821 = vmatprep.subr.mxu0 0.0
    %1822 = vmatpush2.msra.mxu0 0.0
    %1823 = vmatprep.subr.mxu0 0.0
    %1824 = vmatpush2.msra.mxu0 0.0
    %1825 = vmatprep.subr.mxu0 0.0
    %1826 = vmatpush2.msra.mxu0 0.0
    %1827 = vmatprep.subr.mxu0 0.0
    %1828 = vmatpush2.msra.mxu0 0.0
    %1829 = vmatprep.subr.mxu0 0.0
    %1830 = vmatpush2.msra.mxu0 0.0
    %1831 = vmatprep.subr.mxu0 0.0
    %1832 = vmatpush2.msra.mxu0 0.0
    %1833 = vmatprep.subr.mxu0 0.0
    %1834 = vmatpush2.msra.mxu0 0.0
    %1835 = vmatprep.subr.mxu0 0.0
    %1836 = vmatpush2.msra.mxu0 0.0
    %1837 = vmatprep.subr.mxu0 0.0
    %1838 = vmatpush2.msra.mxu0 0.0
    %1839 = vmatprep.mubr.f32.mxu0 0.0
    %1840 = vmatmul.mubr.f32.gmra.mxu0 %v1773
    %v1841 = vpop.f32.mrf.mxu0
    %v1842 = vadd.f32 %v1767, %v1841
    %v1843 = vpop.f32.mrf.mxu0
    %1844 = vdwg.mxu0
    %v1845 = vadd.f32 %v1842, %v484
    %v1846 = vxor.u32 %v1845, 2147483648
    %v1847 = vmul.f32 %v1846, 1.442695
    %v1848 = vpow.pop %v1847
    %v1849 = vadd.f32 %v1848, 1.0
    %v1850 = vrcp.pop %v1849
    %v1851 = vmul.f32 1.0, %v1850
    %v1852 = vtanh.pop %v1845
    %v1853 = vmul.f32 %v1851, %v1591
    %1855 = vrot.lane.b32.xlu0 %v1852, 32
    %v1856 = vpop.permute.xlu0 %1855
    %v1858 = vmul.f32 %v1851, %v1856
    %1860 = vrot.lane.b32.xlu0 %v1858, 32
    %v1861 = vpop.permute.xlu0 %1860
    %v1863 = vadd.f32 %v1853, %v1861
    %v1864 = vtanh.pop %v1863
    %1866 = vrot.lane.b32.xlu0 %v1864, 32
    %v1867 = vpop.permute.xlu0 %1866
    %v1869 = vmul.f32 %v1851, %v1867
    %1871 = vrot.lane.b32.xlu0 %v1869, 64
    %v1872 = vpop.permute.xlu0 %1871
    %1874 = vst.msk [vmem:[#allocation2 + $0x28] sm:$0xff] %vm237, %v1872
    %1875 = vmatprep.subr.mxu0 0.0
    %1876 = vmatpush1.msra.mxu0 0.0
    %1877 = vmatprep.subr.mxu0 0.0
    %1878 = vmatpush1.msra.mxu0 0.0
    %1879 = vmatprep.subr.mxu0 0.0
    %1880 = vmatpush1.msra.mxu0 0.0
    %1881 = vmatprep.subr.mxu0 0.0
    %1882 = vmatpush1.msra.mxu0 0.0
    %1883 = vmatprep.subr.mxu0 0.0
    %1884 = vmatpush1.msra.mxu0 0.0
    %1885 = vmatprep.subr.mxu0 0.0
    %1886 = vmatpush1.msra.mxu0 0.0
    %1887 = vmatprep.subr.mxu0 0.0
    %1888 = vmatpush1.msra.mxu0 0.0
    %1889 = vmatprep.subr.mxu0 0.0
    %1890 = vmatpush1.msra.mxu0 0.0
    %1891 = vmatprep.subr.mxu0 0.0
    %1892 = vmatpush1.msra.mxu0 0.0
    %1893 = vmatprep.subr.mxu0 0.0
    %1894 = vmatpush1.msra.mxu0 0.0
    %1895 = vmatprep.subr.mxu0 0.0
    %1896 = vmatpush1.msra.mxu0 0.0
    %1897 = vmatprep.subr.mxu0 0.0
    %1898 = vmatpush1.msra.mxu0 0.0
    %1899 = vmatprep.subr.mxu0 0.0
    %1900 = vmatpush1.msra.mxu0 %v226
    %1901 = vmatprep.subr.mxu0 0.0
    %1902 = vmatpush1.msra.mxu0 %v225
    %1903 = vmatprep.subr.mxu0 0.0
    %1904 = vmatpush1.msra.mxu0 %v224
    %1905 = vmatprep.subr.mxu0 0.0
    %1906 = vmatpush1.msra.mxu0 %v223
    %1907 = vmatprep.subr.mxu0 0.0
    %1908 = vmatpush2.msra.mxu0 0.0
    %1909 = vmatprep.subr.mxu0 0.0
    %1910 = vmatpush2.msra.mxu0 0.0
    %1911 = vmatprep.subr.mxu0 0.0
    %1912 = vmatpush2.msra.mxu0 0.0
    %1913 = vmatprep.subr.mxu0 0.0
    %1914 = vmatpush2.msra.mxu0 0.0
    %1915 = vmatprep.subr.mxu0 0.0
    %1916 = vmatpush2.msra.mxu0 0.0
    %1917 = vmatprep.subr.mxu0 0.0
    %1918 = vmatpush2.msra.mxu0 0.0
    %1919 = vmatprep.subr.mxu0 0.0
    %1920 = vmatpush2.msra.mxu0 0.0
    %1921 = vmatprep.subr.mxu0 0.0
    %1922 = vmatpush2.msra.mxu0 0.0
    %1923 = vmatprep.subr.mxu0 0.0
    %1924 = vmatpush2.msra.mxu0 0.0
    %1925 = vmatprep.subr.mxu0 0.0
    %1926 = vmatpush2.msra.mxu0 0.0
    %1927 = vmatprep.subr.mxu0 0.0
    %1928 = vmatpush2.msra.mxu0 0.0
    %1929 = vmatprep.subr.mxu0 0.0
    %1930 = vmatpush2.msra.mxu0 0.0
    %1931 = vmatprep.subr.mxu0 0.0
    %1932 = vmatpush2.msra.mxu0 0.0
    %1933 = vmatprep.subr.mxu0 0.0
    %1934 = vmatpush2.msra.mxu0 0.0
    %1935 = vmatprep.subr.mxu0 0.0
    %1936 = vmatpush2.msra.mxu0 0.0
    %1937 = vmatprep.subr.mxu0 0.0
    %1938 = vmatpush2.msra.mxu0 0.0
    %1939 = vmatprep.mubr.f32.mxu0 0.0
    %1940 = vmatmul.mubr.f32.gmra.mxu0 %v1773
    %v1941 = vpop.f32.mrf.mxu0
    %v1942 = vadd.f32 0.0, %v1941
    %v1943 = vpop.f32.mrf.mxu0
    %1944 = vdwg.mxu0
    %v1945 = vadd.f32 %v215, %v1942
    %v1946 = vxor.u32 %v1945, 2147483648
    %v1947 = vmul.f32 %v1946, 1.442695
    %v1948 = vpow.pop %v1947
    %v1949 = vadd.f32 %v1948, 1.0
    %v1950 = vrcp.pop %v1949
    %v1951 = vmul.f32 1.0, %v1950
    %v1952 = vtanh.pop %v1945
    %v1953 = vmul.f32 %v1951, %v1691
    %1955 = vrot.lane.b32.xlu0 %v1952, 32
    %v1956 = vpop.permute.xlu0 %1955
    %v1958 = vmul.f32 %v1951, %v1956
    %1960 = vrot.lane.b32.xlu0 %v1958, 32
    %v1961 = vpop.permute.xlu0 %1960
    %v1963 = vadd.f32 %v1953, %v1961
    %v1964 = vtanh.pop %v1963
    %1966 = vrot.lane.b32.xlu0 %v1964, 32
    %v1967 = vpop.permute.xlu0 %1966
    %v1969 = vmul.f32 %v1951, %v1967
    %v1970 = vsel %vm237, %v1872, 0
    %1972 = vmatprep.subr.mxu0 0.0
    %1973 = vmatpush1.msra.mxu0 0.0
    %1974 = vmatprep.subr.mxu0 0.0
    %1975 = vmatpush1.msra.mxu0 0.0
    %1976 = vmatprep.subr.mxu0 0.0
    %1977 = vmatpush1.msra.mxu0 0.0
    %1978 = vmatprep.subr.mxu0 0.0
    %1979 = vmatpush1.msra.mxu0 0.0
    %1980 = vmatprep.subr.mxu0 0.0
    %1981 = vmatpush1.msra.mxu0 0.0
    %1982 = vmatprep.subr.mxu0 0.0
    %1983 = vmatpush1.msra.mxu0 0.0
    %1984 = vmatprep.subr.mxu0 0.0
    %1985 = vmatpush1.msra.mxu0 0.0
    %1986 = vmatprep.subr.mxu0 0.0
    %1987 = vmatpush1.msra.mxu0 0.0
    %1988 = vmatprep.subr.mxu0 0.0
    %1989 = vmatpush1.msra.mxu0 0.0
    %1990 = vmatprep.subr.mxu0 0.0
    %1991 = vmatpush1.msra.mxu0 0.0
    %1992 = vmatprep.subr.mxu0 0.0
    %1993 = vmatpush1.msra.mxu0 0.0
    %1994 = vmatprep.subr.mxu0 0.0
    %1995 = vmatpush1.msra.mxu0 0.0
    %1996 = vmatprep.subr.mxu0 0.0
    %1997 = vmatpush1.msra.mxu0 %v235
    %1998 = vmatprep.subr.mxu0 0.0
    %1999 = vmatpush1.msra.mxu0 %v234
    %2000 = vmatprep.subr.mxu0 0.0
    %2001 = vmatpush1.msra.mxu0 %v233
    %2002 = vmatprep.subr.mxu0 0.0
    %2003 = vmatpush1.msra.mxu0 %v232
    %2004 = vmatprep.subr.mxu0 0.0
    %2005 = vmatpush2.msra.mxu0 0.0
    %2006 = vmatprep.subr.mxu0 0.0
    %2007 = vmatpush2.msra.mxu0 0.0
    %2008 = vmatprep.subr.mxu0 0.0
    %2009 = vmatpush2.msra.mxu0 0.0
    %2010 = vmatprep.subr.mxu0 0.0
    %2011 = vmatpush2.msra.mxu0 0.0
    %2012 = vmatprep.subr.mxu0 0.0
    %2013 = vmatpush2.msra.mxu0 0.0
    %2014 = vmatprep.subr.mxu0 0.0
    %2015 = vmatpush2.msra.mxu0 0.0
    %2016 = vmatprep.subr.mxu0 0.0
    %2017 = vmatpush2.msra.mxu0 0.0
    %2018 = vmatprep.subr.mxu0 0.0
    %2019 = vmatpush2.msra.mxu0 0.0
    %2020 = vmatprep.subr.mxu0 0.0
    %2021 = vmatpush2.msra.mxu0 0.0
    %2022 = vmatprep.subr.mxu0 0.0
    %2023 = vmatpush2.msra.mxu0 0.0
    %2024 = vmatprep.subr.mxu0 0.0
    %2025 = vmatpush2.msra.mxu0 0.0
    %2026 = vmatprep.subr.mxu0 0.0
    %2027 = vmatpush2.msra.mxu0 0.0
    %2028 = vmatprep.subr.mxu0 0.0
    %2029 = vmatpush2.msra.mxu0 0.0
    %2030 = vmatprep.subr.mxu0 0.0
    %2031 = vmatpush2.msra.mxu0 0.0
    %2032 = vmatprep.subr.mxu0 0.0
    %2033 = vmatpush2.msra.mxu0 0.0
    %2034 = vmatprep.subr.mxu0 0.0
    %2035 = vmatpush2.msra.mxu0 0.0
    %2036 = vmatprep.mubr.f32.mxu0 0.0
    %2037 = vmatmul.mubr.f32.gmra.mxu0 %v1970
    %v2038 = vpop.f32.mrf.mxu0
    %v2039 = vadd.f32 0.0, %v2038
    %v2040 = vpop.f32.mrf.mxu0
    %2041 = vdwg.mxu0
    %2043 = vrot.lane.b32.xlu0 %v1969, 64
    %v2044 = vpop.permute.xlu0 %2043
    %v2045 = vsel %vm237, %v2044, 0
    %2047 = vmatprep.subr.mxu0 0.0
    %2048 = vmatpush1.msra.mxu0 0.0
    %2049 = vmatprep.subr.mxu0 0.0
    %2050 = vmatpush1.msra.mxu0 0.0
    %2051 = vmatprep.subr.mxu0 0.0
    %2052 = vmatpush1.msra.mxu0 0.0
    %2053 = vmatprep.subr.mxu0 0.0
    %2054 = vmatpush1.msra.mxu0 0.0
    %2055 = vmatprep.subr.mxu0 0.0
    %2056 = vmatpush1.msra.mxu0 0.0
    %2057 = vmatprep.subr.mxu0 0.0
    %2058 = vmatpush1.msra.mxu0 0.0
    %2059 = vmatprep.subr.mxu0 0.0
    %2060 = vmatpush1.msra.mxu0 0.0
    %2061 = vmatprep.subr.mxu0 0.0
    %2062 = vmatpush1.msra.mxu0 0.0
    %2063 = vmatprep.subr.mxu0 0.0
    %2064 = vmatpush1.msra.mxu0 0.0
    %2065 = vmatprep.subr.mxu0 0.0
    %2066 = vmatpush1.msra.mxu0 0.0
    %2067 = vmatprep.subr.mxu0 0.0
    %2068 = vmatpush1.msra.mxu0 0.0
    %2069 = vmatprep.subr.mxu0 0.0
    %2070 = vmatpush1.msra.mxu0 0.0
    %2071 = vmatprep.subr.mxu0 0.0
    %2072 = vmatpush1.msra.mxu0 %v231
    %2073 = vmatprep.subr.mxu0 0.0
    %2074 = vmatpush1.msra.mxu0 %v230
    %2075 = vmatprep.subr.mxu0 0.0
    %2076 = vmatpush1.msra.mxu0 %v229
    %2077 = vmatprep.subr.mxu0 0.0
    %2078 = vmatpush1.msra.mxu0 %v228
    %2079 = vmatprep.subr.mxu0 0.0
    %2080 = vmatpush2.msra.mxu0 0.0
    %2081 = vmatprep.subr.mxu0 0.0
    %2082 = vmatpush2.msra.mxu0 0.0
    %2083 = vmatprep.subr.mxu0 0.0
    %2084 = vmatpush2.msra.mxu0 0.0
    %2085 = vmatprep.subr.mxu0 0.0
    %2086 = vmatpush2.msra.mxu0 0.0
    %2087 = vmatprep.subr.mxu0 0.0
    %2088 = vmatpush2.msra.mxu0 0.0
    %2089 = vmatprep.subr.mxu0 0.0
    %2090 = vmatpush2.msra.mxu0 0.0
    %2091 = vmatprep.subr.mxu0 0.0
    %2092 = vmatpush2.msra.mxu0 0.0
    %2093 = vmatprep.subr.mxu0 0.0
    %2094 = vmatpush2.msra.mxu0 0.0
    %2095 = vmatprep.subr.mxu0 0.0
    %2096 = vmatpush2.msra.mxu0 0.0
    %2097 = vmatprep.subr.mxu0 0.0
    %2098 = vmatpush2.msra.mxu0 0.0
    %2099 = vmatprep.subr.mxu0 0.0
    %2100 = vmatpush2.msra.mxu0 0.0
    %2101 = vmatprep.subr.mxu0 0.0
    %2102 = vmatpush2.msra.mxu0 0.0
    %2103 = vmatprep.subr.mxu0 0.0
    %2104 = vmatpush2.msra.mxu0 0.0
    %2105 = vmatprep.subr.mxu0 0.0
    %2106 = vmatpush2.msra.mxu0 0.0
    %2107 = vmatprep.subr.mxu0 0.0
    %2108 = vmatpush2.msra.mxu0 0.0
    %2109 = vmatprep.subr.mxu0 0.0
    %2110 = vmatpush2.msra.mxu0 0.0
    %2111 = vmatprep.mubr.f32.mxu0 0.0
    %2112 = vmatmul.mubr.f32.gmra.mxu0 %v2045
    %v2113 = vpop.f32.mrf.mxu0
    %v2114 = vadd.f32 %v2039, %v2113
    %v2115 = vpop.f32.mrf.mxu0
    %2116 = vdwg.mxu0
    %v2117 = vadd.f32 %v2114, %v484
    %v2118 = vxor.u32 %v2117, 2147483648
    %v2119 = vmul.f32 %v2118, 1.442695
    %v2120 = vpow.pop %v2119
    %v2121 = vadd.f32 %v2120, 1.0
    %v2122 = vrcp.pop %v2121
    %v2123 = vmul.f32 1.0, %v2122
    %v2124 = vtanh.pop %v2117
    %v2125 = vmul.f32 %v2123, %v1863
    %2127 = vrot.lane.b32.xlu0 %v2124, 32
    %v2128 = vpop.permute.xlu0 %2127
    %v2130 = vmul.f32 %v2123, %v2128
    %2132 = vrot.lane.b32.xlu0 %v2130, 32
    %v2133 = vpop.permute.xlu0 %2132
    %v2135 = vadd.f32 %v2125, %v2133
    %v2136 = vtanh.pop %v2135
    %2138 = vrot.lane.b32.xlu0 %v2136, 32
    %v2139 = vpop.permute.xlu0 %2138
    %v2141 = vmul.f32 %v2123, %v2139
    %2143 = vrot.lane.b32.xlu0 %v2141, 64
    %v2144 = vpop.permute.xlu0 %2143
    %2146 = vst.msk [vmem:[#allocation2 + $0x30] sm:$0xff] %vm237, %v2144
    %2147 = vmatprep.subr.mxu0 0.0
    %2148 = vmatpush1.msra.mxu0 0.0
    %2149 = vmatprep.subr.mxu0 0.0
    %2150 = vmatpush1.msra.mxu0 0.0
    %2151 = vmatprep.subr.mxu0 0.0
    %2152 = vmatpush1.msra.mxu0 0.0
    %2153 = vmatprep.subr.mxu0 0.0
    %2154 = vmatpush1.msra.mxu0 0.0
    %2155 = vmatprep.subr.mxu0 0.0
    %2156 = vmatpush1.msra.mxu0 0.0
    %2157 = vmatprep.subr.mxu0 0.0
    %2158 = vmatpush1.msra.mxu0 0.0
    %2159 = vmatprep.subr.mxu0 0.0
    %2160 = vmatpush1.msra.mxu0 0.0
    %2161 = vmatprep.subr.mxu0 0.0
    %2162 = vmatpush1.msra.mxu0 0.0
    %2163 = vmatprep.subr.mxu0 0.0
    %2164 = vmatpush1.msra.mxu0 0.0
    %2165 = vmatprep.subr.mxu0 0.0
    %2166 = vmatpush1.msra.mxu0 0.0
    %2167 = vmatprep.subr.mxu0 0.0
    %2168 = vmatpush1.msra.mxu0 0.0
    %2169 = vmatprep.subr.mxu0 0.0
    %2170 = vmatpush1.msra.mxu0 0.0
    %2171 = vmatprep.subr.mxu0 0.0
    %2172 = vmatpush1.msra.mxu0 %v226
    %2173 = vmatprep.subr.mxu0 0.0
    %2174 = vmatpush1.msra.mxu0 %v225
    %2175 = vmatprep.subr.mxu0 0.0
    %2176 = vmatpush1.msra.mxu0 %v224
    %2177 = vmatprep.subr.mxu0 0.0
    %2178 = vmatpush1.msra.mxu0 %v223
    %2179 = vmatprep.subr.mxu0 0.0
    %2180 = vmatpush2.msra.mxu0 0.0
    %2181 = vmatprep.subr.mxu0 0.0
    %2182 = vmatpush2.msra.mxu0 0.0
    %2183 = vmatprep.subr.mxu0 0.0
    %2184 = vmatpush2.msra.mxu0 0.0
    %2185 = vmatprep.subr.mxu0 0.0
    %2186 = vmatpush2.msra.mxu0 0.0
    %2187 = vmatprep.subr.mxu0 0.0
    %2188 = vmatpush2.msra.mxu0 0.0
    %2189 = vmatprep.subr.mxu0 0.0
    %2190 = vmatpush2.msra.mxu0 0.0
    %2191 = vmatprep.subr.mxu0 0.0
    %2192 = vmatpush2.msra.mxu0 0.0
    %2193 = vmatprep.subr.mxu0 0.0
    %2194 = vmatpush2.msra.mxu0 0.0
    %2195 = vmatprep.subr.mxu0 0.0
    %2196 = vmatpush2.msra.mxu0 0.0
    %2197 = vmatprep.subr.mxu0 0.0
    %2198 = vmatpush2.msra.mxu0 0.0
    %2199 = vmatprep.subr.mxu0 0.0
    %2200 = vmatpush2.msra.mxu0 0.0
    %2201 = vmatprep.subr.mxu0 0.0
    %2202 = vmatpush2.msra.mxu0 0.0
    %2203 = vmatprep.subr.mxu0 0.0
    %2204 = vmatpush2.msra.mxu0 0.0
    %2205 = vmatprep.subr.mxu0 0.0
    %2206 = vmatpush2.msra.mxu0 0.0
    %2207 = vmatprep.subr.mxu0 0.0
    %2208 = vmatpush2.msra.mxu0 0.0
    %2209 = vmatprep.subr.mxu0 0.0
    %2210 = vmatpush2.msra.mxu0 0.0
    %2211 = vmatprep.mubr.f32.mxu0 0.0
    %2212 = vmatmul.mubr.f32.gmra.mxu0 %v2045
    %v2213 = vpop.f32.mrf.mxu0
    %v2214 = vadd.f32 0.0, %v2213
    %v2215 = vpop.f32.mrf.mxu0
    %2216 = vdwg.mxu0
    %v2217 = vadd.f32 %v220, %v2214
    %v2218 = vxor.u32 %v2217, 2147483648
    %v2219 = vmul.f32 %v2218, 1.442695
    %v2220 = vpow.pop %v2219
    %v2221 = vadd.f32 %v2220, 1.0
    %v2222 = vrcp.pop %v2221
    %v2223 = vmul.f32 1.0, %v2222
    %v2224 = vtanh.pop %v2217
    %v2225 = vmul.f32 %v2223, %v1963
    %2227 = vrot.lane.b32.xlu0 %v2224, 32
    %v2228 = vpop.permute.xlu0 %2227
    %v2230 = vmul.f32 %v2223, %v2228
    %2232 = vrot.lane.b32.xlu0 %v2230, 32
    %v2233 = vpop.permute.xlu0 %2232
    %v2235 = vadd.f32 %v2225, %v2233
    %v2236 = vtanh.pop %v2235
    %2238 = vrot.lane.b32.xlu0 %v2236, 32
    %v2239 = vpop.permute.xlu0 %2238
    %v2241 = vmul.f32 %v2223, %v2239
    %v2242 = vsel %vm237, %v2144, 0
    %2244 = vmatprep.subr.mxu0 0.0
    %2245 = vmatpush1.msra.mxu0 0.0
    %2246 = vmatprep.subr.mxu0 0.0
    %2247 = vmatpush1.msra.mxu0 0.0
    %2248 = vmatprep.subr.mxu0 0.0
    %2249 = vmatpush1.msra.mxu0 0.0
    %2250 = vmatprep.subr.mxu0 0.0
    %2251 = vmatpush1.msra.mxu0 0.0
    %2252 = vmatprep.subr.mxu0 0.0
    %2253 = vmatpush1.msra.mxu0 0.0
    %2254 = vmatprep.subr.mxu0 0.0
    %2255 = vmatpush1.msra.mxu0 0.0
    %2256 = vmatprep.subr.mxu0 0.0
    %2257 = vmatpush1.msra.mxu0 0.0
    %2258 = vmatprep.subr.mxu0 0.0
    %2259 = vmatpush1.msra.mxu0 0.0
    %2260 = vmatprep.subr.mxu0 0.0
    %2261 = vmatpush1.msra.mxu0 0.0
    %2262 = vmatprep.subr.mxu0 0.0
    %2263 = vmatpush1.msra.mxu0 0.0
    %2264 = vmatprep.subr.mxu0 0.0
    %2265 = vmatpush1.msra.mxu0 0.0
    %2266 = vmatprep.subr.mxu0 0.0
    %2267 = vmatpush1.msra.mxu0 0.0
    %2268 = vmatprep.subr.mxu0 0.0
    %2269 = vmatpush1.msra.mxu0 %v235
    %2270 = vmatprep.subr.mxu0 0.0
    %2271 = vmatpush1.msra.mxu0 %v234
    %2272 = vmatprep.subr.mxu0 0.0
    %2273 = vmatpush1.msra.mxu0 %v233
    %2274 = vmatprep.subr.mxu0 0.0
    %2275 = vmatpush1.msra.mxu0 %v232
    %2276 = vmatprep.subr.mxu0 0.0
    %2277 = vmatpush2.msra.mxu0 0.0
    %2278 = vmatprep.subr.mxu0 0.0
    %2279 = vmatpush2.msra.mxu0 0.0
    %2280 = vmatprep.subr.mxu0 0.0
    %2281 = vmatpush2.msra.mxu0 0.0
    %2282 = vmatprep.subr.mxu0 0.0
    %2283 = vmatpush2.msra.mxu0 0.0
    %2284 = vmatprep.subr.mxu0 0.0
    %2285 = vmatpush2.msra.mxu0 0.0
    %2286 = vmatprep.subr.mxu0 0.0
    %2287 = vmatpush2.msra.mxu0 0.0
    %2288 = vmatprep.subr.mxu0 0.0
    %2289 = vmatpush2.msra.mxu0 0.0
    %2290 = vmatprep.subr.mxu0 0.0
    %2291 = vmatpush2.msra.mxu0 0.0
    %2292 = vmatprep.subr.mxu0 0.0
    %2293 = vmatpush2.msra.mxu0 0.0
    %2294 = vmatprep.subr.mxu0 0.0
    %2295 = vmatpush2.msra.mxu0 0.0
    %2296 = vmatprep.subr.mxu0 0.0
    %2297 = vmatpush2.msra.mxu0 0.0
    %2298 = vmatprep.subr.mxu0 0.0
    %2299 = vmatpush2.msra.mxu0 0.0
    %2300 = vmatprep.subr.mxu0 0.0
    %2301 = vmatpush2.msra.mxu0 0.0
    %2302 = vmatprep.subr.mxu0 0.0
    %2303 = vmatpush2.msra.mxu0 0.0
    %2304 = vmatprep.subr.mxu0 0.0
    %2305 = vmatpush2.msra.mxu0 0.0
    %2306 = vmatprep.subr.mxu0 0.0
    %2307 = vmatpush2.msra.mxu0 0.0
    %2308 = vmatprep.mubr.f32.mxu0 0.0
    %2309 = vmatmul.mubr.f32.gmra.mxu0 %v2242
    %v2310 = vpop.f32.mrf.mxu0
    %v2311 = vadd.f32 0.0, %v2310
    %v2312 = vpop.f32.mrf.mxu0
    %2313 = vdwg.mxu0
    %2315 = vrot.lane.b32.xlu0 %v2241, 64
    %v2316 = vpop.permute.xlu0 %2315
    %v2317 = vsel %vm237, %v2316, 0
    %2319 = vmatprep.subr.mxu0 0.0
    %2320 = vmatpush1.msra.mxu0 0.0
    %2321 = vmatprep.subr.mxu0 0.0
    %2322 = vmatpush1.msra.mxu0 0.0
    %2323 = vmatprep.subr.mxu0 0.0
    %2324 = vmatpush1.msra.mxu0 0.0
    %2325 = vmatprep.subr.mxu0 0.0
    %2326 = vmatpush1.msra.mxu0 0.0
    %2327 = vmatprep.subr.mxu0 0.0
    %2328 = vmatpush1.msra.mxu0 0.0
    %2329 = vmatprep.subr.mxu0 0.0
    %2330 = vmatpush1.msra.mxu0 0.0
    %2331 = vmatprep.subr.mxu0 0.0
    %2332 = vmatpush1.msra.mxu0 0.0
    %2333 = vmatprep.subr.mxu0 0.0
    %2334 = vmatpush1.msra.mxu0 0.0
    %2335 = vmatprep.subr.mxu0 0.0
    %2336 = vmatpush1.msra.mxu0 0.0
    %2337 = vmatprep.subr.mxu0 0.0
    %2338 = vmatpush1.msra.mxu0 0.0
    %2339 = vmatprep.subr.mxu0 0.0
    %2340 = vmatpush1.msra.mxu0 0.0
    %2341 = vmatprep.subr.mxu0 0.0
    %2342 = vmatpush1.msra.mxu0 0.0
    %2343 = vmatprep.subr.mxu0 0.0
    %2344 = vmatpush1.msra.mxu0 %v231
    %2345 = vmatprep.subr.mxu0 0.0
    %2346 = vmatpush1.msra.mxu0 %v230
    %2347 = vmatprep.subr.mxu0 0.0
    %2348 = vmatpush1.msra.mxu0 %v229
    %2349 = vmatprep.subr.mxu0 0.0
    %2350 = vmatpush1.msra.mxu0 %v228
    %2351 = vmatprep.subr.mxu0 0.0
    %2352 = vmatpush2.msra.mxu0 0.0
    %2353 = vmatprep.subr.mxu0 0.0
    %2354 = vmatpush2.msra.mxu0 0.0
    %2355 = vmatprep.subr.mxu0 0.0
    %2356 = vmatpush2.msra.mxu0 0.0
    %2357 = vmatprep.subr.mxu0 0.0
    %2358 = vmatpush2.msra.mxu0 0.0
    %2359 = vmatprep.subr.mxu0 0.0
    %2360 = vmatpush2.msra.mxu0 0.0
    %2361 = vmatprep.subr.mxu0 0.0
    %2362 = vmatpush2.msra.mxu0 0.0
    %2363 = vmatprep.subr.mxu0 0.0
    %2364 = vmatpush2.msra.mxu0 0.0
    %2365 = vmatprep.subr.mxu0 0.0
    %2366 = vmatpush2.msra.mxu0 0.0
    %2367 = vmatprep.subr.mxu0 0.0
    %2368 = vmatpush2.msra.mxu0 0.0
    %2369 = vmatprep.subr.mxu0 0.0
    %2370 = vmatpush2.msra.mxu0 0.0
    %2371 = vmatprep.subr.mxu0 0.0
    %2372 = vmatpush2.msra.mxu0 0.0
    %2373 = vmatprep.subr.mxu0 0.0
    %2374 = vmatpush2.msra.mxu0 0.0
    %2375 = vmatprep.subr.mxu0 0.0
    %2376 = vmatpush2.msra.mxu0 0.0
    %2377 = vmatprep.subr.mxu0 0.0
    %2378 = vmatpush2.msra.mxu0 0.0
    %2379 = vmatprep.subr.mxu0 0.0
    %2380 = vmatpush2.msra.mxu0 0.0
    %2381 = vmatprep.subr.mxu0 0.0
    %2382 = vmatpush2.msra.mxu0 0.0
    %2383 = vmatprep.mubr.f32.mxu0 0.0
    %2384 = vmatmul.mubr.f32.gmra.mxu0 %v2317
    %v2385 = vpop.f32.mrf.mxu0
    %v2386 = vadd.f32 %v2311, %v2385
    %v2387 = vpop.f32.mrf.mxu0
    %2388 = vdwg.mxu0
    %v2389 = vadd.f32 %v2386, %v484
    %v2390 = vxor.u32 %v2389, 2147483648
    %v2391 = vmul.f32 %v2390, 1.442695
    %v2392 = vpow.pop %v2391
    %v2393 = vadd.f32 %v2392, 1.0
    %v2394 = vrcp.pop %v2393
    %v2395 = vmul.f32 1.0, %v2394
    %v2396 = vtanh.pop %v2389
    %v2397 = vmul.f32 %v2395, %v2135
    %2399 = vrot.lane.b32.xlu0 %v2396, 32
    %v2400 = vpop.permute.xlu0 %2399
    %v2402 = vmul.f32 %v2395, %v2400
    %2404 = vrot.lane.b32.xlu0 %v2402, 32
    %v2405 = vpop.permute.xlu0 %2404
    %v2407 = vadd.f32 %v2397, %v2405
    %v2408 = vtanh.pop %v2407
    %2410 = vrot.lane.b32.xlu0 %v2408, 32
    %v2411 = vpop.permute.xlu0 %2410
    %v2413 = vmul.f32 %v2395, %v2411
    %2415 = vrot.lane.b32.xlu0 %v2413, 64
    %v2416 = vpop.permute.xlu0 %2415
    %2418 = vst.msk [vmem:[#allocation2 + $0x38] sm:$0xff] %vm237, %v2416
    %2420 = vst.msk [vmem:[#allocation9] sm:$0xff] %vm237, %v2316
    %2422 = vrot.lane.b32.xlu0 %v2235, 96
    %v2423 = vpop.permute.xlu0 %2422
    %s2425 = scalar_lea.vmem [#allocation9], 16
    %2426 = vst.msk [vmem:[%s2425] sm:$0xff] %vm237, %v2423
    %s2427 = scalar_lea.vmem [#allocation9], 8
    %2428 = vst.msk [vmem:[%s2427] sm:$0xff] %vm237, %v2416
    %2430 = vrot.lane.b32.xlu0 %v2407, 96
    %v2431 = vpop.permute.xlu0 %2430
    %s2433 = scalar_lea.vmem [#allocation9], 24
    %2434 = vst.msk [vmem:[%s2433] sm:$0xff] %vm237, %v2431
    %v2435 = vld [vmem:[#allocation2] sm:$0xff]
    %v2436 = vld [vmem:[#allocation2 + $0x8] sm:$0xff]
    %v2437 = vld [vmem:[#allocation2 + $0x10] sm:$0xff]
    %v2438 = vld [vmem:[#allocation2 + $0x18] sm:$0xff]
    %v2439 = vld [vmem:[#allocation2 + $0x20] sm:$0xff]
    %v2440 = vld [vmem:[#allocation2 + $0x28] sm:$0xff]
    %v2441 = vld [vmem:[#allocation2 + $0x30] sm:$0xff]
    %v2442 = vld [vmem:[#allocation2 + $0x38] sm:$0xff]
    %v2443 = vld [vmem:[%s4] sm:$0xff]
    %v2444 = vld [vmem:[%s4 + $0x8] sm:$0xff]
    %v2445 = vld [vmem:[%s4 + $0x10] sm:$0xff]
    %v2446 = vld [vmem:[%s4 + $0x18] sm:$0xff]
    %v2447 = vld [vmem:[%s5] sm:$0x1]
    %v2449 = vlaneseq
    %v2450 = vshrl.u32 %v2449, 7
    %v2451 = vsub.s32 0, %v2450
    %v2452 = vrot.slane %v2447, %v2451
    %v2455 = vsel %vm237, %v2435, 0
    %v2458 = vsel %vm237, %v2436, 0
    %v2461 = vsel %vm237, %v2437, 0
    %v2464 = vsel %vm237, %v2438, 0
    %v2467 = vsel %vm237, %v2439, 0
    %v2470 = vsel %vm237, %v2440, 0
    %v2473 = vsel %vm237, %v2441, 0
    %v2476 = vsel %vm237, %v2442, 0
    %2478 = vmatprep.subr.mxu0 0.0
    %2479 = vmatpush1.msra.mxu0 0.0
    %2480 = vmatprep.subr.mxu0 0.0
    %2481 = vmatpush1.msra.mxu0 0.0
    %2482 = vmatprep.subr.mxu0 0.0
    %2483 = vmatpush1.msra.mxu0 0.0
    %2484 = vmatprep.subr.mxu0 0.0
    %2485 = vmatpush1.msra.mxu0 0.0
    %2486 = vmatprep.subr.mxu0 0.0
    %2487 = vmatpush1.msra.mxu0 0.0
    %2488 = vmatprep.subr.mxu0 0.0
    %2489 = vmatpush1.msra.mxu0 0.0
    %2490 = vmatprep.subr.mxu0 0.0
    %2491 = vmatpush1.msra.mxu0 0.0
    %2492 = vmatprep.subr.mxu0 0.0
    %2493 = vmatpush1.msra.mxu0 0.0
    %2494 = vmatprep.subr.mxu0 0.0
    %2495 = vmatpush1.msra.mxu0 0.0
    %2496 = vmatprep.subr.mxu0 0.0
    %2497 = vmatpush1.msra.mxu0 0.0
    %2498 = vmatprep.subr.mxu0 0.0
    %2499 = vmatpush1.msra.mxu0 0.0
    %2500 = vmatprep.subr.mxu0 0.0
    %2501 = vmatpush1.msra.mxu0 0.0
    %2502 = vmatprep.subr.mxu0 0.0
    %2503 = vmatpush1.msra.mxu0 %v2446
    %2504 = vmatprep.subr.mxu0 0.0
    %2505 = vmatpush1.msra.mxu0 %v2445
    %2506 = vmatprep.subr.mxu0 0.0
    %2507 = vmatpush1.msra.mxu0 %v2444
    %2508 = vmatprep.subr.mxu0 0.0
    %2509 = vmatpush1.msra.mxu0 %v2443
    %2510 = vmatprep.subr.mxu0 0.0
    %2511 = vmatpush2.msra.mxu0 0.0
    %2512 = vmatprep.subr.mxu0 0.0
    %2513 = vmatpush2.msra.mxu0 0.0
    %2514 = vmatprep.subr.mxu0 0.0
    %2515 = vmatpush2.msra.mxu0 0.0
    %2516 = vmatprep.subr.mxu0 0.0
    %2517 = vmatpush2.msra.mxu0 0.0
    %2518 = vmatprep.subr.mxu0 0.0
    %2519 = vmatpush2.msra.mxu0 0.0
    %2520 = vmatprep.subr.mxu0 0.0
    %2521 = vmatpush2.msra.mxu0 0.0
    %2522 = vmatprep.subr.mxu0 0.0
    %2523 = vmatpush2.msra.mxu0 0.0
    %2524 = vmatprep.subr.mxu0 0.0
    %2525 = vmatpush2.msra.mxu0 0.0
    %2526 = vmatprep.subr.mxu0 0.0
    %2527 = vmatpush2.msra.mxu0 0.0
    %2528 = vmatprep.subr.mxu0 0.0
    %2529 = vmatpush2.msra.mxu0 0.0
    %2530 = vmatprep.subr.mxu0 0.0
    %2531 = vmatpush2.msra.mxu0 0.0
    %2532 = vmatprep.subr.mxu0 0.0
    %2533 = vmatpush2.msra.mxu0 0.0
    %2534 = vmatprep.subr.mxu0 0.0
    %2535 = vmatpush2.msra.mxu0 0.0
    %2536 = vmatprep.subr.mxu0 0.0
    %2537 = vmatpush2.msra.mxu0 0.0
    %2538 = vmatprep.subr.mxu0 0.0
    %2539 = vmatpush2.msra.mxu0 0.0
    %2540 = vmatprep.subr.mxu0 0.0
    %2541 = vmatpush2.msra.mxu0 0.0
    %2542 = vmatprep.mubr.f32.mxu0 0.0
    %2543 = vmatmul.mubr.f32.gmra.mxu0 %v2455
    %v2544 = vpop.f32.mrf.mxu0
    %v2545 = vadd.f32 %v2452, %v2544
    %v2546 = vpop.f32.mrf.mxu0
    %2547 = vmatprep.mubr.f32.mxu0 0.0
    %2548 = vmatmul.mubr.f32.gmra.mxu0 %v2458
    %v2549 = vpop.f32.mrf.mxu0
    %v2550 = vadd.f32 %v2452, %v2549
    %v2551 = vpop.f32.mrf.mxu0
    %2552 = vmatprep.mubr.f32.mxu0 0.0
    %2553 = vmatmul.mubr.f32.gmra.mxu0 %v2461
    %v2554 = vpop.f32.mrf.mxu0
    %v2555 = vadd.f32 %v2452, %v2554
    %v2556 = vpop.f32.mrf.mxu0
    %2557 = vmatprep.mubr.f32.mxu0 0.0
    %2558 = vmatmul.mubr.f32.gmra.mxu0 %v2464
    %v2559 = vpop.f32.mrf.mxu0
    %v2560 = vadd.f32 %v2452, %v2559
    %v2561 = vpop.f32.mrf.mxu0
    %2562 = vmatprep.mubr.f32.mxu0 0.0
    %2563 = vmatmul.mubr.f32.gmra.mxu0 %v2467
    %v2564 = vpop.f32.mrf.mxu0
    %v2565 = vadd.f32 %v2452, %v2564
    %v2566 = vpop.f32.mrf.mxu0
    %2567 = vmatprep.mubr.f32.mxu0 0.0
    %2568 = vmatmul.mubr.f32.gmra.mxu0 %v2470
    %v2569 = vpop.f32.mrf.mxu0
    %v2570 = vadd.f32 %v2452, %v2569
    %v2571 = vpop.f32.mrf.mxu0
    %2572 = vmatprep.mubr.f32.mxu0 0.0
    %2573 = vmatmul.mubr.f32.gmra.mxu0 %v2473
    %v2574 = vpop.f32.mrf.mxu0
    %v2575 = vadd.f32 %v2452, %v2574
    %v2576 = vpop.f32.mrf.mxu0
    %2577 = vmatprep.mubr.f32.mxu0 0.0
    %2578 = vmatmul.mubr.f32.gmra.mxu0 %v2476
    %v2579 = vpop.f32.mrf.mxu0
    %v2580 = vadd.f32 %v2452, %v2579
    %v2581 = vpop.f32.mrf.mxu0
    %2582 = vdwg.mxu0
    %vm2583 = vcmask 48128
    %2584 = vst.msk [vmem:[%s6] sm:$0xff] %vm2583, %v2545
    %2585 = vst.msk [vmem:[%s6 + $0x8] sm:$0xff] %vm2583, %v2550
    %2586 = vst.msk [vmem:[%s6 + $0x10] sm:$0xff] %vm2583, %v2555
    %2587 = vst.msk [vmem:[%s6 + $0x18] sm:$0xff] %vm2583, %v2560
    %2588 = vst.msk [vmem:[%s6 + $0x20] sm:$0xff] %vm2583, %v2565
    %2589 = vst.msk [vmem:[%s6 + $0x28] sm:$0xff] %vm2583, %v2570
    %2590 = vst.msk [vmem:[%s6 + $0x30] sm:$0xff] %vm2583, %v2575
    %2591 = vst.msk [vmem:[%s6 + $0x38] sm:$0xff] %vm2583, %v2580
    // Predicated region
    $region38: #{tpu_custom_call.1} parent=1 // pred_check
      _
    $region39: #{tpu_custom_call.1} parent=1 // pred_check_branch
      %2593 = sbr.rel (0) target = $region41
    $region40: #{tpu_custom_call.1} parent=1 // pred_region
      _
    $region41: #{tpu_custom_call.1} parent=1 // pred_fallthru
      _
    // Predicated region
    $region42: #{tpu_custom_call.1} parent=1 // pred_check
      _
    $region43: #{tpu_custom_call.1} parent=1 // pred_check_branch
      %2595 = sbr.rel (0) target = $region45
    $region44: #{tpu_custom_call.1} parent=1 // pred_region
      %s2597 = ssub.s32 512, 512
      %2598 = vsyncadd [#allocation5], %s2597
      %s2599 = sshll.u32 [#allocation9], 4
      %s2600 = int_to_ptr.vmem [resolvable:$true] %s2599
      %2605 = dma.vmem_to_hbm [thread:$0]  %s2600, 512, %s7, [#allocation5], 128, 128, 8
    $region45: #{tpu_custom_call.1} parent=1 // pred_fallthru
      _
    // Predicated region
    $region46: #{tpu_custom_call.1} parent=1 // pred_check
      _
    $region47: #{tpu_custom_call.1} parent=1 // pred_check_branch
      %2607 = sbr.rel (0) target = $region49
    $region48: #{tpu_custom_call.1} parent=1 // pred_region
      _
    $region49: #{tpu_custom_call.1} parent=1 // pred_fallthru
      _
    // Predicated region
    $region50: #{tpu_custom_call.1} parent=1 // pred_check
      _
    $region51: #{tpu_custom_call.1} parent=1 // pred_check_branch
      %2609 = sbr.rel (0) target = $region53
    $region52: #{tpu_custom_call.1} parent=1 // pred_region
      %2610 = dma.done [#allocation5], 512
    $region53: #{tpu_custom_call.1} parent=1 // pred_fallthru
      _
    %2611 = vsyncpa [#allocation4], 1
    %2612 = vsyncpa [#allocation7], 1
    %2613 = vsyncpa [#allocation5], 1

</llo_original>
